<compile_context>
chip_gen: v6e
topology: v6e:2x2x1
jax: 0.10.0
libtpu: 0.0.40
codegen_flags: <defaults>
</compile_context>

<pallas_src>
import math
from functools import partial

import jax
import jax.numpy as jnp
from jax import lax
from jax.experimental import pallas as pl
from jax.experimental.pallas import tpu as pltpu

NEG_SLOPE = 0.2
VMEM_LIMIT = 64 * 1024 * 1024   # <= v7x physical VMEM; generous headroom on v5e/v6e (128 MiB)


def _leaky(x):
    return jnp.where(x >= 0, x, NEG_SLOPE * x)


def _mm(a, b):
    return jnp.dot(a, b, preferred_element_type=jnp.float32)


def _mm_t(a, w):
    # a @ w.T with w in torch (out_features, in_features) layout.
    return lax.dot_general(a, w, (((1,), (1,)), ((), ())),
                           preferred_element_type=jnp.float32)


def _pick_tile(L):
    # Largest power-of-two row tile (<=128) dividing L.  For very long sequences this
    # bounds per-tile VMEM (edge block = TL1*L2*d_edge*4 bytes) and gives the software
    # pipeline enough steps to hide HBM latency; shrink further per generation if needed.
    for t in (128, 64, 32, 16, 8):
        if L % t == 0:
            return t
    return L


# --------------------------------------------------------------------------
# Host-side weight preparation (call ONCE at init).  Every affine-only chain of
# the module is pre-composed so the kernels only run a few wide matmuls.
# --------------------------------------------------------------------------
def prepare_weights(p, d_node, d_edge, d_diff, H):
    f32 = jnp.float32
    hp = lax.Precision.HIGHEST
    mm = lambda a, b: jnp.matmul(a.astype(f32), b.astype(f32), precision=hp)
    d_k, d_e, d_d = d_node // H, d_edge // H, d_diff // H
    eyeH = jnp.eye(H, dtype=f32)
    blk = lambda m: jnp.kron(eyeH, m.astype(f32))            # per-head block-diagonal
    col = lambda v: jnp.kron(eyeH, v.astype(f32)[:, None])   # per-head column (n -> (H*n, H))
    row1 = lambda v: v.astype(f32)[None, :]

    # ---- stage 1: edge update (fully affine -> fold Wn/Wd/We, edge_linear, out_proj_edge)
    ew = p['edge_w']                  # (d_e, d_e + 2*d_k + d_d); concat order [e, hi, hj, di]
    w_e, w_hi = ew[:, :d_e], ew[:, d_e:d_e + d_k]
    w_hj, w_di = ew[:, d_e + d_k:d_e + 2 * d_k], ew[:, d_e + 2 * d_k:]
    Wo_e = p['out_e_w'].T.astype(f32)

    e_path = mm(blk(w_e.T), Wo_e)     # (d_edge, d_edge)
    hi_path = mm(blk(w_hi.T), Wo_e)   # (d_node, d_edge)
    hj_path = mm(blk(w_hj.T), Wo_e)   # (d_node, d_edge)
    di_path = mm(blk(w_di.T), Wo_e)   # (d_diff, d_edge)

    W_EDGE_A = mm(p['We_w'].T, e_path)
    W_TGT_A = mm(p['Wn_w'].T, hi_path)
    W_DIF_A = mm(p['Wd_w'].T, di_path)
    W_COL_A = mm(p['Wn_w'].T, hj_path)
    BIAS_A = (mm(row1(p['We_b']), e_path) + mm(row1(p['Wn_b']), hi_path)
              + mm(row1(p['Wn_b']), hj_path) + mm(row1(p['Wd_b']), di_path)
              + mm(row1(jnp.tile(p['edge_b'], H)), Wo_e) + row1(p['out_e_b']))

    # ---- stage 2: node update ------------------------------------------------------
    at, ab = p['attn_t_w'][0], p['attn_b_w'][0]
    a_hi_t, a_hj_t = at[:d_k], at[d_k:2 * d_k]
    a_e_t, a_di_t = at[2 * d_k:2 * d_k + d_e], at[2 * d_k + d_e:]
    a_hi_b, a_hj_b, a_e_b = ab[:d_k], ab[d_k:2 * d_k], ab[2 * d_k:]

    WH_BIG = blk(p['Wh_w'].T)                     # head-folded Wh
    bh = row1(jnp.tile(p['Wh_b'], H))
    Wo_n = p['out_n_w'].T.astype(f32)
    bon = row1(p['out_n_b'])
    zH = jnp.zeros((1, 2 * H), f32)

    # target rows -> columns [ Wh(tp2) | tp2@Wo_n (+out bias) | ct | kt ]
    T_cols = jnp.concatenate([WH_BIG, Wo_n, col(a_hi_t), col(a_hj_b)], axis=1)
    D_cols = jnp.concatenate([jnp.zeros((d_diff, 2 * d_node), f32),
                              col(a_di_t), jnp.zeros((d_diff, H), f32)], axis=1)
    W_T_N = mm(p['Wn2_w'].T, T_cols)
    W_T_D = mm(p['Wd2_w'].T, D_cols)
    b_T = (mm(row1(p['Wn2_b']), T_cols) + mm(row1(p['Wd2_b']), D_cols)
           + jnp.concatenate([bh, bon, zH], axis=1))

    # binder rows -> columns [ Wh(bp2) | bp2@Wo_n (+out bias) | kb | cb ]
    B_cols = jnp.concatenate([WH_BIG, Wo_n, col(a_hj_t), col(a_hi_b)], axis=1)
    W_B = mm(p['Wn2_w'].T, B_cols)
    b_B = mm(row1(p['Wn2_b']), B_cols) + jnp.concatenate([bh, bon, zH], axis=1)

    # edge rows -> per-head [target-score | binder-score] contributions (We_2 folded in)
    E_cols = jnp.concatenate([col(a_e_t), col(a_e_b)], axis=1)   # (d_edge, 2H)
    W_ESC = mm(p['We2_w'].T, E_cols)
    b_ESC = mm(row1(p['We2_b']), E_cols)

    HEXP = jnp.kron(eyeH, jnp.ones((1, d_k), f32))   # (H, d_node) head -> head-block mask

    return dict(W_EDGE_A=W_EDGE_A, W_TGT_A=W_TGT_A, W_DIF_A=W_DIF_A,
                W_COL_A=W_COL_A, BIAS_A=BIAS_A,
                W_T_N=W_T_N, W_T_D=W_T_D, b_T=b_T, W_B=W_B, b_B=b_B,
                W_ESC=W_ESC, b_ESC=b_ESC, HEXP=HEXP,
                out_n_w=p['out_n_w'].astype(f32))


# --------------------------------------------------------------------------
# Kernel A: stage-1 edge update (all projections + edge_linear + out_proj_edge folded)
# --------------------------------------------------------------------------
def _edge_update(target, binder, diff, edge_flat, W, tl1):
    B, L1, d_node = target.shape
    L2 = binder.shape[1]
    d_diff = diff.shape[-1]
    d_edge = edge_flat.shape[-1]
    nt = L1 // tl1

    def kernel(t_ref, b_ref, f_ref, e_ref,
               wtgt_ref, wdif_ref, wcol_ref, wedge_ref, bias_ref, out_ref):
        row = _mm(t_ref[0], wtgt_ref[...]) + _mm(f_ref[0], wdif_ref[...]) + bias_ref[...]
        col = _mm(b_ref[0], wcol_ref[...])
        ee = _mm(e_ref[0], wedge_ref[...])                       # (tl1*L2, d_edge)
        ne = ee.reshape(tl1, L2, d_edge) + row[:, None, :] + col[None, :, :]
        out_ref[0] = ne.reshape(tl1, L2 * d_edge)                # lane-dense store

    wspec = lambda r, c: pl.BlockSpec((r, c), lambda b, t: (0, 0))
    return pl.pallas_call(
        kernel,
        out_shape=jax.ShapeDtypeStruct((B, L1, L2 * d_edge), jnp.float32),
        grid=(B, nt),
        in_specs=[
            pl.BlockSpec((1, tl1, d_node), lambda b, t: (b, t, 0)),
            pl.BlockSpec((1, L2, d_node), lambda b, t: (b, 0, 0)),
            pl.BlockSpec((1, tl1, d_diff), lambda b, t: (b, t, 0)),
            pl.BlockSpec((1, tl1 * L2, d_edge), lambda b, t: (b, t, 0)),
            wspec(d_node, d_edge), wspec(d_diff, d_edge),
            wspec(d_node, d_edge), wspec(d_edge, d_edge), wspec(1, d_edge),
        ],
        out_specs=pl.BlockSpec((1, tl1, L2 * d_edge), lambda b, t: (b, t, 0)),
        compiler_params=pltpu.CompilerParams(
            dimension_semantics=("parallel", "parallel"),
            vmem_limit_bytes=VMEM_LIMIT),
    )(target, binder, diff, edge_flat,
      W['W_TGT_A'], W['W_DIF_A'], W['W_COL_A'], W['W_EDGE_A'], W['BIAS_A'])


# --------------------------------------------------------------------------
# Kernel B: stage-2 node updates.  Target attention is complete per L1 tile;
# binder attention does an online softmax over L1 tiles (scratch accumulators).
# --------------------------------------------------------------------------
def _node_update(target, binder, diff, edge_flat, W, H, tl1):
    B, L1, d_node = target.shape
    L2 = binder.shape[1]
    d_diff = diff.shape[-1]
    d_edge = edge_flat.shape[-1]
    nt = L1 // tl1
    CW = 2 * d_node + 2 * H

    def kernel(t_ref, b_ref, f_ref, e_ref,
               wtn_ref, wtd_ref, bt_ref, wb_ref, bb_ref,
               wesc_ref, besc_ref, hexp_ref, won_ref,
               out_t_ref, out_b_ref,
               brow_sc, whbx_sc, m_sc, l_sc, acc_sc):
        t = pl.program_id(1)

        @pl.when(t == 0)
        def _():
            # Binder-row projection is L1-invariant: compute once per batch element.
            brow = _mm(b_ref[0], wb_ref[...]) + bb_ref[...]
            brow_sc[...] = brow
            whb = brow[:, :d_node]                               # Wh(binder_proj_2), head-folded
            whbx_sc[...] = (whb[:, None, :]
                            * hexp_ref[...][None, :, :]).reshape(L2 * H, d_node)
            m_sc[...] = jnp.full_like(m_sc, -jnp.inf)
            l_sc[...] = jnp.zeros_like(l_sc)
            acc_sc[...] = jnp.zeros_like(acc_sc)

        hexp = hexp_ref[...]
        trow = _mm(t_ref[0], wtn_ref[...]) + _mm(f_ref[0], wtd_ref[...]) + bt_ref[...]
        wht = trow[:, :d_node]                       # Wh(target_proj_2): values for binder attn
        t_res = trow[:, d_node:2 * d_node]           # target_proj_2 @ out_w.T (+ out bias)
        ct = trow[:, 2 * d_node:2 * d_node + H]      # target-attn query term
        kt = trow[:, 2 * d_node + H:]                # binder-attn key term

        esc = (_mm(e_ref[0], wesc_ref[...]) + besc_ref[...]).reshape(tl1, L2, 2 * H)
        et, eb = esc[..., :H], esc[..., H:]

        brow = brow_sc[...]
        b_res = brow[:, d_node:2 * d_node]
        kb = brow[:, 2 * d_node:2 * d_node + H]      # target-attn key term
        cb = brow[:, 2 * d_node + H:]                # binder-attn query term

        # ---- target-side attention: softmax over the (full) binder axis -------------
        s_t = _leaky(et + ct[:, None, :] + kb[None, :, :])              # (tl1, L2, H)
        p_t = jnp.exp(s_t - jnp.max(s_t, axis=1, keepdims=True))
        prob_t = p_t * pl.reciprocal(jnp.sum(p_t, axis=1, keepdims=True), approx=True)
        agg_t = _mm(prob_t.reshape(tl1, L2 * H), whbx_sc[...])          # MXU aggregation
        out_t_ref[0] = t_res + _mm_t(_leaky(agg_t), won_ref[...])

        # ---- binder-side attention: online softmax over the target (tile) axis ------
        s_b = _leaky(eb + kt[:, None, :] + cb[None, :, :])              # (tl1, L2, H)
        m_new = jnp.maximum(m_sc[...], jnp.max(s_b, axis=0))            # (L2, H)
        alpha = jnp.exp(m_sc[...] - m_new)
        p_b = jnp.exp(s_b - m_new[None, :, :])
        l_sc[...] = alpha * l_sc[...] + jnp.sum(p_b, axis=0)
        # contraction over the tile axis on the MXU (trans-A matmul)
        inc_full = lax.dot_general(p_b.reshape(tl1, L2 * H), wht,
                                   (((0,), (0,)), ((), ())),
                                   preferred_element_type=jnp.float32)  # (L2*H, d_node)
        inc = jnp.sum(inc_full.reshape(L2, H, d_node) * hexp[None, :, :], axis=1)
        acc_sc[...] = _mm(alpha, hexp) * acc_sc[...] + inc
        m_sc[...] = m_new

        @pl.when(t == pl.num_programs(1) - 1)
        def _():
            agg_b = acc_sc[...] * _mm(pl.reciprocal(l_sc[...], approx=True), hexp)
            out_b_ref[0] = b_res + _mm_t(_leaky(agg_b), won_ref[...])

    wspec = lambda r, c: pl.BlockSpec((r, c), lambda b, t: (0, 0))
    return pl.pallas_call(
        kernel,
        out_shape=(jax.ShapeDtypeStruct((B, L1, d_node), jnp.float32),
                   jax.ShapeDtypeStruct((B, L2, d_node), jnp.float32)),
        grid=(B, nt),
        in_specs=[
            pl.BlockSpec((1, tl1, d_node), lambda b, t: (b, t, 0)),
            pl.BlockSpec((1, L2, d_node), lambda b, t: (b, 0, 0)),
            pl.BlockSpec((1, tl1, d_diff), lambda b, t: (b, t, 0)),
            pl.BlockSpec((1, tl1 * L2, d_edge), lambda b, t: (b, t, 0)),
            wspec(d_node, CW), wspec(d_diff, CW), wspec(1, CW),
            wspec(d_node, CW), wspec(1, CW),
            wspec(d_edge, 2 * H), wspec(1, 2 * H),
            wspec(H, d_node), wspec(d_node, d_node),
        ],
        out_specs=(pl.BlockSpec((1, tl1, d_node), lambda b, t: (b, t, 0)),
                   pl.BlockSpec((1, L2, d_node), lambda b, t: (b, 0, 0))),
        scratch_shapes=[
            pltpu.VMEM((L2, CW), jnp.float32),          # binder rows (reused over tiles)
            pltpu.VMEM((L2 * H, d_node), jnp.float32),  # head-expanded Wh(binder) values
            pltpu.VMEM((L2, H), jnp.float32),           # running max (binder softmax)
            pltpu.VMEM((L2, H), jnp.float32),           # running denom
            pltpu.VMEM((L2, d_node), jnp.float32),      # running aggregation
        ],
        compiler_params=pltpu.CompilerParams(
            dimension_semantics=("parallel", "arbitrary"),
            vmem_limit_bytes=VMEM_LIMIT),
    )(target, binder, diff, edge_flat,
      W['W_T_N'], W['W_T_D'], W['b_T'], W['W_B'], W['b_B'],
      W['W_ESC'], W['b_ESC'], W['HEXP'], W['out_n_w'])


# --------------------------------------------------------------------------
# Full CrossGraphAttention forward
# --------------------------------------------------------------------------
def cross_graph_attention_forward(folded, target, binder, edge, diff, num_heads):
    B, L1, _ = target.shape
    L2 = binder.shape[1]
    d_edge = edge.shape[-1]
    tl1 = _pick_tile(L1)

    edge_flat = edge.reshape(B, L1 * L2, d_edge)                 # metadata-only reshape
    new_edge_dense = _edge_update(target, binder, diff, edge_flat, folded, tl1)
    new_edge_flat = new_edge_dense.reshape(B, L1 * L2, d_edge)   # free: same contiguous bytes
    new_target, new_binder = _node_update(target, binder, diff, new_edge_flat,
                                          folded, num_heads, tl1)
    new_edge = new_edge_dense.reshape(B, L1, L2, d_edge)
    return new_target, new_binder, new_edge


# --------------------------------------------------------------------------
# Pure-JAX reference (mirrors the PyTorch forward exactly) for validation
# --------------------------------------------------------------------------
def reference_forward(params, target, binder, edge, diff, H):
    hp = lax.Precision.HIGHEST
    B, L1, d_node = target.shape
    L2 = binder.shape[1]
    d_edge = edge.shape[-1]
    d_diff = diff.shape[-1]
    d_k, d_e, d_d = d_node // H, d_edge // H, d_diff // H

    def lin(x, w, b=None):
        y = jnp.einsum('...i,oi->...o', x, w, precision=hp)
        return y if b is None else y + b

    tp = lin(target, params['Wn_w'], params['Wn_b']).reshape(B, L1, H, d_k)
    bp = lin(binder, params['Wn_w'], params['Wn_b']).reshape(B, L2, H, d_k)
    ep = lin(edge, params['We_w'], params['We_b']).reshape(B, L1, L2, H, d_e)
    dp = lin(diff, params['Wd_w'], params['Wd_b']).reshape(B, L1, H, d_d)

    hi = jnp.broadcast_to(tp[:, :, None], (B, L1, L2, H, d_k))
    hj = jnp.broadcast_to(bp[:, None], (B, L1, L2, H, d_k))
    di = jnp.broadcast_to(dp[:, :, None], (B, L1, L2, H, d_d))
    cat_e = jnp.concatenate([ep, hi, hj, di], axis=-1)
    ne_h = lin(cat_e, params['edge_w'], params['edge_b'])
    new_edge = lin(ne_h.reshape(B, L1, L2, d_edge), params['out_e_w'], params['out_e_b'])

    tp2 = lin(target, params['Wn2_w'], params['Wn2_b']).reshape(B, L1, H, d_k)
    bp2 = lin(binder, params['Wn2_w'], params['Wn2_b']).reshape(B, L2, H, d_k)
    ep2 = lin(new_edge, params['We2_w'], params['We2_b']).reshape(B, L1, L2, H, d_e)
    dp2 = lin(diff, params['Wd2_w'], params['Wd2_b']).reshape(B, L1, H, d_d)

    # target attention
    hi2 = jnp.broadcast_to(tp2[:, :, None], (B, L1, L2, H, d_k))
    hj2 = jnp.broadcast_to(bp2[:, None], (B, L1, L2, H, d_k))
    di2 = jnp.broadcast_to(dp2[:, :, None], (B, L1, L2, H, d_d))
    cat_t = jnp.concatenate([hi2, hj2, ep2, di2], axis=-1)
    s_t = jnp.einsum('bijhc,c->bijh', cat_t, params['attn_t_w'][0], precision=hp)
    p_t = jax.nn.softmax(_leaky(s_t), axis=2)
    whb = lin(bp2, params['Wh_w'], params['Wh_b'])
    agg_t = jnp.einsum('bijh,bjhd->bihd', p_t, whb, precision=hp)
    new_target = lin((tp2 + _leaky(agg_t)).reshape(B, L1, d_node),
                     params['out_n_w'], params['out_n_b'])

    # binder attention
    bi = jnp.broadcast_to(bp2[:, :, None], (B, L2, L1, H, d_k))
    tj = jnp.broadcast_to(tp2[:, None], (B, L2, L1, H, d_k))
    e_tr = ep2.transpose(0, 2, 1, 3, 4)
    cat_b = jnp.concatenate([bi, tj, e_tr], axis=-1)
    s_b = jnp.einsum('bjihc,c->bjih', cat_b, params['attn_b_w'][0], precision=hp)
    p_b = jax.nn.softmax(_leaky(s_b), axis=2)
    wht = lin(tp2, params['Wh_w'], params['Wh_b'])
    agg_b = jnp.einsum('bjih,bihd->bjhd', p_b, wht, precision=hp)
    new_binder = lin((bp2 + _leaky(agg_b)).reshape(B, L2, d_node),
                     params['out_n_w'], params['out_n_b'])

    return new_target, new_binder, new_edge


# --------------------------------------------------------------------------
# Parameter init (kaiming_uniform fan_in, leaky_relu; small random biases so the
# validation exercises every bias path -- torch zeroes them, the math doesn't care)
# --------------------------------------------------------------------------
def kaiming_uniform(key, out_f, in_f, a=NEG_SLOPE):
    gain = math.sqrt(2.0 / (1.0 + a * a))
    bound = gain * math.sqrt(3.0 / in_f)
    return jax.random.uniform(key, (out_f, in_f), jnp.float32, -bound, bound)


def init_params(key, d_node, d_edge, d_diff, H):
    d_k, d_e, d_d = d_node // H, d_edge // H, d_diff // H
    ks = jax.random.split(key, 22)
    b = lambda k, n: jax.random.uniform(k, (n,), jnp.float32, -0.1, 0.1)
    return {
        'Wn_w': kaiming_uniform(ks[0], d_node, d_node), 'Wn_b': b(ks[12], d_node),
        'Wh_w': kaiming_uniform(ks[1], d_k, d_k), 'Wh_b': b(ks[13], d_k),
        'We_w': kaiming_uniform(ks[2], d_edge, d_edge), 'We_b': b(ks[14], d_edge),
        'Wn2_w': kaiming_uniform(ks[3], d_node, d_node), 'Wn2_b': b(ks[15], d_node),
        'We2_w': kaiming_uniform(ks[4], d_edge, d_edge), 'We2_b': b(ks[16], d_edge),
        'Wd_w': kaiming_uniform(ks[5], d_diff, d_diff), 'Wd_b': b(ks[17], d_diff),
        'Wd2_w': kaiming_uniform(ks[6], d_diff, d_diff), 'Wd2_b': b(ks[18], d_diff),
        'attn_t_w': kaiming_uniform(ks[7], 1, 2 * d_k + d_e + d_d),   # no bias
        'attn_b_w': kaiming_uniform(ks[8], 1, 2 * d_k + d_e),         # no bias
        'edge_w': kaiming_uniform(ks[9], d_e, 2 * d_k + d_e + d_d), 'edge_b': b(ks[19], d_e),
        'out_n_w': kaiming_uniform(ks[10], d_node, d_node), 'out_n_b': b(ks[20], d_node),
        'out_e_w': kaiming_uniform(ks[11], d_edge, d_edge), 'out_e_b': b(ks[21], d_edge),
    }


if __name__ == "__main__":
    B, L1, L2 = 2, 8, 8
    d_node, d_edge, d_diff, H = 32, 16, 16, 4

    key = jax.random.PRNGKey(0)
    kp, kt, kb, ke, kd = jax.random.split(key, 5)
    params = init_params(kp, d_node, d_edge, d_diff, H)
    target = jax.random.normal(kt, (B, L1, d_node), jnp.float32)
    binder = jax.random.normal(kb, (B, L2, d_node), jnp.float32)
    edge = jax.random.normal(ke, (B, L1, L2, d_edge), jnp.float32)
    diff = jax.random.normal(kd, (B, L1, d_diff), jnp.float32)

    folded = prepare_weights(params, d_node, d_edge, d_diff, H)   # hoisted out of the forward

    fwd = jax.jit(partial(cross_graph_attention_forward, num_heads=H))
    new_t, new_b, new_e = fwd(folded, target, binder, edge, diff)
    jax.block_until_ready((new_t, new_b, new_e))

    ref_t, ref_b, ref_e = reference_forward(params, target, binder, edge, diff, H)

    assert new_t.shape == (B, L1, d_node)
    assert new_b.shape == (B, L2, d_node)
    assert new_e.shape == (B, L1, L2, d_edge)
    assert bool(jnp.isfinite(new_t).all())
    assert bool(jnp.isfinite(new_b).all())
    assert bool(jnp.isfinite(new_e).all())
    dt = float(jnp.max(jnp.abs(new_t - ref_t)))
    db = float(jnp.max(jnp.abs(new_b - ref_b)))
    de = float(jnp.max(jnp.abs(new_e - ref_e)))
    # tolerance covers default MXU precision + approx-reciprocal softmax denominators
    assert dt < 3e-2 and db < 3e-2 and de < 3e-2, (dt, db, de)
    print("KERNEL_OK")
</pallas_src>

<mosaic_0001>
module attributes {stable_mosaic.version = 11 : i64} {
  func.func @kernel(%arg0: i32, %arg1: i32, %arg2: memref<1x8x32xf32, #tpu.memory_space<vmem>>, %arg3: memref<1x8x32xf32, #tpu.memory_space<vmem>>, %arg4: memref<1x8x16xf32, #tpu.memory_space<vmem>>, %arg5: memref<1x64x16xf32, #tpu.memory_space<vmem>>, %arg6: memref<32x16xf32, #tpu.memory_space<vmem>>, %arg7: memref<16x16xf32, #tpu.memory_space<vmem>>, %arg8: memref<32x16xf32, #tpu.memory_space<vmem>>, %arg9: memref<16x16xf32, #tpu.memory_space<vmem>>, %arg10: memref<1x16xf32, #tpu.memory_space<vmem>>, %arg11: memref<1x8x128xf32, #tpu.memory_space<vmem>>) attributes {dimension_semantics = [#tpu.dimension_semantics<parallel>, #tpu.dimension_semantics<parallel>], iteration_bounds = array<i64: 2, 1>, scalar_prefetch = 0 : i64, scratch_operands = 0 : i64, tpu.core_type = #tpu.core_type<tc>, window_params = [{transform_indices = @transform_0, window_bounds = array<i64: 1, 8, 32>}, {transform_indices = @transform_1, window_bounds = array<i64: 1, 8, 32>}, {transform_indices = @transform_2, window_bounds = array<i64: 1, 8, 16>}, {transform_indices = @transform_3, window_bounds = array<i64: 1, 64, 16>}, {pipeline_mode = #tpu.pipeline_mode<synchronous>, transform_indices = @transform_4, window_bounds = array<i64: 32, 16>}, {pipeline_mode = #tpu.pipeline_mode<synchronous>, transform_indices = @transform_5, window_bounds = array<i64: 16, 16>}, {pipeline_mode = #tpu.pipeline_mode<synchronous>, transform_indices = @transform_6, window_bounds = array<i64: 32, 16>}, {pipeline_mode = #tpu.pipeline_mode<synchronous>, transform_indices = @transform_7, window_bounds = array<i64: 16, 16>}, {pipeline_mode = #tpu.pipeline_mode<synchronous>, transform_indices = @transform_8, window_bounds = array<i64: 1, 16>}, {transform_indices = @transform_9, window_bounds = array<i64: 1, 8, 128>}]} {
    %c0 = arith.constant 0 : index
    %c0_0 = arith.constant 0 : index
    %c0_1 = arith.constant 0 : index
    %0 = vector.load %arg2[%c0, %c0_0, %c0_1] : memref<1x8x32xf32, #tpu.memory_space<vmem>>, vector<1x8x32xf32>
    %1 = vector.shape_cast %0 : vector<1x8x32xf32> to vector<8x32xf32>
    %c0_2 = arith.constant 0 : index
    %c0_3 = arith.constant 0 : index
    %2 = vector.load %arg6[%c0_2, %c0_3] : memref<32x16xf32, #tpu.memory_space<vmem>>, vector<32x16xf32>
    %cst = arith.constant dense<0.000000e+00> : vector<8x16xf32>
    %3 = tpu.matmul %1, %2, %cst {dimension_numbers = #tpu.dot_dimension_numbers<[1], [0], [0], [1], [0, 0, 1, 1], [], []>} : vector<8x32xf32>, vector<32x16xf32>, vector<8x16xf32> -> vector<8x16xf32>
    %c0_4 = arith.constant 0 : index
    %c0_5 = arith.constant 0 : index
    %c0_6 = arith.constant 0 : index
    %4 = vector.load %arg4[%c0_4, %c0_5, %c0_6] : memref<1x8x16xf32, #tpu.memory_space<vmem>>, vector<1x8x16xf32>
    %5 = vector.shape_cast %4 : vector<1x8x16xf32> to vector<8x16xf32>
    %c0_7 = arith.constant 0 : index
    %c0_8 = arith.constant 0 : index
    %6 = vector.load %arg7[%c0_7, %c0_8] : memref<16x16xf32, #tpu.memory_space<vmem>>, vector<16x16xf32>
    %cst_9 = arith.constant dense<0.000000e+00> : vector<8x16xf32>
    %7 = tpu.matmul %5, %6, %cst_9 {dimension_numbers = #tpu.dot_dimension_numbers<[1], [0], [0], [1], [0, 0, 1, 1], [], []>} : vector<8x16xf32>, vector<16x16xf32>, vector<8x16xf32> -> vector<8x16xf32>
    %8 = arith.addf %3, %7 : vector<8x16xf32>
    %c0_10 = arith.constant 0 : index
    %c0_11 = arith.constant 0 : index
    %9 = vector.load %arg10[%c0_10, %c0_11] : memref<1x16xf32, #tpu.memory_space<vmem>>, vector<1x16xf32>
    %10 = vector.broadcast %9 : vector<1x16xf32> to vector<8x16xf32>
    %11 = arith.addf %8, %10 : vector<8x16xf32>
    %c0_12 = arith.constant 0 : index
    %c0_13 = arith.constant 0 : index
    %c0_14 = arith.constant 0 : index
    %12 = vector.load %arg3[%c0_12, %c0_13, %c0_14] : memref<1x8x32xf32, #tpu.memory_space<vmem>>, vector<1x8x32xf32>
    %13 = vector.shape_cast %12 : vector<1x8x32xf32> to vector<8x32xf32>
    %c0_15 = arith.constant 0 : index
    %c0_16 = arith.constant 0 : index
    %14 = vector.load %arg8[%c0_15, %c0_16] : memref<32x16xf32, #tpu.memory_space<vmem>>, vector<32x16xf32>
    %cst_17 = arith.constant dense<0.000000e+00> : vector<8x16xf32>
    %15 = tpu.matmul %13, %14, %cst_17 {dimension_numbers = #tpu.dot_dimension_numbers<[1], [0], [0], [1], [0, 0, 1, 1], [], []>} : vector<8x32xf32>, vector<32x16xf32>, vector<8x16xf32> -> vector<8x16xf32>
    %c0_18 = arith.constant 0 : index
    %c0_19 = arith.constant 0 : index
    %c0_20 = arith.constant 0 : index
    %16 = vector.load %arg5[%c0_18, %c0_19, %c0_20] : memref<1x64x16xf32, #tpu.memory_space<vmem>>, vector<1x64x16xf32>
    %17 = vector.shape_cast %16 : vector<1x64x16xf32> to vector<64x16xf32>
    %c0_21 = arith.constant 0 : index
    %c0_22 = arith.constant 0 : index
    %18 = vector.load %arg9[%c0_21, %c0_22] : memref<16x16xf32, #tpu.memory_space<vmem>>, vector<16x16xf32>
    %cst_23 = arith.constant dense<0.000000e+00> : vector<64x16xf32>
    %19 = tpu.matmul %17, %18, %cst_23 {dimension_numbers = #tpu.dot_dimension_numbers<[1], [0], [0], [1], [0, 0, 1, 1], [], []>} : vector<64x16xf32>, vector<16x16xf32>, vector<64x16xf32> -> vector<64x16xf32>
    %20 = vector.shape_cast %19 : vector<64x16xf32> to vector<8x8x16xf32>
    %21 = vector.shape_cast %11 : vector<8x16xf32> to vector<8x1x16xf32>
    %22 = vector.broadcast %21 : vector<8x1x16xf32> to vector<8x8x16xf32>
    %23 = arith.addf %20, %22 : vector<8x8x16xf32>
    %24 = vector.shape_cast %15 : vector<8x16xf32> to vector<1x8x16xf32>
    %25 = vector.broadcast %24 : vector<1x8x16xf32> to vector<8x8x16xf32>
    %26 = arith.addf %23, %25 : vector<8x8x16xf32>
    %27 = vector.shape_cast %26 : vector<8x8x16xf32> to vector<8x128xf32>
    %c0_24 = arith.constant 0 : index
    %c0_25 = arith.constant 0 : index
    %c0_26 = arith.constant 0 : index
    %28 = vector.load %arg11[%c0_24, %c0_25, %c0_26] : memref<1x8x128xf32, #tpu.memory_space<vmem>>, vector<1x8x128xf32>
    %29 = vector.shape_cast %28 : vector<1x8x128xf32> to vector<8x128xf32>
    %30 = vector.shape_cast %27 : vector<8x128xf32> to vector<1x8x128xf32>
    tpu.vector_store %arg11[%c0_24, %c0_25, %c0_26], %30 {strides = array<i32>} : memref<1x8x128xf32, #tpu.memory_space<vmem>>, vector<1x8x128xf32>,
    return
  }
  func.func @transform_0(%arg0: i32, %arg1: i32) -> (i32, i32, i32) {
    %c0_i32 = arith.constant 0 : i32
    %c0_i32_0 = arith.constant 0 : i32
    return %arg0, %arg1, %c0_i32 : i32, i32, i32
  }
  func.func @transform_1(%arg0: i32, %arg1: i32) -> (i32, i32, i32) {
    %c0_i32 = arith.constant 0 : i32
    %c0_i32_0 = arith.constant 0 : i32
    %c0_i32_1 = arith.constant 0 : i32
    return %arg0, %c0_i32, %c0_i32_0 : i32, i32, i32
  }
  func.func @transform_2(%arg0: i32, %arg1: i32) -> (i32, i32, i32) {
    %c0_i32 = arith.constant 0 : i32
    %c0_i32_0 = arith.constant 0 : i32
    return %arg0, %arg1, %c0_i32 : i32, i32, i32
  }
  func.func @transform_3(%arg0: i32, %arg1: i32) -> (i32, i32, i32) {
    %c0_i32 = arith.constant 0 : i32
    %c0_i32_0 = arith.constant 0 : i32
    return %arg0, %arg1, %c0_i32 : i32, i32, i32
  }
  func.func @transform_4(%arg0: i32, %arg1: i32) -> (i32, i32) {
    %c0_i32 = arith.constant 0 : i32
    %c0_i32_0 = arith.constant 0 : i32
    %c0_i32_1 = arith.constant 0 : i32
    return %c0_i32, %c0_i32_0 : i32, i32
  }
  func.func @transform_5(%arg0: i32, %arg1: i32) -> (i32, i32) {
    %c0_i32 = arith.constant 0 : i32
    %c0_i32_0 = arith.constant 0 : i32
    %c0_i32_1 = arith.constant 0 : i32
    return %c0_i32, %c0_i32_0 : i32, i32
  }
  func.func @transform_6(%arg0: i32, %arg1: i32) -> (i32, i32) {
    %c0_i32 = arith.constant 0 : i32
    %c0_i32_0 = arith.constant 0 : i32
    %c0_i32_1 = arith.constant 0 : i32
    return %c0_i32, %c0_i32_0 : i32, i32
  }
  func.func @transform_7(%arg0: i32, %arg1: i32) -> (i32, i32) {
    %c0_i32 = arith.constant 0 : i32
    %c0_i32_0 = arith.constant 0 : i32
    %c0_i32_1 = arith.constant 0 : i32
    return %c0_i32, %c0_i32_0 : i32, i32
  }
  func.func @transform_8(%arg0: i32, %arg1: i32) -> (i32, i32) {
    %c0_i32 = arith.constant 0 : i32
    %c0_i32_0 = arith.constant 0 : i32
    %c0_i32_1 = arith.constant 0 : i32
    return %c0_i32, %c0_i32_0 : i32, i32
  }
  func.func @transform_9(%arg0: i32, %arg1: i32) -> (i32, i32, i32) {
    %c0_i32 = arith.constant 0 : i32
    %c0_i32_0 = arith.constant 0 : i32
    return %arg0, %arg1, %c0_i32 : i32, i32, i32
  }
}

module attributes {stable_mosaic.version = 11 : i64} {
  func.func @kernel(%arg0: i32, %arg1: i32, %arg2: memref<1x8x32xf32, #tpu.memory_space<vmem>>, %arg3: memref<1x8x32xf32, #tpu.memory_space<vmem>>, %arg4: memref<1x8x16xf32, #tpu.memory_space<vmem>>, %arg5: memref<1x64x16xf32, #tpu.memory_space<vmem>>, %arg6: memref<32x72xf32, #tpu.memory_space<vmem>>, %arg7: memref<16x72xf32, #tpu.memory_space<vmem>>, %arg8: memref<1x72xf32, #tpu.memory_space<vmem>>, %arg9: memref<32x72xf32, #tpu.memory_space<vmem>>, %arg10: memref<1x72xf32, #tpu.memory_space<vmem>>, %arg11: memref<16x8xf32, #tpu.memory_space<vmem>>, %arg12: memref<1x8xf32, #tpu.memory_space<vmem>>, %arg13: memref<4x32xf32, #tpu.memory_space<vmem>>, %arg14: memref<32x32xf32, #tpu.memory_space<vmem>>, %arg15: memref<1x8x32xf32, #tpu.memory_space<vmem>>, %arg16: memref<1x8x32xf32, #tpu.memory_space<vmem>>, %arg17: memref<8x72xf32, #tpu.memory_space<vmem>>, %arg18: memref<32x32xf32, #tpu.memory_space<vmem>>, %arg19: memref<8x4xf32, #tpu.memory_space<vmem>>, %arg20: memref<8x4xf32, #tpu.memory_space<vmem>>, %arg21: memref<8x32xf32, #tpu.memory_space<vmem>>) attributes {dimension_semantics = [#tpu.dimension_semantics<parallel>, #tpu.dimension_semantics<arbitrary>], iteration_bounds = array<i64: 2, 1>, scalar_prefetch = 0 : i64, scratch_operands = 5 : i64, tpu.core_type = #tpu.core_type<tc>, window_params = [{transform_indices = @transform_0, window_bounds = array<i64: 1, 8, 32>}, {transform_indices = @transform_1, window_bounds = array<i64: 1, 8, 32>}, {transform_indices = @transform_2, window_bounds = array<i64: 1, 8, 16>}, {transform_indices = @transform_3, window_bounds = array<i64: 1, 64, 16>}, {pipeline_mode = #tpu.pipeline_mode<synchronous>, transform_indices = @transform_4, window_bounds = array<i64: 32, 72>}, {pipeline_mode = #tpu.pipeline_mode<synchronous>, transform_indices = @transform_5, window_bounds = array<i64: 16, 72>}, {pipeline_mode = #tpu.pipeline_mode<synchronous>, transform_indices = @transform_6, window_bounds = array<i64: 1, 72>}, {pipeline_mode = #tpu.pipeline_mode<synchronous>, transform_indices = @transform_7, window_bounds = array<i64: 32, 72>}, {pipeline_mode = #tpu.pipeline_mode<synchronous>, transform_indices = @transform_8, window_bounds = array<i64: 1, 72>}, {pipeline_mode = #tpu.pipeline_mode<synchronous>, transform_indices = @transform_9, window_bounds = array<i64: 16, 8>}, {pipeline_mode = #tpu.pipeline_mode<synchronous>, transform_indices = @transform_10, window_bounds = array<i64: 1, 8>}, {pipeline_mode = #tpu.pipeline_mode<synchronous>, transform_indices = @transform_11, window_bounds = array<i64: 4, 32>}, {pipeline_mode = #tpu.pipeline_mode<synchronous>, transform_indices = @transform_12, window_bounds = array<i64: 32, 32>}, {transform_indices = @transform_13, window_bounds = array<i64: 1, 8, 32>}, {transform_indices = @transform_14, window_bounds = array<i64: 1, 8, 32>}]} {
    %c0_i32 = arith.constant 0 : i32
    %0 = arith.cmpi eq, %arg1, %c0_i32 : i32
    %1 = arith.extui %0 : i1 to i32
    %c0_i32_0 = arith.constant 0 : i32
    %2 = arith.cmpi ne, %1, %c0_i32_0 : i32
    scf.if %2 {
      %c0_63 = arith.constant 0 : index
      %c0_64 = arith.constant 0 : index
      %c0_65 = arith.constant 0 : index
      %111 = vector.load %arg3[%c0_63, %c0_64, %c0_65] : memref<1x8x32xf32, #tpu.memory_space<vmem>>, vector<1x8x32xf32>
      %112 = vector.shape_cast %111 : vector<1x8x32xf32> to vector<8x32xf32>
      %c0_66 = arith.constant 0 : index
      %c0_67 = arith.constant 0 : index
      %113 = vector.load %arg9[%c0_66, %c0_67] : memref<32x72xf32, #tpu.memory_space<vmem>>, vector<32x72xf32>
      %cst_68 = arith.constant dense<0.000000e+00> : vector<8x72xf32>
      %114 = tpu.matmul %112, %113, %cst_68 {dimension_numbers = #tpu.dot_dimension_numbers<[1], [0], [0], [1], [0, 0, 1, 1], [], []>} : vector<8x32xf32>, vector<32x72xf32>, vector<8x72xf32> -> vector<8x72xf32>
      %c0_69 = arith.constant 0 : index
      %c0_70 = arith.constant 0 : index
      %115 = vector.load %arg10[%c0_69, %c0_70] : memref<1x72xf32, #tpu.memory_space<vmem>>, vector<1x72xf32>
      %116 = vector.broadcast %115 : vector<1x72xf32> to vector<8x72xf32>
      %117 = arith.addf %114, %116 : vector<8x72xf32>
      %c0_71 = arith.constant 0 : index
      %c0_72 = arith.constant 0 : index
      %118 = vector.load %arg17[%c0_71, %c0_72] : memref<8x72xf32, #tpu.memory_space<vmem>>, vector<8x72xf32>
      tpu.vector_store %arg17[%c0_71, %c0_72], %117 {strides = array<i32>} : memref<8x72xf32, #tpu.memory_space<vmem>>, vector<8x72xf32>,
      %119 = vector.extract_strided_slice %117 {offsets = [0, 0], sizes = [8, 32], strides = [1, 1]} : vector<8x72xf32> to vector<8x32xf32>
      %120 = vector.shape_cast %119 : vector<8x32xf32> to vector<8x1x32xf32>
      %c0_73 = arith.constant 0 : index
      %c0_74 = arith.constant 0 : index
      %121 = vector.load %arg13[%c0_73, %c0_74] : memref<4x32xf32, #tpu.memory_space<vmem>>, vector<4x32xf32>
      %122 = vector.shape_cast %121 : vector<4x32xf32> to vector<1x4x32xf32>
      %123 = vector.broadcast %120 : vector<8x1x32xf32> to vector<8x4x32xf32>
      %124 = vector.broadcast %122 : vector<1x4x32xf32> to vector<8x4x32xf32>
      %125 = arith.mulf %123, %124 : vector<8x4x32xf32>
      %126 = vector.shape_cast %125 : vector<8x4x32xf32> to vector<32x32xf32>
      %c0_75 = arith.constant 0 : index
      %c0_76 = arith.constant 0 : index
      %127 = vector.load %arg18[%c0_75, %c0_76] : memref<32x32xf32, #tpu.memory_space<vmem>>, vector<32x32xf32>
      tpu.vector_store %arg18[%c0_75, %c0_76], %126 {strides = array<i32>} : memref<32x32xf32, #tpu.memory_space<vmem>>, vector<32x32xf32>,
      %cst_77 = arith.constant 0xFF800000 : f32
      %128 = vector.broadcast %cst_77 : f32 to vector<8x4xf32>
      %c0_78 = arith.constant 0 : index
      %c0_79 = arith.constant 0 : index
      %129 = vector.load %arg19[%c0_78, %c0_79] : memref<8x4xf32, #tpu.memory_space<vmem>>, vector<8x4xf32>
      tpu.vector_store %arg19[%c0_78, %c0_79], %128 {strides = array<i32>} : memref<8x4xf32, #tpu.memory_space<vmem>>, vector<8x4xf32>,
      %cst_80 = arith.constant 0.000000e+00 : f32
      %130 = vector.broadcast %cst_80 : f32 to vector<8x4xf32>
      %c0_81 = arith.constant 0 : index
      %c0_82 = arith.constant 0 : index
      %131 = vector.load %arg20[%c0_81, %c0_82] : memref<8x4xf32, #tpu.memory_space<vmem>>, vector<8x4xf32>
      tpu.vector_store %arg20[%c0_81, %c0_82], %130 {strides = array<i32>} : memref<8x4xf32, #tpu.memory_space<vmem>>, vector<8x4xf32>,
      %cst_83 = arith.constant 0.000000e+00 : f32
      %132 = vector.broadcast %cst_83 : f32 to vector<8x32xf32>
      %c0_84 = arith.constant 0 : index
      %c0_85 = arith.constant 0 : index
      %133 = vector.load %arg21[%c0_84, %c0_85] : memref<8x32xf32, #tpu.memory_space<vmem>>, vector<8x32xf32>
      tpu.vector_store %arg21[%c0_84, %c0_85], %132 {strides = array<i32>} : memref<8x32xf32, #tpu.memory_space<vmem>>, vector<8x32xf32>,
    } else {
    }
    %c0 = arith.constant 0 : index
    %c0_1 = arith.constant 0 : index
    %3 = vector.load %arg13[%c0, %c0_1] : memref<4x32xf32, #tpu.memory_space<vmem>>, vector<4x32xf32>
    %c0_2 = arith.constant 0 : index
    %c0_3 = arith.constant 0 : index
    %c0_4 = arith.constant 0 : index
    %4 = vector.load %arg2[%c0_2, %c0_3, %c0_4] : memref<1x8x32xf32, #tpu.memory_space<vmem>>, vector<1x8x32xf32>
    %5 = vector.shape_cast %4 : vector<1x8x32xf32> to vector<8x32xf32>
    %c0_5 = arith.constant 0 : index
    %c0_6 = arith.constant 0 : index
    %6 = vector.load %arg6[%c0_5, %c0_6] : memref<32x72xf32, #tpu.memory_space<vmem>>, vector<32x72xf32>
    %cst = arith.constant dense<0.000000e+00> : vector<8x72xf32>
    %7 = tpu.matmul %5, %6, %cst {dimension_numbers = #tpu.dot_dimension_numbers<[1], [0], [0], [1], [0, 0, 1, 1], [], []>} : vector<8x32xf32>, vector<32x72xf32>, vector<8x72xf32> -> vector<8x72xf32>
    %c0_7 = arith.constant 0 : index
    %c0_8 = arith.constant 0 : index
    %c0_9 = arith.constant 0 : index
    %8 = vector.load %arg4[%c0_7, %c0_8, %c0_9] : memref<1x8x16xf32, #tpu.memory_space<vmem>>, vector<1x8x16xf32>
    %9 = vector.shape_cast %8 : vector<1x8x16xf32> to vector<8x16xf32>
    %c0_10 = arith.constant 0 : index
    %c0_11 = arith.constant 0 : index
    %10 = vector.load %arg7[%c0_10, %c0_11] : memref<16x72xf32, #tpu.memory_space<vmem>>, vector<16x72xf32>
    %cst_12 = arith.constant dense<0.000000e+00> : vector<8x72xf32>
    %11 = tpu.matmul %9, %10, %cst_12 {dimension_numbers = #tpu.dot_dimension_numbers<[1], [0], [0], [1], [0, 0, 1, 1], [], []>} : vector<8x16xf32>, vector<16x72xf32>, vector<8x72xf32> -> vector<8x72xf32>
    %12 = arith.addf %7, %11 : vector<8x72xf32>
    %c0_13 = arith.constant 0 : index
    %c0_14 = arith.constant 0 : index
    %13 = vector.load %arg8[%c0_13, %c0_14] : memref<1x72xf32, #tpu.memory_space<vmem>>, vector<1x72xf32>
    %14 = vector.broadcast %13 : vector<1x72xf32> to vector<8x72xf32>
    %15 = arith.addf %12, %14 : vector<8x72xf32>
    %16 = vector.extract_strided_slice %15 {offsets = [0, 0], sizes = [8, 32], strides = [1, 1]} : vector<8x72xf32> to vector<8x32xf32>
    %17 = vector.extract_strided_slice %15 {offsets = [0, 32], sizes = [8, 32], strides = [1, 1]} : vector<8x72xf32> to vector<8x32xf32>
    %18 = vector.extract_strided_slice %15 {offsets = [0, 64], sizes = [8, 4], strides = [1, 1]} : vector<8x72xf32> to vector<8x4xf32>
    %19 = vector.extract_strided_slice %15 {offsets = [0, 68], sizes = [8, 4], strides = [1, 1]} : vector<8x72xf32> to vector<8x4xf32>
    %c0_15 = arith.constant 0 : index
    %c0_16 = arith.constant 0 : index
    %c0_17 = arith.constant 0 : index
    %20 = vector.load %arg5[%c0_15, %c0_16, %c0_17] : memref<1x64x16xf32, #tpu.memory_space<vmem>>, vector<1x64x16xf32>
    %21 = vector.shape_cast %20 : vector<1x64x16xf32> to vector<64x16xf32>
    %c0_18 = arith.constant 0 : index
    %c0_19 = arith.constant 0 : index
    %22 = vector.load %arg11[%c0_18, %c0_19] : memref<16x8xf32, #tpu.memory_space<vmem>>, vector<16x8xf32>
    %cst_20 = arith.constant dense<0.000000e+00> : vector<64x8xf32>
    %23 = tpu.matmul %21, %22, %cst_20 {dimension_numbers = #tpu.dot_dimension_numbers<[1], [0], [0], [1], [0, 0, 1, 1], [], []>} : vector<64x16xf32>, vector<16x8xf32>, vector<64x8xf32> -> vector<64x8xf32>
    %c0_21 = arith.constant 0 : index
    %c0_22 = arith.constant 0 : index
    %24 = vector.load %arg12[%c0_21, %c0_22] : memref<1x8xf32, #tpu.memory_space<vmem>>, vector<1x8xf32>
    %25 = vector.broadcast %24 : vector<1x8xf32> to vector<64x8xf32>
    %26 = arith.addf %23, %25 : vector<64x8xf32>
    %27 = vector.shape_cast %26 : vector<64x8xf32> to vector<8x8x8xf32>
    %28 = vector.extract_strided_slice %27 {offsets = [0, 0, 0], sizes = [8, 8, 4], strides = [1, 1, 1]} : vector<8x8x8xf32> to vector<8x8x4xf32>
    %29 = vector.extract_strided_slice %27 {offsets = [0, 0, 4], sizes = [8, 8, 4], strides = [1, 1, 1]} : vector<8x8x8xf32> to vector<8x8x4xf32>
    %c0_23 = arith.constant 0 : index
    %c0_24 = arith.constant 0 : index
    %30 = vector.load %arg17[%c0_23, %c0_24] : memref<8x72xf32, #tpu.memory_space<vmem>>, vector<8x72xf32>
    %31 = vector.extract_strided_slice %30 {offsets = [0, 32], sizes = [8, 32], strides = [1, 1]} : vector<8x72xf32> to vector<8x32xf32>
    %32 = vector.extract_strided_slice %30 {offsets = [0, 64], sizes = [8, 4], strides = [1, 1]} : vector<8x72xf32> to vector<8x4xf32>
    %33 = vector.extract_strided_slice %30 {offsets = [0, 68], sizes = [8, 4], strides = [1, 1]} : vector<8x72xf32> to vector<8x4xf32>
    %34 = vector.shape_cast %18 : vector<8x4xf32> to vector<8x1x4xf32>
    %35 = vector.broadcast %34 : vector<8x1x4xf32> to vector<8x8x4xf32>
    %36 = arith.addf %28, %35 : vector<8x8x4xf32>
    %37 = vector.shape_cast %32 : vector<8x4xf32> to vector<1x8x4xf32>
    %38 = vector.broadcast %37 : vector<1x8x4xf32> to vector<8x8x4xf32>
    %39 = arith.addf %36, %38 : vector<8x8x4xf32>
    %cst_25 = arith.constant 0.000000e+00 : f32
    %40 = vector.broadcast %cst_25 : f32 to vector<8x8x4xf32>
    %41 = arith.cmpf oge, %39, %40 : vector<8x8x4xf32>
    %cst_26 = arith.constant 2.000000e-01 : f32
    %42 = vector.broadcast %cst_26 : f32 to vector<8x8x4xf32>
    %43 = arith.mulf %42, %39 : vector<8x8x4xf32>
    %44 = arith.select %41, %39, %43 : vector<8x8x4xi1>, vector<8x8x4xf32>
    %cst_27 = arith.constant dense<0xFF800000> : vector<8x4xf32>
    %45 = vector.multi_reduction <maximumf>, %44, %cst_27 [1] : vector<8x8x4xf32> to vector<8x4xf32>
    %46 = vector.shape_cast %45 : vector<8x4xf32> to vector<8x1x4xf32>
    %47 = vector.broadcast %46 : vector<8x1x4xf32> to vector<8x8x4xf32>
    %48 = arith.subf %44, %47 : vector<8x8x4xf32>
    %49 = math.exp %48 : vector<8x8x4xf32>
    %cst_28 = arith.constant dense<0.000000e+00> : vector<8x4xf32>
    %50 = vector.multi_reduction <add>, %49, %cst_28 [1] : vector<8x8x4xf32> to vector<8x4xf32>
    %51 = vector.shape_cast %50 : vector<8x4xf32> to vector<8x1x4xf32>
    %52 = tpu.reciprocal %51 {approx = true} : vector<8x1x4xf32> -> vector<8x1x4xf32>
    %53 = vector.broadcast %52 : vector<8x1x4xf32> to vector<8x8x4xf32>
    %54 = arith.mulf %49, %53 : vector<8x8x4xf32>
    %55 = vector.shape_cast %54 : vector<8x8x4xf32> to vector<8x32xf32>
    %c0_29 = arith.constant 0 : index
    %c0_30 = arith.constant 0 : index
    %56 = vector.load %arg18[%c0_29, %c0_30] : memref<32x32xf32, #tpu.memory_space<vmem>>, vector<32x32xf32>
    %cst_31 = arith.constant dense<0.000000e+00> : vector<8x32xf32>
    %57 = tpu.matmul %55, %56, %cst_31 {dimension_numbers = #tpu.dot_dimension_numbers<[1], [0], [0], [1], [0, 0, 1, 1], [], []>} : vector<8x32xf32>, vector<32x32xf32>, vector<8x32xf32> -> vector<8x32xf32>
    %cst_32 = arith.constant 0.000000e+00 : f32
    %58 = vector.broadcast %cst_32 : f32 to vector<8x32xf32>
    %59 = arith.cmpf oge, %57, %58 : vector<8x32xf32>
    %cst_33 = arith.constant 2.000000e-01 : f32
    %60 = vector.broadcast %cst_33 : f32 to vector<8x32xf32>
    %61 = arith.mulf %60, %57 : vector<8x32xf32>
    %62 = arith.select %59, %57, %61 : vector<8x32xi1>, vector<8x32xf32>
    %c0_34 = arith.constant 0 : index
    %c0_35 = arith.constant 0 : index
    %63 = vector.load %arg14[%c0_34, %c0_35] : memref<32x32xf32, #tpu.memory_space<vmem>>, vector<32x32xf32>
    %cst_36 = arith.constant dense<0.000000e+00> : vector<8x32xf32>
    %64 = tpu.matmul %62, %63, %cst_36 {dimension_numbers = #tpu.dot_dimension_numbers<[1], [1], [0], [0], [0, 0, 1, 0], [], []>} : vector<8x32xf32>, vector<32x32xf32>, vector<8x32xf32> -> vector<8x32xf32>
    %65 = arith.addf %17, %64 : vector<8x32xf32>
    %c0_37 = arith.constant 0 : index
    %c0_38 = arith.constant 0 : index
    %c0_39 = arith.constant 0 : index
    %66 = vector.load %arg15[%c0_37, %c0_38, %c0_39] : memref<1x8x32xf32, #tpu.memory_space<vmem>>, vector<1x8x32xf32>
    %67 = vector.shape_cast %66 : vector<1x8x32xf32> to vector<8x32xf32>
    %68 = vector.shape_cast %65 : vector<8x32xf32> to vector<1x8x32xf32>
    tpu.vector_store %arg15[%c0_37, %c0_38, %c0_39], %68 {strides = array<i32>} : memref<1x8x32xf32, #tpu.memory_space<vmem>>, vector<1x8x32xf32>,
    %69 = vector.shape_cast %19 : vector<8x4xf32> to vector<8x1x4xf32>
    %70 = vector.broadcast %69 : vector<8x1x4xf32> to vector<8x8x4xf32>
    %71 = arith.addf %29, %70 : vector<8x8x4xf32>
    %72 = vector.shape_cast %33 : vector<8x4xf32> to vector<1x8x4xf32>
    %73 = vector.broadcast %72 : vector<1x8x4xf32> to vector<8x8x4xf32>
    %74 = arith.addf %71, %73 : vector<8x8x4xf32>
    %cst_40 = arith.constant 0.000000e+00 : f32
    %75 = vector.broadcast %cst_40 : f32 to vector<8x8x4xf32>
    %76 = arith.cmpf oge, %74, %75 : vector<8x8x4xf32>
    %cst_41 = arith.constant 2.000000e-01 : f32
    %77 = vector.broadcast %cst_41 : f32 to vector<8x8x4xf32>
    %78 = arith.mulf %77, %74 : vector<8x8x4xf32>
    %79 = arith.select %76, %74, %78 : vector<8x8x4xi1>, vector<8x8x4xf32>
    %c0_42 = arith.constant 0 : index
    %c0_43 = arith.constant 0 : index
    %80 = vector.load %arg19[%c0_42, %c0_43] : memref<8x4xf32, #tpu.memory_space<vmem>>, vector<8x4xf32>
    %cst_44 = arith.constant dense<0xFF800000> : vector<8x4xf32>
    %81 = vector.multi_reduction <maximumf>, %79, %cst_44 [0] : vector<8x8x4xf32> to vector<8x4xf32>
    %82 = arith.maximumf %80, %81 : vector<8x4xf32>
    %c0_45 = arith.constant 0 : index
    %c0_46 = arith.constant 0 : index
    %83 = vector.load %arg19[%c0_45, %c0_46] : memref<8x4xf32, #tpu.memory_space<vmem>>, vector<8x4xf32>
    %84 = arith.subf %83, %82 : vector<8x4xf32>
    %85 = math.exp %84 : vector<8x4xf32>
    %86 = vector.shape_cast %82 : vector<8x4xf32> to vector<1x8x4xf32>
    %87 = vector.broadcast %86 : vector<1x8x4xf32> to vector<8x8x4xf32>
    %88 = arith.subf %79, %87 : vector<8x8x4xf32>
    %89 = math.exp %88 : vector<8x8x4xf32>
    %c0_47 = arith.constant 0 : index
    %c0_48 = arith.constant 0 : index
    %90 = vector.load %arg20[%c0_47, %c0_48] : memref<8x4xf32, #tpu.memory_space<vmem>>, vector<8x4xf32>
    %91 = arith.mulf %85, %90 : vector<8x4xf32>
    %cst_49 = arith.constant dense<0.000000e+00> : vector<8x4xf32>
    %92 = vector.multi_reduction <add>, %89, %cst_49 [0] : vector<8x8x4xf32> to vector<8x4xf32>
    %93 = arith.addf %91, %92 : vector<8x4xf32>
    %c0_50 = arith.constant 0 : index
    %c0_51 = arith.constant 0 : index
    %94 = vector.load %arg20[%c0_50, %c0_51] : memref<8x4xf32, #tpu.memory_space<vmem>>, vector<8x4xf32>
    tpu.vector_store %arg20[%c0_50, %c0_51], %93 {strides = array<i32>} : memref<8x4xf32, #tpu.memory_space<vmem>>, vector<8x4xf32>,
    %95 = vector.shape_cast %89 : vector<8x8x4xf32> to vector<8x32xf32>
    %cst_52 = arith.constant dense<0.000000e+00> : vector<32x32xf32>
    %96 = tpu.matmul %95, %16, %cst_52 {dimension_numbers = #tpu.dot_dimension_numbers<[0], [0], [1], [1], [0, 1, 1, 1], [], []>} : vector<8x32xf32>, vector<8x32xf32>, vector<32x32xf32> -> vector<32x32xf32>
    %97 = vector.shape_cast %96 : vector<32x32xf32> to vector<8x4x32xf32>
    %98 = vector.shape_cast %3 : vector<4x32xf32> to vector<1x4x32xf32>
    %99 = vector.broadcast %98 : vector<1x4x32xf32> to vector<8x4x32xf32>
    %100 = arith.mulf %97, %99 : vector<8x4x32xf32>
    %cst_53 = arith.constant dense<0.000000e+00> : vector<8x32xf32>
    %101 = vector.multi_reduction <add>, %100, %cst_53 [1] : vector<8x4x32xf32> to vector<8x32xf32>
    %cst_54 = arith.constant dense<0.000000e+00> : vector<8x32xf32>
    %102 = tpu.matmul %85, %3, %cst_54 {dimension_numbers = #tpu.dot_dimension_numbers<[1], [0], [0], [1], [0, 0, 1, 1], [], []>} : vector<8x4xf32>, vector<4x32xf32>, vector<8x32xf32> -> vector<8x32xf32>
    %c0_55 = arith.constant 0 : index
    %c0_56 = arith.constant 0 : index
    %103 = vector.load %arg21[%c0_55, %c0_56] : memref<8x32xf32, #tpu.memory_space<vmem>>, vector<8x32xf32>
    %104 = arith.mulf %102, %103 : vector<8x32xf32>
    %105 = arith.addf %104, %101 : vector<8x32xf32>
    %c0_57 = arith.constant 0 : index
    %c0_58 = arith.constant 0 : index
    %106 = vector.load %arg21[%c0_57, %c0_58] : memref<8x32xf32, #tpu.memory_space<vmem>>, vector<8x32xf32>
    tpu.vector_store %arg21[%c0_57, %c0_58], %105 {strides = array<i32>} : memref<8x32xf32, #tpu.memory_space<vmem>>, vector<8x32xf32>,
    %c0_59 = arith.constant 0 : index
    %c0_60 = arith.constant 0 : index
    %107 = vector.load %arg19[%c0_59, %c0_60] : memref<8x4xf32, #tpu.memory_space<vmem>>, vector<8x4xf32>
    tpu.vector_store %arg19[%c0_59, %c0_60], %82 {strides = array<i32>} : memref<8x4xf32, #tpu.memory_space<vmem>>, vector<8x4xf32>,
    %c0_i32_61 = arith.constant 0 : i32
    %108 = arith.cmpi eq, %arg1, %c0_i32_61 : i32
    %109 = arith.extui %108 : i1 to i32
    %c0_i32_62 = arith.constant 0 : i32
    %110 = arith.cmpi ne, %109, %c0_i32_62 : i32
    scf.if %110 {
      %c0_63 = arith.constant 0 : index
      %c0_64 = arith.constant 0 : index
      %111 = vector.load %arg21[%c0_63, %c0_64] : memref<8x32xf32, #tpu.memory_space<vmem>>, vector<8x32xf32>
      %c0_65 = arith.constant 0 : index
      %c0_66 = arith.constant 0 : index
      %112 = vector.load %arg20[%c0_65, %c0_66] : memref<8x4xf32, #tpu.memory_space<vmem>>, vector<8x4xf32>
      %113 = tpu.reciprocal %112 {approx = true} : vector<8x4xf32> -> vector<8x4xf32>
      %cst_67 = arith.constant dense<0.000000e+00> : vector<8x32xf32>
      %114 = tpu.matmul %113, %3, %cst_67 {dimension_numbers = #tpu.dot_dimension_numbers<[1], [0], [0], [1], [0, 0, 1, 1], [], []>} : vector<8x4xf32>, vector<4x32xf32>, vector<8x32xf32> -> vector<8x32xf32>
      %115 = arith.mulf %111, %114 : vector<8x32xf32>
      %cst_68 = arith.constant 0.000000e+00 : f32
      %116 = vector.broadcast %cst_68 : f32 to vector<8x32xf32>
      %117 = arith.cmpf oge, %115, %116 : vector<8x32xf32>
      %cst_69 = arith.constant 2.000000e-01 : f32
      %118 = vector.broadcast %cst_69 : f32 to vector<8x32xf32>
      %119 = arith.mulf %118, %115 : vector<8x32xf32>
      %120 = arith.select %117, %115, %119 : vector<8x32xi1>, vector<8x32xf32>
      %c0_70 = arith.constant 0 : index
      %c0_71 = arith.constant 0 : index
      %121 = vector.load %arg14[%c0_70, %c0_71] : memref<32x32xf32, #tpu.memory_space<vmem>>, vector<32x32xf32>
      %cst_72 = arith.constant dense<0.000000e+00> : vector<8x32xf32>
      %122 = tpu.matmul %120, %121, %cst_72 {dimension_numbers = #tpu.dot_dimension_numbers<[1], [1], [0], [0], [0, 0, 1, 0], [], []>} : vector<8x32xf32>, vector<32x32xf32>, vector<8x32xf32> -> vector<8x32xf32>
      %123 = arith.addf %31, %122 : vector<8x32xf32>
      %c0_73 = arith.constant 0 : index
      %c0_74 = arith.constant 0 : index
      %c0_75 = arith.constant 0 : index
      %124 = vector.load %arg16[%c0_73, %c0_74, %c0_75] : memref<1x8x32xf32, #tpu.memory_space<vmem>>, vector<1x8x32xf32>
      %125 = vector.shape_cast %124 : vector<1x8x32xf32> to vector<8x32xf32>
      %126 = vector.shape_cast %123 : vector<8x32xf32> to vector<1x8x32xf32>
      tpu.vector_store %arg16[%c0_73, %c0_74, %c0_75], %126 {strides = array<i32>} : memref<1x8x32xf32, #tpu.memory_space<vmem>>, vector<1x8x32xf32>,
    } else {
    }
    return
  }
  func.func @transform_0(%arg0: i32, %arg1: i32) -> (i32, i32, i32) {
    %c0_i32 = arith.constant 0 : i32
    %c0_i32_0 = arith.constant 0 : i32
    return %arg0, %arg1, %c0_i32 : i32, i32, i32
  }
  func.func @transform_1(%arg0: i32, %arg1: i32) -> (i32, i32, i32) {
    %c0_i32 = arith.constant 0 : i32
    %c0_i32_0 = arith.constant 0 : i32
    %c0_i32_1 = arith.constant 0 : i32
    return %arg0, %c0_i32, %c0_i32_0 : i32, i32, i32
  }
  func.func @transform_2(%arg0: i32, %arg1: i32) -> (i32, i32, i32) {
    %c0_i32 = arith.constant 0 : i32
    %c0_i32_0 = arith.constant 0 : i32
    return %arg0, %arg1, %c0_i32 : i32, i32, i32
  }
  func.func @transform_3(%arg0: i32, %arg1: i32) -> (i32, i32, i32) {
    %c0_i32 = arith.constant 0 : i32
    %c0_i32_0 = arith.constant 0 : i32
    return %arg0, %arg1, %c0_i32 : i32, i32, i32
  }
  func.func @transform_4(%arg0: i32, %arg1: i32) -> (i32, i32) {
    %c0_i32 = arith.constant 0 : i32
    %c0_i32_0 = arith.constant 0 : i32
    %c0_i32_1 = arith.constant 0 : i32
    return %c0_i32, %c0_i32_0 : i32, i32
  }
  func.func @transform_5(%arg0: i32, %arg1: i32) -> (i32, i32) {
    %c0_i32 = arith.constant 0 : i32
    %c0_i32_0 = arith.constant 0 : i32
    %c0_i32_1 = arith.constant 0 : i32
    return %c0_i32, %c0_i32_0 : i32, i32
  }
  func.func @transform_6(%arg0: i32, %arg1: i32) -> (i32, i32) {
    %c0_i32 = arith.constant 0 : i32
    %c0_i32_0 = arith.constant 0 : i32
    %c0_i32_1 = arith.constant 0 : i32
    return %c0_i32, %c0_i32_0 : i32, i32
  }
  func.func @transform_7(%arg0: i32, %arg1: i32) -> (i32, i32) {
    %c0_i32 = arith.constant 0 : i32
    %c0_i32_0 = arith.constant 0 : i32
    %c0_i32_1 = arith.constant 0 : i32
    return %c0_i32, %c0_i32_0 : i32, i32
  }
  func.func @transform_8(%arg0: i32, %arg1: i32) -> (i32, i32) {
    %c0_i32 = arith.constant 0 : i32
    %c0_i32_0 = arith.constant 0 : i32
    %c0_i32_1 = arith.constant 0 : i32
    return %c0_i32, %c0_i32_0 : i32, i32
  }
  func.func @transform_9(%arg0: i32, %arg1: i32) -> (i32, i32) {
    %c0_i32 = arith.constant 0 : i32
    %c0_i32_0 = arith.constant 0 : i32
    %c0_i32_1 = arith.constant 0 : i32
    return %c0_i32, %c0_i32_0 : i32, i32
  }
  func.func @transform_10(%arg0: i32, %arg1: i32) -> (i32, i32) {
    %c0_i32 = arith.constant 0 : i32
    %c0_i32_0 = arith.constant 0 : i32
    %c0_i32_1 = arith.constant 0 : i32
    return %c0_i32, %c0_i32_0 : i32, i32
  }
  func.func @transform_11(%arg0: i32, %arg1: i32) -> (i32, i32) {
    %c0_i32 = arith.constant 0 : i32
    %c0_i32_0 = arith.constant 0 : i32
    %c0_i32_1 = arith.constant 0 : i32
    return %c0_i32, %c0_i32_0 : i32, i32
  }
  func.func @transform_12(%arg0: i32, %arg1: i32) -> (i32, i32) {
    %c0_i32 = arith.constant 0 : i32
    %c0_i32_0 = arith.constant 0 : i32
    %c0_i32_1 = arith.constant 0 : i32
    return %c0_i32, %c0_i32_0 : i32, i32
  }
  func.func @transform_13(%arg0: i32, %arg1: i32) -> (i32, i32, i32) {
    %c0_i32 = arith.constant 0 : i32
    %c0_i32_0 = arith.constant 0 : i32
    return %arg0, %arg1, %c0_i32 : i32, i32, i32
  }
  func.func @transform_14(%arg0: i32, %arg1: i32) -> (i32, i32, i32) {
    %c0_i32 = arith.constant 0 : i32
    %c0_i32_0 = arith.constant 0 : i32
    %c0_i32_1 = arith.constant 0 : i32
    return %arg0, %c0_i32, %c0_i32_0 : i32, i32, i32
  }
}

</mosaic_0001>

<llo_original>
// kernel: cross_graph_attention_forward.2
$region0: #{cross_graph_attention_forward.2}
  #allocation0 [shape = 'u32[]', space=smem, size = 0x4, offset = 0x4, fixed_abs, tag = 'smem constant byte address 0x4 - core index']
  #allocation1 [shape = 'u32[144,128]{1,0:T(1,128)}', space=vmem, size = 0x12000, scoped, tag = 'internal scratch']
  %s0 = inlined_call_operand.vmem [shape: f32[2,8,32], index: 0, kind: input, shape index: {}]
  %s1 = inlined_call_operand.vmem [shape: f32[2,8,32], index: 1, kind: input, shape index: {}]
  %s2 = inlined_call_operand.vmem [shape: f32[2,8,16], index: 2, kind: input, shape index: {}]
  %s3 = inlined_call_operand.hbm [shape: f32[2,64,16], index: 3, kind: input, shape index: {}]
  %s4 = inlined_call_operand.vmem [shape: f32[32,16], index: 4, kind: input, shape index: {}]
  %s5 = inlined_call_operand.vmem [shape: f32[16,16], index: 5, kind: input, shape index: {}]
  %s6 = inlined_call_operand.vmem [shape: f32[32,16], index: 6, kind: input, shape index: {}]
  %s7 = inlined_call_operand.vmem [shape: f32[16,16], index: 7, kind: input, shape index: {}]
  %s8 = inlined_call_operand.vmem [shape: f32[1,16], index: 8, kind: input, shape index: {}]
  %s9 = inlined_call_operand.vmem [shape: f32[2,8,128], index: 9, kind: output, shape index: {}]
  %s10 = sld [smem:[#allocation0]]
  $region73: #{cross_graph_attention_forward.2} parent=0
    _
  %s12 = ssub.s32 1, %s10
  %s13 = scalar_select 0, %s12, %s10
  $region1: #{cross_graph_attention_forward.2} parent=0
    #allocation2 [shape = 'u8[65536]{0}', space=vmem, size = 0x10000, scoped, tag = 'input window, operand 3']
    #allocation3 [shape = 's32[2]{0}', space=sflag, size = 0x8, scoped, tag = 'scoped memory for cross_graph_attention_forward.2']
    %14 = vsyncpa [#allocation3], 0
    %s15 = scalar_lea.sflag [#allocation3], 1
    %16 = vsyncpa %s15, 0
    loop: start=0, step=1, limit=4
    $region2: #{cross_graph_attention_forward.2} parent=1 // loop_pre_header
      _
    $region3: #{cross_graph_attention_forward.2} parent=1 // loop_header
      %s18 = sphi 0, %s22
      %p19 = scmp.ge.s32.totalorder %s18, 4
      %s25 = sphi 0, %s37
      %s26 = sphi 0, %s33
      %s27 = sphi 0, %s25
      %s28 = sphi 0, %s26
      %s29 = sphi 0, %s27
      %s30 = sphi 0, %s28
      %s42 = sphi 0, %s44
      %s45 = sphi 0, %s42
      %s46 = sphi 0, %s45
      %s62 = sphi 0, %s46
      %s68 = sphi 0, %s70
      %s71 = sphi 0, %s68
      %s72 = sphi 0, %s71
      %s88 = sphi 0, %s72
      %s96 = sphi 0, %s98
      %s99 = sphi 0, %s96
      %s100 = sphi 0, %s99
      %s116 = sphi 0, %s100
      %s124 = sphi 0, %s126
      %s127 = sphi 0, %s124
      %s128 = sphi 0, %s127
      %s144 = sphi 0, %s128
      %s148 = sphi 0, %s148
      %s150 = sphi 0, %s148
      %s151 = sphi 0, %s150
      %s165 = sphi 0, %s151
      %s169 = sphi 0, %s169
      %s171 = sphi 0, %s169
      %s172 = sphi 0, %s171
      %s186 = sphi 0, %s172
      %s190 = sphi 0, %s190
      %s192 = sphi 0, %s190
      %s193 = sphi 0, %s192
      %s207 = sphi 0, %s193
      %s211 = sphi 0, %s211
      %s213 = sphi 0, %s211
      %s214 = sphi 0, %s213
      %s228 = sphi 0, %s214
      %s232 = sphi 0, %s232
      %s234 = sphi 0, %s232
      %s235 = sphi 0, %s234
      %s249 = sphi 0, %s235
      %s257 = sphi 0, %s259
      %s260 = sphi 0, %s257
      %s261 = sphi 0, %s260
      %s277 = sphi 0, %s261
    $region4: #{cross_graph_attention_forward.2} parent=1 // loop_header_branch
      %21 = sbr.rel (%p19) target = $region8
    $region5: #{cross_graph_attention_forward.2} parent=1 // loop_body
      %s23 = ssub.s32 %s18, 1
      %s24 = ssub.s32 %s18, 2
      %s31 = sadd.s32 1, %s26
      %p32 = scmp.ge.s32.totalorder %s31, 1
      %s33 = scalar_select %p32, 0, %s31
      %s34 = sadd.s32 1, %s25
      %s35 = scalar_select %p32, %s34, %s25
      %p36 = scmp.ge.s32.totalorder %s35, 2
      %s37 = scalar_select %p36, 0, %s35
      %s38 = ssub.s32 %s25, %s37
      %s39 = ssub.s32 %s26, %s33
      %s40 = sor.u32 %s38, %s39
      %p41 = scmp.eq.s32.totalorder %s40, 0
      %s43 = sadd.s32 %s42, 1
      %s44 = scalar_select %p41, %s42, %s43
      %p47 = pneg %p41
      %p48 = scmp.eq.s32.totalorder %s18, 1
      %p49 = por %p47, %p48
      %p50 = scmp.ne.s32.totalorder %s42, %s45
      %p51 = scmp.eq.s32.totalorder %s18, 0
      %p52 = por %p50, %p51
      %p53 = scmp.ne.s32.totalorder %s42, %s45
      %p54 = scmp.eq.s32.totalorder %s23, 1
      %p55 = por %p53, %p54
      %p56 = scmp.ne.s32.totalorder %s45, %s46
      %p57 = scmp.eq.s32.totalorder %s23, 0
      %p58 = por %p56, %p57
      %p59 = scmp.ne.s32.totalorder %s45, %s46
      %p60 = scmp.eq.s32.totalorder %s24, 1
      %p61 = por %p59, %p60
      %p63 = scmp.ne.s32.totalorder %s46, %s62
      %p64 = scmp.eq.s32.totalorder %s24, 0
      %p65 = por %p63, %p64
      %s66 = ssub.s32 %s25, %s37
      %p67 = scmp.eq.s32.totalorder %s66, 0
      %s69 = sadd.s32 %s68, 1
      %s70 = scalar_select %p67, %s68, %s69
      %p73 = pneg %p67
      %p74 = scmp.eq.s32.totalorder %s18, 1
      %p75 = por %p73, %p74
      %p76 = scmp.ne.s32.totalorder %s68, %s71
      %p77 = scmp.eq.s32.totalorder %s18, 0
      %p78 = por %p76, %p77
      %p79 = scmp.ne.s32.totalorder %s68, %s71
      %p80 = scmp.eq.s32.totalorder %s23, 1
      %p81 = por %p79, %p80
      %p82 = scmp.ne.s32.totalorder %s71, %s72
      %p83 = scmp.eq.s32.totalorder %s23, 0
      %p84 = por %p82, %p83
      %p85 = scmp.ne.s32.totalorder %s71, %s72
      %p86 = scmp.eq.s32.totalorder %s24, 1
      %p87 = por %p85, %p86
      %p89 = scmp.ne.s32.totalorder %s72, %s88
      %p90 = scmp.eq.s32.totalorder %s24, 0
      %p91 = por %p89, %p90
      %s92 = ssub.s32 %s25, %s37
      %s93 = ssub.s32 %s26, %s33
      %s94 = sor.u32 %s92, %s93
      %p95 = scmp.eq.s32.totalorder %s94, 0
      %s97 = sadd.s32 %s96, 1
      %s98 = scalar_select %p95, %s96, %s97
      %p101 = pneg %p95
      %p102 = scmp.eq.s32.totalorder %s18, 1
      %p103 = por %p101, %p102
      %p104 = scmp.ne.s32.totalorder %s96, %s99
      %p105 = scmp.eq.s32.totalorder %s18, 0
      %p106 = por %p104, %p105
      %p107 = scmp.ne.s32.totalorder %s96, %s99
      %p108 = scmp.eq.s32.totalorder %s23, 1
      %p109 = por %p107, %p108
      %p110 = scmp.ne.s32.totalorder %s99, %s100
      %p111 = scmp.eq.s32.totalorder %s23, 0
      %p112 = por %p110, %p111
      %p113 = scmp.ne.s32.totalorder %s99, %s100
      %p114 = scmp.eq.s32.totalorder %s24, 1
      %p115 = por %p113, %p114
      %p117 = scmp.ne.s32.totalorder %s100, %s116
      %p118 = scmp.eq.s32.totalorder %s24, 0
      %p119 = por %p117, %p118
      %s120 = ssub.s32 %s25, %s37
      %s121 = ssub.s32 %s26, %s33
      %s122 = sor.u32 %s120, %s121
      %p123 = scmp.eq.s32.totalorder %s122, 0
      %s125 = sadd.s32 %s124, 1
      %s126 = scalar_select %p123, %s124, %s125
      %p129 = pneg %p123
      %p130 = scmp.eq.s32.totalorder %s18, 1
      %p131 = por %p129, %p130
      %p132 = scmp.ne.s32.totalorder %s124, %s127
      %p133 = scmp.eq.s32.totalorder %s18, 0
      %p134 = por %p132, %p133
      %p135 = scmp.ne.s32.totalorder %s124, %s127
      %p136 = scmp.eq.s32.totalorder %s23, 1
      %p137 = por %p135, %p136
      %p138 = scmp.ne.s32.totalorder %s127, %s128
      %p139 = scmp.eq.s32.totalorder %s23, 0
      %p140 = por %p138, %p139
      %p141 = scmp.ne.s32.totalorder %s127, %s128
      %p142 = scmp.eq.s32.totalorder %s24, 1
      %p143 = por %p141, %p142
      %p145 = scmp.ne.s32.totalorder %s128, %s144
      %p146 = scmp.eq.s32.totalorder %s24, 0
      %p147 = por %p145, %p146
      %s149 = sadd.s32 %s148, 1
      %p152 = scmp.eq.s32.totalorder %s18, 1
      %p153 = scmp.ne.s32.totalorder %s148, %s150
      %p154 = scmp.eq.s32.totalorder %s18, 0
      %p155 = por %p153, %p154
      %p156 = scmp.ne.s32.totalorder %s148, %s150
      %p157 = scmp.eq.s32.totalorder %s23, 1
      %p158 = por %p156, %p157
      %p159 = scmp.ne.s32.totalorder %s150, %s151
      %p160 = scmp.eq.s32.totalorder %s23, 0
      %p161 = por %p159, %p160
      %p162 = scmp.ne.s32.totalorder %s150, %s151
      %p163 = scmp.eq.s32.totalorder %s24, 1
      %p164 = por %p162, %p163
      %p166 = scmp.ne.s32.totalorder %s151, %s165
      %p167 = scmp.eq.s32.totalorder %s24, 0
      %p168 = por %p166, %p167
      %s170 = sadd.s32 %s169, 1
      %p173 = scmp.eq.s32.totalorder %s18, 1
      %p174 = scmp.ne.s32.totalorder %s169, %s171
      %p175 = scmp.eq.s32.totalorder %s18, 0
      %p176 = por %p174, %p175
      %p177 = scmp.ne.s32.totalorder %s169, %s171
      %p178 = scmp.eq.s32.totalorder %s23, 1
      %p179 = por %p177, %p178
      %p180 = scmp.ne.s32.totalorder %s171, %s172
      %p181 = scmp.eq.s32.totalorder %s23, 0
      %p182 = por %p180, %p181
      %p183 = scmp.ne.s32.totalorder %s171, %s172
      %p184 = scmp.eq.s32.totalorder %s24, 1
      %p185 = por %p183, %p184
      %p187 = scmp.ne.s32.totalorder %s172, %s186
      %p188 = scmp.eq.s32.totalorder %s24, 0
      %p189 = por %p187, %p188
      %s191 = sadd.s32 %s190, 1
      %p194 = scmp.eq.s32.totalorder %s18, 1
      %p195 = scmp.ne.s32.totalorder %s190, %s192
      %p196 = scmp.eq.s32.totalorder %s18, 0
      %p197 = por %p195, %p196
      %p198 = scmp.ne.s32.totalorder %s190, %s192
      %p199 = scmp.eq.s32.totalorder %s23, 1
      %p200 = por %p198, %p199
      %p201 = scmp.ne.s32.totalorder %s192, %s193
      %p202 = scmp.eq.s32.totalorder %s23, 0
      %p203 = por %p201, %p202
      %p204 = scmp.ne.s32.totalorder %s192, %s193
      %p205 = scmp.eq.s32.totalorder %s24, 1
      %p206 = por %p204, %p205
      %p208 = scmp.ne.s32.totalorder %s193, %s207
      %p209 = scmp.eq.s32.totalorder %s24, 0
      %p210 = por %p208, %p209
      %s212 = sadd.s32 %s211, 1
      %p215 = scmp.eq.s32.totalorder %s18, 1
      %p216 = scmp.ne.s32.totalorder %s211, %s213
      %p217 = scmp.eq.s32.totalorder %s18, 0
      %p218 = por %p216, %p217
      %p219 = scmp.ne.s32.totalorder %s211, %s213
      %p220 = scmp.eq.s32.totalorder %s23, 1
      %p221 = por %p219, %p220
      %p222 = scmp.ne.s32.totalorder %s213, %s214
      %p223 = scmp.eq.s32.totalorder %s23, 0
      %p224 = por %p222, %p223
      %p225 = scmp.ne.s32.totalorder %s213, %s214
      %p226 = scmp.eq.s32.totalorder %s24, 1
      %p227 = por %p225, %p226
      %p229 = scmp.ne.s32.totalorder %s214, %s228
      %p230 = scmp.eq.s32.totalorder %s24, 0
      %p231 = por %p229, %p230
      %s233 = sadd.s32 %s232, 1
      %p236 = scmp.eq.s32.totalorder %s18, 1
      %p237 = scmp.ne.s32.totalorder %s232, %s234
      %p238 = scmp.eq.s32.totalorder %s18, 0
      %p239 = por %p237, %p238
      %p240 = scmp.ne.s32.totalorder %s232, %s234
      %p241 = scmp.eq.s32.totalorder %s23, 1
      %p242 = por %p240, %p241
      %p243 = scmp.ne.s32.totalorder %s234, %s235
      %p244 = scmp.eq.s32.totalorder %s23, 0
      %p245 = por %p243, %p244
      %p246 = scmp.ne.s32.totalorder %s234, %s235
      %p247 = scmp.eq.s32.totalorder %s24, 1
      %p248 = por %p246, %p247
      %p250 = scmp.ne.s32.totalorder %s235, %s249
      %p251 = scmp.eq.s32.totalorder %s24, 0
      %p252 = por %p250, %p251
      %s253 = ssub.s32 %s25, %s37
      %s254 = ssub.s32 %s26, %s33
      %s255 = sor.u32 %s253, %s254
      %p256 = scmp.eq.s32.totalorder %s255, 0
      %s258 = sadd.s32 %s257, 1
      %s259 = scalar_select %p256, %s257, %s258
      %p262 = pneg %p256
      %p263 = scmp.eq.s32.totalorder %s18, 1
      %p264 = por %p262, %p263
      %p265 = scmp.ne.s32.totalorder %s257, %s260
      %p266 = scmp.eq.s32.totalorder %s18, 0
      %p267 = por %p265, %p266
      %p268 = scmp.ne.s32.totalorder %s257, %s260
      %p269 = scmp.eq.s32.totalorder %s23, 1
      %p270 = por %p268, %p269
      %p271 = scmp.ne.s32.totalorder %s260, %s261
      %p272 = scmp.eq.s32.totalorder %s23, 0
      %p273 = por %p271, %p272
      %p274 = scmp.ne.s32.totalorder %s260, %s261
      %p275 = scmp.eq.s32.totalorder %s24, 1
      %p276 = por %p274, %p275
      %p278 = scmp.ne.s32.totalorder %s261, %s277
      %p279 = scmp.eq.s32.totalorder %s24, 0
      %p280 = por %p278, %p279
      %p281 = scmp.le.s32.totalorder 1, %s18
      %p282 = scmp.lt.s32.totalorder %s18, 3
      %p283 = pnand %p281, %p282
      %p284 = pneg %p283
      // Predicated region
      $region9: #{cross_graph_attention_forward.2} parent=5 // pred_check
        _
      $region10: #{cross_graph_attention_forward.2} parent=5 // pred_check_branch
        %286 = sbr.rel (%p283) target = $region12
      $region11: #{cross_graph_attention_forward.2} parent=5 // pred_region
        %s287 = ssub.s32 %s18, 1
        // Predicated region
        $region13: #{cross_graph_attention_forward.2} parent=11 // pred_check
          %p288 = pneg %p161
        $region14: #{cross_graph_attention_forward.2} parent=11 // pred_check_branch
          %290 = sbr.rel (%p288) target = $region16
        $region15: #{cross_graph_attention_forward.2} parent=11 // pred_region
          _
        $region16: #{cross_graph_attention_forward.2} parent=11 // pred_fallthru
          _
        // Predicated region
        $region17: #{cross_graph_attention_forward.2} parent=11 // pred_check
          %p291 = pneg %p182
        $region18: #{cross_graph_attention_forward.2} parent=11 // pred_check_branch
          %293 = sbr.rel (%p291) target = $region20
        $region19: #{cross_graph_attention_forward.2} parent=11 // pred_region
          _
        $region20: #{cross_graph_attention_forward.2} parent=11 // pred_fallthru
          _
        // Predicated region
        $region21: #{cross_graph_attention_forward.2} parent=11 // pred_check
          %p294 = pneg %p203
        $region22: #{cross_graph_attention_forward.2} parent=11 // pred_check_branch
          %296 = sbr.rel (%p294) target = $region24
        $region23: #{cross_graph_attention_forward.2} parent=11 // pred_region
          _
        $region24: #{cross_graph_attention_forward.2} parent=11 // pred_fallthru
          _
        // Predicated region
        $region25: #{cross_graph_attention_forward.2} parent=11 // pred_check
          %p297 = pneg %p224
        $region26: #{cross_graph_attention_forward.2} parent=11 // pred_check_branch
          %299 = sbr.rel (%p297) target = $region28
        $region27: #{cross_graph_attention_forward.2} parent=11 // pred_region
          _
        $region28: #{cross_graph_attention_forward.2} parent=11 // pred_fallthru
          _
        // Predicated region
        $region29: #{cross_graph_attention_forward.2} parent=11 // pred_check
          %p300 = pneg %p245
        $region30: #{cross_graph_attention_forward.2} parent=11 // pred_check_branch
          %302 = sbr.rel (%p300) target = $region32
        $region31: #{cross_graph_attention_forward.2} parent=11 // pred_region
          _
        $region32: #{cross_graph_attention_forward.2} parent=11 // pred_fallthru
          _
      $region12: #{cross_graph_attention_forward.2} parent=5 // pred_fallthru
        _
      %p303 = scmp.lt.s32.totalorder %s18, 2
      // Predicated region
      $region33: #{cross_graph_attention_forward.2} parent=5 // pred_check
        %p304 = pneg %p303
      $region34: #{cross_graph_attention_forward.2} parent=5 // pred_check_branch
        %306 = sbr.rel (%p304) target = $region36
      $region35: #{cross_graph_attention_forward.2} parent=5 // pred_region
        // Predicated region
        $region37: #{cross_graph_attention_forward.2} parent=35 // pred_check
          %p307 = pneg %p52
        $region38: #{cross_graph_attention_forward.2} parent=35 // pred_check_branch
          %309 = sbr.rel (%p307) target = $region40
        $region39: #{cross_graph_attention_forward.2} parent=35 // pred_region
          %p310 = scmp.lt.s32.totalorder %s25, 1
          %s311 = scalar_select %p310, %s25, 1
          %p312 = scmp.lt.s32.totalorder %s26, 0
          %s313 = scalar_select %p312, %s26, 0
          %s314 = sadd.s32 %s313, %s311
          %s315 = smul.addr %s314, 8
          %s316 = scalar_lea.vmem %s0, %s315
        $region40: #{cross_graph_attention_forward.2} parent=35 // pred_fallthru
          _
        // Predicated region
        $region41: #{cross_graph_attention_forward.2} parent=35 // pred_check
          %p317 = pneg %p78
        $region42: #{cross_graph_attention_forward.2} parent=35 // pred_check_branch
          %319 = sbr.rel (%p317) target = $region44
        $region43: #{cross_graph_attention_forward.2} parent=35 // pred_region
          %p320 = scmp.lt.s32.totalorder %s25, 1
          %s321 = scalar_select %p320, %s25, 1
          %s322 = smul.addr %s321, 8
          %s323 = scalar_lea.vmem %s1, %s322
        $region44: #{cross_graph_attention_forward.2} parent=35 // pred_fallthru
          _
        // Predicated region
        $region45: #{cross_graph_attention_forward.2} parent=35 // pred_check
          %p324 = pneg %p106
        $region46: #{cross_graph_attention_forward.2} parent=35 // pred_check_branch
          %326 = sbr.rel (%p324) target = $region48
        $region47: #{cross_graph_attention_forward.2} parent=35 // pred_region
          %p327 = scmp.lt.s32.totalorder %s25, 1
          %s328 = scalar_select %p327, %s25, 1
          %p329 = scmp.lt.s32.totalorder %s26, 0
          %s330 = scalar_select %p329, %s26, 0
          %s331 = sadd.s32 %s330, %s328
          %s332 = smul.addr %s331, 8
          %s333 = scalar_lea.vmem %s2, %s332
        $region48: #{cross_graph_attention_forward.2} parent=35 // pred_fallthru
          _
        // Predicated region
        $region49: #{cross_graph_attention_forward.2} parent=35 // pred_check
          %p334 = pneg %p134
        $region50: #{cross_graph_attention_forward.2} parent=35 // pred_check_branch
          %336 = sbr.rel (%p334) target = $region52
        $region51: #{cross_graph_attention_forward.2} parent=35 // pred_region
          %s337 = sand.u32 %s124, 1
          %s338 = scalar_lea.sflag [#allocation3], %s337
          %s339 = sand.u32 %s124, 1
          %s340 = smul.addr %s339, 64
          %s341 = scalar_lea.vmem [#allocation2], %s340
          %s342 = smul.u32 8, %s26
          %s344 = ssub.s32 1024, 1024
          %345 = vsyncadd %s338, %s344
          %s346 = smul.addr %s25, 8
          %s347 = sadd.s32 %s342, %s346
          %s348 = smul.addr %s347, 128
          %s349 = scalar_lea.hbm %s3, %s348
          %s350 = sshll.u32 %s341, 4
          %s351 = int_to_ptr.vmem [resolvable:$true] %s350
          %356 = dma.hbm_to_vmem [thread:$0]  %s349, 1024, %s351, %s338, 128, 128, 8
        $region52: #{cross_graph_attention_forward.2} parent=35 // pred_fallthru
          _
      $region36: #{cross_graph_attention_forward.2} parent=5 // pred_fallthru
        _
      %p357 = scmp.le.s32.totalorder 1, %s18
      %p358 = scmp.lt.s32.totalorder %s18, 3
      %p359 = pnand %p357, %p358
      %p360 = pneg %p359
      // Predicated region
      $region53: #{cross_graph_attention_forward.2} parent=5 // pred_check
        _
      $region54: #{cross_graph_attention_forward.2} parent=5 // pred_check_branch
        %362 = sbr.rel (%p359) target = $region56
      $region55: #{cross_graph_attention_forward.2} parent=5 // pred_region
        %s363 = ssub.s32 %s18, 1
        %s364 = sand.u32 %s127, 1
        %s365 = scalar_lea.sflag [#allocation3], %s364
        %s366 = sand.u32 %s127, 1
        %s367 = smul.addr %s366, 64
        %s368 = scalar_lea.vmem [#allocation2], %s367
        // Predicated region
        $region57: #{cross_graph_attention_forward.2} parent=55 // pred_check
          %p369 = pneg %p140
        $region58: #{cross_graph_attention_forward.2} parent=55 // pred_check_branch
          %371 = sbr.rel (%p369) target = $region60
        $region59: #{cross_graph_attention_forward.2} parent=55 // pred_region
          %372 = dma.done %s365, 1024
        $region60: #{cross_graph_attention_forward.2} parent=55 // pred_fallthru
          _
        %p373 = scmp.lt.s32.totalorder %s27, 1
        %s374 = scalar_select %p373, %s27, 1
        %p375 = scmp.lt.s32.totalorder %s28, 0
        %s376 = scalar_select %p375, %s28, 0
        %s377 = sadd.s32 %s376, %s374
        %s378 = smul.addr %s377, 8
        %s379 = scalar_lea.vmem %s0, %s378
        %p380 = pneg %p58
        %p381 = pneg %p55
        %p382 = scmp.lt.s32.totalorder %s27, 1
        %s383 = scalar_select %p382, %s27, 1
        %s384 = smul.addr %s383, 8
        %s385 = scalar_lea.vmem %s1, %s384
        %p386 = pneg %p84
        %p387 = pneg %p81
        %p388 = scmp.lt.s32.totalorder %s27, 1
        %s389 = scalar_select %p388, %s27, 1
        %p390 = scmp.lt.s32.totalorder %s28, 0
        %s391 = scalar_select %p390, %s28, 0
        %s392 = sadd.s32 %s391, %s389
        %s393 = smul.addr %s392, 8
        %s394 = scalar_lea.vmem %s2, %s393
        %p395 = pneg %p112
        %p396 = pneg %p109
        %s397 = sand.u32 %s127, 1
        %s398 = scalar_lea.sflag [#allocation3], %s397
        %s399 = sand.u32 %s127, 1
        %s400 = smul.addr %s399, 64
        %s401 = scalar_lea.vmem [#allocation2], %s400
        %p402 = pneg %p140
        %p403 = pneg %p137
        %p404 = pneg %p161
        %p405 = pneg %p158
        %p406 = pneg %p182
        %p407 = pneg %p179
        %p408 = pneg %p203
        %p409 = pneg %p200
        %p410 = pneg %p224
        %p411 = pneg %p221
        %p412 = pneg %p245
        %p413 = pneg %p242
        %p414 = pneg %p273
        %p415 = pneg %p270
        %p416 = scmp.lt.s32.totalorder %s27, 1
        %s417 = scalar_select %p416, %s27, 1
        %p418 = scmp.lt.s32.totalorder %s28, 0
        %s419 = scalar_select %p418, %s28, 0
        %s420 = sadd.s32 %s419, %s417
        %s421 = smul.addr %s420, 8
        %s422 = scalar_lea.vmem %s9, %s421
        %p423 = scmp.lt.s32.totalorder %s27, 1
        %s424 = scalar_select %p423, %s27, 1
        %p425 = scmp.lt.s32.totalorder %s28, 0
        %s426 = scalar_select %p425, %s28, 0
        %s427 = sadd.s32 %s426, %s424
        %s428 = smul.addr %s427, 8
        %s429 = scalar_lea.vmem %s0, %s428
        %p430 = scmp.lt.s32.totalorder %s27, 1
        %s431 = scalar_select %p430, %s27, 1
        %s432 = smul.addr %s431, 8
        %s433 = scalar_lea.vmem %s1, %s432
        %p434 = scmp.lt.s32.totalorder %s27, 1
        %s435 = scalar_select %p434, %s27, 1
        %p436 = scmp.lt.s32.totalorder %s28, 0
        %s437 = scalar_select %p436, %s28, 0
        %s438 = sadd.s32 %s437, %s435
        %s439 = smul.addr %s438, 8
        %s440 = scalar_lea.vmem %s2, %s439
        %s441 = smul.u32 8, %s28
        %p442 = scmp.lt.s32.totalorder %s27, 1
        %s443 = scalar_select %p442, %s27, 1
        %p444 = scmp.lt.s32.totalorder %s28, 0
        %s445 = scalar_select %p444, %s28, 0
        %s446 = sadd.s32 %s445, %s443
        %s447 = smul.addr %s446, 8
        %s448 = scalar_lea.vmem %s9, %s447
        %v449 = vld [vmem:[%s429] sm:$0xff]
        %v450 = vld [vmem:[%s4] sm:$0xff]
        %v451 = vld [vmem:[%s4 + $0x8] sm:$0xff]
        %v452 = vld [vmem:[%s4 + $0x10] sm:$0xff]
        %v453 = vld [vmem:[%s4 + $0x18] sm:$0xff]
        %v454 = vld [vmem:[%s440] sm:$0xff]
        %v455 = vld [vmem:[%s5] sm:$0xff]
        %v456 = vld [vmem:[%s5 + $0x8] sm:$0xff]
        %vm457 = vcmask 130048
        %v459 = vsel %vm457, %v454, 0
        %461 = vmatprep.subr.mxu0 0.0
        %462 = vmatpush1.msra.mxu0 0.0
        %463 = vmatprep.subr.mxu0 0.0
        %464 = vmatpush1.msra.mxu0 0.0
        %465 = vmatprep.subr.mxu0 0.0
        %466 = vmatpush1.msra.mxu0 0.0
        %467 = vmatprep.subr.mxu0 0.0
        %468 = vmatpush1.msra.mxu0 0.0
        %469 = vmatprep.subr.mxu0 0.0
        %470 = vmatpush1.msra.mxu0 0.0
        %471 = vmatprep.subr.mxu0 0.0
        %472 = vmatpush1.msra.mxu0 0.0
        %473 = vmatprep.subr.mxu0 0.0
        %474 = vmatpush1.msra.mxu0 0.0
        %475 = vmatprep.subr.mxu0 0.0
        %476 = vmatpush1.msra.mxu0 0.0
        %477 = vmatprep.subr.mxu0 0.0
        %478 = vmatpush1.msra.mxu0 0.0
        %479 = vmatprep.subr.mxu0 0.0
        %480 = vmatpush1.msra.mxu0 0.0
        %481 = vmatprep.subr.mxu0 0.0
        %482 = vmatpush1.msra.mxu0 0.0
        %483 = vmatprep.subr.mxu0 0.0
        %484 = vmatpush1.msra.mxu0 0.0
        %485 = vmatprep.subr.mxu0 0.0
        %486 = vmatpush1.msra.mxu0 0.0
        %487 = vmatprep.subr.mxu0 0.0
        %488 = vmatpush1.msra.mxu0 0.0
        %489 = vmatprep.subr.mxu0 0.0
        %490 = vmatpush1.msra.mxu0 %v456
        %491 = vmatprep.subr.mxu0 0.0
        %492 = vmatpush1.msra.mxu0 %v455
        %493 = vmatprep.subr.mxu0 0.0
        %494 = vmatpush2.msra.mxu0 0.0
        %495 = vmatprep.subr.mxu0 0.0
        %496 = vmatpush2.msra.mxu0 0.0
        %497 = vmatprep.subr.mxu0 0.0
        %498 = vmatpush2.msra.mxu0 0.0
        %499 = vmatprep.subr.mxu0 0.0
        %500 = vmatpush2.msra.mxu0 0.0
        %501 = vmatprep.subr.mxu0 0.0
        %502 = vmatpush2.msra.mxu0 0.0
        %503 = vmatprep.subr.mxu0 0.0
        %504 = vmatpush2.msra.mxu0 0.0
        %505 = vmatprep.subr.mxu0 0.0
        %506 = vmatpush2.msra.mxu0 0.0
        %507 = vmatprep.subr.mxu0 0.0
        %508 = vmatpush2.msra.mxu0 0.0
        %509 = vmatprep.subr.mxu0 0.0
        %510 = vmatpush2.msra.mxu0 0.0
        %511 = vmatprep.subr.mxu0 0.0
        %512 = vmatpush2.msra.mxu0 0.0
        %513 = vmatprep.subr.mxu0 0.0
        %514 = vmatpush2.msra.mxu0 0.0
        %515 = vmatprep.subr.mxu0 0.0
        %516 = vmatpush2.msra.mxu0 0.0
        %517 = vmatprep.subr.mxu0 0.0
        %518 = vmatpush2.msra.mxu0 0.0
        %519 = vmatprep.subr.mxu0 0.0
        %520 = vmatpush2.msra.mxu0 0.0
        %521 = vmatprep.subr.mxu0 0.0
        %522 = vmatpush2.msra.mxu0 0.0
        %523 = vmatprep.subr.mxu0 0.0
        %524 = vmatpush2.msra.mxu0 0.0
        %525 = vmatprep.mubr.f32.mxu0 0.0
        %526 = vmatmul.mubr.f32.gmra.mxu0 %v459
        %v527 = vpop.f32.mrf.mxu0
        %v528 = vadd.f32 0.0, %v527
        %v529 = vpop.f32.mrf.mxu0
        %530 = vdwg.mxu0
        %vm531 = vcmask 261120
        %v533 = vsel %vm531, %v449, 0
        %535 = vmatprep.subr.mxu0 0.0
        %536 = vmatpush1.msra.mxu0 0.0
        %537 = vmatprep.subr.mxu0 0.0
        %538 = vmatpush1.msra.mxu0 0.0
        %539 = vmatprep.subr.mxu0 0.0
        %540 = vmatpush1.msra.mxu0 0.0
        %541 = vmatprep.subr.mxu0 0.0
        %542 = vmatpush1.msra.mxu0 0.0
        %543 = vmatprep.subr.mxu0 0.0
        %544 = vmatpush1.msra.mxu0 0.0
        %545 = vmatprep.subr.mxu0 0.0
        %546 = vmatpush1.msra.mxu0 0.0
        %547 = vmatprep.subr.mxu0 0.0
        %548 = vmatpush1.msra.mxu0 0.0
        %549 = vmatprep.subr.mxu0 0.0
        %550 = vmatpush1.msra.mxu0 0.0
        %551 = vmatprep.subr.mxu0 0.0
        %552 = vmatpush1.msra.mxu0 0.0
        %553 = vmatprep.subr.mxu0 0.0
        %554 = vmatpush1.msra.mxu0 0.0
        %555 = vmatprep.subr.mxu0 0.0
        %556 = vmatpush1.msra.mxu0 0.0
        %557 = vmatprep.subr.mxu0 0.0
        %558 = vmatpush1.msra.mxu0 0.0
        %559 = vmatprep.subr.mxu0 0.0
        %560 = vmatpush1.msra.mxu0 %v453
        %561 = vmatprep.subr.mxu0 0.0
        %562 = vmatpush1.msra.mxu0 %v452
        %563 = vmatprep.subr.mxu0 0.0
        %564 = vmatpush1.msra.mxu0 %v451
        %565 = vmatprep.subr.mxu0 0.0
        %566 = vmatpush1.msra.mxu0 %v450
        %567 = vmatprep.subr.mxu0 0.0
        %568 = vmatpush2.msra.mxu0 0.0
        %569 = vmatprep.subr.mxu0 0.0
        %570 = vmatpush2.msra.mxu0 0.0
        %571 = vmatprep.subr.mxu0 0.0
        %572 = vmatpush2.msra.mxu0 0.0
        %573 = vmatprep.subr.mxu0 0.0
        %574 = vmatpush2.msra.mxu0 0.0
        %575 = vmatprep.subr.mxu0 0.0
        %576 = vmatpush2.msra.mxu0 0.0
        %577 = vmatprep.subr.mxu0 0.0
        %578 = vmatpush2.msra.mxu0 0.0
        %579 = vmatprep.subr.mxu0 0.0
        %580 = vmatpush2.msra.mxu0 0.0
        %581 = vmatprep.subr.mxu0 0.0
        %582 = vmatpush2.msra.mxu0 0.0
        %583 = vmatprep.subr.mxu0 0.0
        %584 = vmatpush2.msra.mxu0 0.0
        %585 = vmatprep.subr.mxu0 0.0
        %586 = vmatpush2.msra.mxu0 0.0
        %587 = vmatprep.subr.mxu0 0.0
        %588 = vmatpush2.msra.mxu0 0.0
        %589 = vmatprep.subr.mxu0 0.0
        %590 = vmatpush2.msra.mxu0 0.0
        %591 = vmatprep.subr.mxu0 0.0
        %592 = vmatpush2.msra.mxu0 0.0
        %593 = vmatprep.subr.mxu0 0.0
        %594 = vmatpush2.msra.mxu0 0.0
        %595 = vmatprep.subr.mxu0 0.0
        %596 = vmatpush2.msra.mxu0 0.0
        %597 = vmatprep.subr.mxu0 0.0
        %598 = vmatpush2.msra.mxu0 0.0
        %599 = vmatprep.mubr.f32.mxu0 0.0
        %600 = vmatmul.mubr.f32.gmra.mxu0 %v533
        %v601 = vpop.f32.mrf.mxu0
        %v602 = vadd.f32 %v528, %v601
        %v603 = vpop.f32.mrf.mxu0
        %604 = vdwg.mxu0
        %v605 = vld [vmem:[%s8] sm:$0x1]
        %v607 = vlaneseq
        %v608 = vshrl.u32 %v607, 7
        %v609 = vsub.s32 0, %v608
        %v610 = vrot.slane %v605, %v609
        %v612 = vadd.f32 %v602, %v610
        %v613 = vld [vmem:[%s433] sm:$0xff]
        %v614 = vld [vmem:[%s6] sm:$0xff]
        %v615 = vld [vmem:[%s6 + $0x8] sm:$0xff]
        %v616 = vld [vmem:[%s6 + $0x10] sm:$0xff]
        %v617 = vld [vmem:[%s6 + $0x18] sm:$0xff]
        %v619 = vsel %vm531, %v613, 0
        %621 = vmatprep.subr.mxu0 0.0
        %622 = vmatpush1.msra.mxu0 0.0
        %623 = vmatprep.subr.mxu0 0.0
        %624 = vmatpush1.msra.mxu0 0.0
        %625 = vmatprep.subr.mxu0 0.0
        %626 = vmatpush1.msra.mxu0 0.0
        %627 = vmatprep.subr.mxu0 0.0
        %628 = vmatpush1.msra.mxu0 0.0
        %629 = vmatprep.subr.mxu0 0.0
        %630 = vmatpush1.msra.mxu0 0.0
        %631 = vmatprep.subr.mxu0 0.0
        %632 = vmatpush1.msra.mxu0 0.0
        %633 = vmatprep.subr.mxu0 0.0
        %634 = vmatpush1.msra.mxu0 0.0
        %635 = vmatprep.subr.mxu0 0.0
        %636 = vmatpush1.msra.mxu0 0.0
        %637 = vmatprep.subr.mxu0 0.0
        %638 = vmatpush1.msra.mxu0 0.0
        %639 = vmatprep.subr.mxu0 0.0
        %640 = vmatpush1.msra.mxu0 0.0
        %641 = vmatprep.subr.mxu0 0.0
        %642 = vmatpush1.msra.mxu0 0.0
        %643 = vmatprep.subr.mxu0 0.0
        %644 = vmatpush1.msra.mxu0 0.0
        %645 = vmatprep.subr.mxu0 0.0
        %646 = vmatpush1.msra.mxu0 %v617
        %647 = vmatprep.subr.mxu0 0.0
        %648 = vmatpush1.msra.mxu0 %v616
        %649 = vmatprep.subr.mxu0 0.0
        %650 = vmatpush1.msra.mxu0 %v615
        %651 = vmatprep.subr.mxu0 0.0
        %652 = vmatpush1.msra.mxu0 %v614
        %653 = vmatprep.subr.mxu0 0.0
        %654 = vmatpush2.msra.mxu0 0.0
        %655 = vmatprep.subr.mxu0 0.0
        %656 = vmatpush2.msra.mxu0 0.0
        %657 = vmatprep.subr.mxu0 0.0
        %658 = vmatpush2.msra.mxu0 0.0
        %659 = vmatprep.subr.mxu0 0.0
        %660 = vmatpush2.msra.mxu0 0.0
        %661 = vmatprep.subr.mxu0 0.0
        %662 = vmatpush2.msra.mxu0 0.0
        %663 = vmatprep.subr.mxu0 0.0
        %664 = vmatpush2.msra.mxu0 0.0
        %665 = vmatprep.subr.mxu0 0.0
        %666 = vmatpush2.msra.mxu0 0.0
        %667 = vmatprep.subr.mxu0 0.0
        %668 = vmatpush2.msra.mxu0 0.0
        %669 = vmatprep.subr.mxu0 0.0
        %670 = vmatpush2.msra.mxu0 0.0
        %671 = vmatprep.subr.mxu0 0.0
        %672 = vmatpush2.msra.mxu0 0.0
        %673 = vmatprep.subr.mxu0 0.0
        %674 = vmatpush2.msra.mxu0 0.0
        %675 = vmatprep.subr.mxu0 0.0
        %676 = vmatpush2.msra.mxu0 0.0
        %677 = vmatprep.subr.mxu0 0.0
        %678 = vmatpush2.msra.mxu0 0.0
        %679 = vmatprep.subr.mxu0 0.0
        %680 = vmatpush2.msra.mxu0 0.0
        %681 = vmatprep.subr.mxu0 0.0
        %682 = vmatpush2.msra.mxu0 0.0
        %683 = vmatprep.subr.mxu0 0.0
        %684 = vmatpush2.msra.mxu0 0.0
        %685 = vmatprep.mubr.f32.mxu0 0.0
        %686 = vmatmul.mubr.f32.gmra.mxu0 %v619
        %v687 = vpop.f32.mrf.mxu0
        %v688 = vadd.f32 0.0, %v687
        %v689 = vpop.f32.mrf.mxu0
        %690 = vdwg.mxu0
        %v691 = vld [vmem:[%s368] sm:$0xff]
        %v692 = vld [vmem:[%s368 + $0x8] sm:$0xff]
        %v693 = vld [vmem:[%s368 + $0x10] sm:$0xff]
        %v694 = vld [vmem:[%s368 + $0x18] sm:$0xff]
        %v695 = vld [vmem:[%s368 + $0x20] sm:$0xff]
        %v696 = vld [vmem:[%s368 + $0x28] sm:$0xff]
        %v697 = vld [vmem:[%s368 + $0x30] sm:$0xff]
        %v698 = vld [vmem:[%s368 + $0x38] sm:$0xff]
        %v699 = vld [vmem:[%s7] sm:$0xff]
        %v700 = vld [vmem:[%s7 + $0x8] sm:$0xff]
        %v702 = vsel %vm457, %v691, 0
        %v705 = vsel %vm457, %v692, 0
        %v708 = vsel %vm457, %v693, 0
        %v711 = vsel %vm457, %v694, 0
        %v714 = vsel %vm457, %v695, 0
        %v717 = vsel %vm457, %v696, 0
        %v720 = vsel %vm457, %v697, 0
        %v723 = vsel %vm457, %v698, 0
        %725 = vmatprep.subr.mxu0 0.0
        %726 = vmatpush1.msra.mxu0 0.0
        %727 = vmatprep.subr.mxu0 0.0
        %728 = vmatpush1.msra.mxu0 0.0
        %729 = vmatprep.subr.mxu0 0.0
        %730 = vmatpush1.msra.mxu0 0.0
        %731 = vmatprep.subr.mxu0 0.0
        %732 = vmatpush1.msra.mxu0 0.0
        %733 = vmatprep.subr.mxu0 0.0
        %734 = vmatpush1.msra.mxu0 0.0
        %735 = vmatprep.subr.mxu0 0.0
        %736 = vmatpush1.msra.mxu0 0.0
        %737 = vmatprep.subr.mxu0 0.0
        %738 = vmatpush1.msra.mxu0 0.0
        %739 = vmatprep.subr.mxu0 0.0
        %740 = vmatpush1.msra.mxu0 0.0
        %741 = vmatprep.subr.mxu0 0.0
        %742 = vmatpush1.msra.mxu0 0.0
        %743 = vmatprep.subr.mxu0 0.0
        %744 = vmatpush1.msra.mxu0 0.0
        %745 = vmatprep.subr.mxu0 0.0
        %746 = vmatpush1.msra.mxu0 0.0
        %747 = vmatprep.subr.mxu0 0.0
        %748 = vmatpush1.msra.mxu0 0.0
        %749 = vmatprep.subr.mxu0 0.0
        %750 = vmatpush1.msra.mxu0 0.0
        %751 = vmatprep.subr.mxu0 0.0
        %752 = vmatpush1.msra.mxu0 0.0
        %753 = vmatprep.subr.mxu0 0.0
        %754 = vmatpush1.msra.mxu0 %v700
        %755 = vmatprep.subr.mxu0 0.0
        %756 = vmatpush1.msra.mxu0 %v699
        %757 = vmatprep.subr.mxu0 0.0
        %758 = vmatpush2.msra.mxu0 0.0
        %759 = vmatprep.subr.mxu0 0.0
        %760 = vmatpush2.msra.mxu0 0.0
        %761 = vmatprep.subr.mxu0 0.0
        %762 = vmatpush2.msra.mxu0 0.0
        %763 = vmatprep.subr.mxu0 0.0
        %764 = vmatpush2.msra.mxu0 0.0
        %765 = vmatprep.subr.mxu0 0.0
        %766 = vmatpush2.msra.mxu0 0.0
        %767 = vmatprep.subr.mxu0 0.0
        %768 = vmatpush2.msra.mxu0 0.0
        %769 = vmatprep.subr.mxu0 0.0
        %770 = vmatpush2.msra.mxu0 0.0
        %771 = vmatprep.subr.mxu0 0.0
        %772 = vmatpush2.msra.mxu0 0.0
        %773 = vmatprep.subr.mxu0 0.0
        %774 = vmatpush2.msra.mxu0 0.0
        %775 = vmatprep.subr.mxu0 0.0
        %776 = vmatpush2.msra.mxu0 0.0
        %777 = vmatprep.subr.mxu0 0.0
        %778 = vmatpush2.msra.mxu0 0.0
        %779 = vmatprep.subr.mxu0 0.0
        %780 = vmatpush2.msra.mxu0 0.0
        %781 = vmatprep.subr.mxu0 0.0
        %782 = vmatpush2.msra.mxu0 0.0
        %783 = vmatprep.subr.mxu0 0.0
        %784 = vmatpush2.msra.mxu0 0.0
        %785 = vmatprep.subr.mxu0 0.0
        %786 = vmatpush2.msra.mxu0 0.0
        %787 = vmatprep.subr.mxu0 0.0
        %788 = vmatpush2.msra.mxu0 0.0
        %789 = vmatprep.mubr.f32.mxu0 0.0
        %790 = vmatmul.mubr.f32.gmra.mxu0 %v702
        %v791 = vpop.f32.mrf.mxu0
        %v792 = vadd.f32 0.0, %v791
        %v793 = vpop.f32.mrf.mxu0
        %794 = vmatprep.mubr.f32.mxu0 0.0
        %795 = vmatmul.mubr.f32.gmra.mxu0 %v705
        %v796 = vpop.f32.mrf.mxu0
        %v797 = vadd.f32 0.0, %v796
        %v798 = vpop.f32.mrf.mxu0
        %799 = vmatprep.mubr.f32.mxu0 0.0
        %800 = vmatmul.mubr.f32.gmra.mxu0 %v708
        %v801 = vpop.f32.mrf.mxu0
        %v802 = vadd.f32 0.0, %v801
        %v803 = vpop.f32.mrf.mxu0
        %804 = vmatprep.mubr.f32.mxu0 0.0
        %805 = vmatmul.mubr.f32.gmra.mxu0 %v711
        %v806 = vpop.f32.mrf.mxu0
        %v807 = vadd.f32 0.0, %v806
        %v808 = vpop.f32.mrf.mxu0
        %809 = vmatprep.mubr.f32.mxu0 0.0
        %810 = vmatmul.mubr.f32.gmra.mxu0 %v714
        %v811 = vpop.f32.mrf.mxu0
        %v812 = vadd.f32 0.0, %v811
        %v813 = vpop.f32.mrf.mxu0
        %814 = vmatprep.mubr.f32.mxu0 0.0
        %815 = vmatmul.mubr.f32.gmra.mxu0 %v717
        %v816 = vpop.f32.mrf.mxu0
        %v817 = vadd.f32 0.0, %v816
        %v818 = vpop.f32.mrf.mxu0
        %819 = vmatprep.mubr.f32.mxu0 0.0
        %820 = vmatmul.mubr.f32.gmra.mxu0 %v720
        %v821 = vpop.f32.mrf.mxu0
        %v822 = vadd.f32 0.0, %v821
        %v823 = vpop.f32.mrf.mxu0
        %824 = vmatprep.mubr.f32.mxu0 0.0
        %825 = vmatmul.mubr.f32.gmra.mxu0 %v723
        %v826 = vpop.f32.mrf.mxu0
        %v827 = vadd.f32 0.0, %v826
        %v828 = vpop.f32.mrf.mxu0
        %829 = vdwg.mxu0
        %v831 = vcombine.high %v612, %v612
        %v833 = vunpack.c.l.s4 1966171168
        %v834 = vunpack.c.0.s8 %v833
        %v835 = vlaneseq
        %v836 = vshrl.u32 %v835, 7
        %v837 = vsub.s32 %v834, %v836
        %v838 = vrot.slane %v612, %v837
        %v840 = vunpack.c.l.s4 1966171168
        %v841 = vunpack.c.0.s8 %v840
        %v842 = vlaneseq
        %v843 = vshrl.u32 %v842, 7
        %v844 = vsub.s32 %v841, %v843
        %v845 = vrot.slane %v831, %v844
        %v846 = vcombine.high %v838, %v838
        %v847 = vcombine.high %v845, %v845
        %v849 = vunpack.c.l.s4 1966171168
        %v850 = vunpack.c.0.s8 %v849
        %v851 = vlaneseq
        %v852 = vshrl.u32 %v851, 7
        %v853 = vsub.s32 %v850, %v852
        %v854 = vrot.slane %v838, %v853
        %v856 = vunpack.c.l.s4 1966171168
        %v857 = vunpack.c.0.s8 %v856
        %v858 = vlaneseq
        %v859 = vshrl.u32 %v858, 7
        %v860 = vsub.s32 %v857, %v859
        %v861 = vrot.slane %v845, %v860
        %v863 = vunpack.c.l.s4 1966171168
        %v864 = vunpack.c.0.s8 %v863
        %v865 = vlaneseq
        %v866 = vshrl.u32 %v865, 7
        %v867 = vsub.s32 %v864, %v866
        %v868 = vrot.slane %v846, %v867
        %v870 = vunpack.c.l.s4 1966171168
        %v871 = vunpack.c.0.s8 %v870
        %v872 = vlaneseq
        %v873 = vshrl.u32 %v872, 7
        %v874 = vsub.s32 %v871, %v873
        %v875 = vrot.slane %v847, %v874
        %v876 = vcombine.high %v854, %v854
        %v877 = vcombine.high %v861, %v861
        %v878 = vcombine.high %v868, %v868
        %v879 = vcombine.high %v875, %v875
        %v880 = vlaneseq
        %v881 = vshrl.u32 %v880, 7
        %v882 = vsub.s32 0, %v881
        %v883 = vrot.slane %v854, %v882
        %v884 = vlaneseq
        %v885 = vshrl.u32 %v884, 7
        %v886 = vsub.s32 0, %v885
        %v887 = vrot.slane %v868, %v886
        %v888 = vlaneseq
        %v889 = vshrl.u32 %v888, 7
        %v890 = vsub.s32 0, %v889
        %v891 = vrot.slane %v876, %v890
        %v892 = vlaneseq
        %v893 = vshrl.u32 %v892, 7
        %v894 = vsub.s32 0, %v893
        %v895 = vrot.slane %v878, %v894
        %v896 = vlaneseq
        %v897 = vshrl.u32 %v896, 7
        %v898 = vsub.s32 0, %v897
        %v899 = vrot.slane %v861, %v898
        %v900 = vlaneseq
        %v901 = vshrl.u32 %v900, 7
        %v902 = vsub.s32 0, %v901
        %v903 = vrot.slane %v875, %v902
        %v904 = vlaneseq
        %v905 = vshrl.u32 %v904, 7
        %v906 = vsub.s32 0, %v905
        %v907 = vrot.slane %v877, %v906
        %v908 = vlaneseq
        %v909 = vshrl.u32 %v908, 7
        %v910 = vsub.s32 0, %v909
        %v911 = vrot.slane %v879, %v910
        %v920 = vadd.f32 %v792, %v883
        %v921 = vadd.f32 %v797, %v887
        %v922 = vadd.f32 %v802, %v891
        %v923 = vadd.f32 %v807, %v895
        %v924 = vadd.f32 %v812, %v899
        %v925 = vadd.f32 %v817, %v903
        %v926 = vadd.f32 %v822, %v907
        %v927 = vadd.f32 %v827, %v911
        %v928 = vadd.f32 %v920, %v688
        %v929 = vadd.f32 %v921, %v688
        %v930 = vadd.f32 %v922, %v688
        %v931 = vadd.f32 %v923, %v688
        %v932 = vadd.f32 %v924, %v688
        %v933 = vadd.f32 %v925, %v688
        %v934 = vadd.f32 %v926, %v688
        %v935 = vadd.f32 %v927, %v688
        %v936 = vcombine.low %v928, %v930
        %v937 = vcombine.high %v928, %v930
        %v939 = vunpack.c.l.s4 1983009808
        %v940 = vunpack.c.0.s8 %v939
        %v941 = vlaneseq
        %v942 = vshrl.u32 %v941, 7
        %v943 = vsub.s32 %v940, %v942
        %v944 = vrot.slane %v936, %v943
        %v946 = vunpack.c.l.s4 1983009808
        %v947 = vunpack.c.0.s8 %v946
        %v948 = vlaneseq
        %v949 = vshrl.u32 %v948, 7
        %v950 = vsub.s32 %v947, %v949
        %v951 = vrot.slane %v937, %v950
        %v952 = vcombine.low %v929, %v931
        %v953 = vcombine.high %v929, %v931
        %v955 = vunpack.c.l.s4 1983009808
        %v956 = vunpack.c.0.s8 %v955
        %v957 = vlaneseq
        %v958 = vshrl.u32 %v957, 7
        %v959 = vsub.s32 %v956, %v958
        %v960 = vrot.slane %v952, %v959
        %v962 = vunpack.c.l.s4 1983009808
        %v963 = vunpack.c.0.s8 %v962
        %v964 = vlaneseq
        %v965 = vshrl.u32 %v964, 7
        %v966 = vsub.s32 %v963, %v965
        %v967 = vrot.slane %v953, %v966
        %v968 = vcombine.low %v932, %v934
        %v969 = vcombine.high %v932, %v934
        %v971 = vunpack.c.l.s4 1983009808
        %v972 = vunpack.c.0.s8 %v971
        %v973 = vlaneseq
        %v974 = vshrl.u32 %v973, 7
        %v975 = vsub.s32 %v972, %v974
        %v976 = vrot.slane %v968, %v975
        %v978 = vunpack.c.l.s4 1983009808
        %v979 = vunpack.c.0.s8 %v978
        %v980 = vlaneseq
        %v981 = vshrl.u32 %v980, 7
        %v982 = vsub.s32 %v979, %v981
        %v983 = vrot.slane %v969, %v982
        %v984 = vcombine.low %v933, %v935
        %v985 = vcombine.high %v933, %v935
        %v987 = vunpack.c.l.s4 1983009808
        %v988 = vunpack.c.0.s8 %v987
        %v989 = vlaneseq
        %v990 = vshrl.u32 %v989, 7
        %v991 = vsub.s32 %v988, %v990
        %v992 = vrot.slane %v984, %v991
        %v994 = vunpack.c.l.s4 1983009808
        %v995 = vunpack.c.0.s8 %v994
        %v996 = vlaneseq
        %v997 = vshrl.u32 %v996, 7
        %v998 = vsub.s32 %v995, %v997
        %v999 = vrot.slane %v985, %v998
        %v1000 = vcombine.low %v944, %v960
        %v1001 = vcombine.high %v944, %v960
        %v1003 = vunpack.c.l.s4 1934713408
        %v1004 = vunpack.c.0.s8 %v1003
        %v1005 = vlaneseq
        %v1006 = vshrl.u32 %v1005, 7
        %v1007 = vsub.s32 %v1004, %v1006
        %v1008 = vrot.slane %v1000, %v1007
        %v1010 = vunpack.c.l.s4 1934713408
        %v1011 = vunpack.c.0.s8 %v1010
        %v1012 = vlaneseq
        %v1013 = vshrl.u32 %v1012, 7
        %v1014 = vsub.s32 %v1011, %v1013
        %v1015 = vrot.slane %v1001, %v1014
        %v1016 = vcombine.low %v951, %v967
        %v1017 = vcombine.high %v951, %v967
        %v1019 = vunpack.c.l.s4 1934713408
        %v1020 = vunpack.c.0.s8 %v1019
        %v1021 = vlaneseq
        %v1022 = vshrl.u32 %v1021, 7
        %v1023 = vsub.s32 %v1020, %v1022
        %v1024 = vrot.slane %v1016, %v1023
        %v1026 = vunpack.c.l.s4 1934713408
        %v1027 = vunpack.c.0.s8 %v1026
        %v1028 = vlaneseq
        %v1029 = vshrl.u32 %v1028, 7
        %v1030 = vsub.s32 %v1027, %v1029
        %v1031 = vrot.slane %v1017, %v1030
        %v1032 = vcombine.low %v976, %v992
        %v1033 = vcombine.high %v976, %v992
        %v1035 = vunpack.c.l.s4 1934713408
        %v1036 = vunpack.c.0.s8 %v1035
        %v1037 = vlaneseq
        %v1038 = vshrl.u32 %v1037, 7
        %v1039 = vsub.s32 %v1036, %v1038
        %v1040 = vrot.slane %v1032, %v1039
        %v1042 = vunpack.c.l.s4 1934713408
        %v1043 = vunpack.c.0.s8 %v1042
        %v1044 = vlaneseq
        %v1045 = vshrl.u32 %v1044, 7
        %v1046 = vsub.s32 %v1043, %v1045
        %v1047 = vrot.slane %v1033, %v1046
        %v1048 = vcombine.low %v983, %v999
        %v1049 = vcombine.high %v983, %v999
        %v1051 = vunpack.c.l.s4 1934713408
        %v1052 = vunpack.c.0.s8 %v1051
        %v1053 = vlaneseq
        %v1054 = vshrl.u32 %v1053, 7
        %v1055 = vsub.s32 %v1052, %v1054
        %v1056 = vrot.slane %v1048, %v1055
        %v1058 = vunpack.c.l.s4 1934713408
        %v1059 = vunpack.c.0.s8 %v1058
        %v1060 = vlaneseq
        %v1061 = vshrl.u32 %v1060, 7
        %v1062 = vsub.s32 %v1059, %v1061
        %v1063 = vrot.slane %v1049, %v1062
        %v1064 = vcombine.low %v1008, %v1040
        %v1065 = vcombine.high %v1008, %v1040
        %v1066 = vcombine.low %v1015, %v1047
        %v1067 = vcombine.high %v1015, %v1047
        %v1068 = vcombine.low %v1024, %v1056
        %v1069 = vcombine.high %v1024, %v1056
        %v1070 = vcombine.low %v1031, %v1063
        %v1071 = vcombine.high %v1031, %v1063
        %1073 = vrot.lane.b32.xlu0 %v1065, 16
        %v1074 = vpop.permute.xlu0 %1073
        %1077 = vrot.lane.b32.xlu0 %v1066, 32
        %v1078 = vpop.permute.xlu0 %1077
        %1081 = vrot.lane.b32.xlu0 %v1067, 48
        %v1082 = vpop.permute.xlu0 %1081
        %1085 = vrot.lane.b32.xlu0 %v1068, 64
        %v1086 = vpop.permute.xlu0 %1085
        %1089 = vrot.lane.b32.xlu0 %v1069, 80
        %v1090 = vpop.permute.xlu0 %1089
        %1093 = vrot.lane.b32.xlu0 %v1070, 96
        %v1094 = vpop.permute.xlu0 %1093
        %1097 = vrot.lane.b32.xlu0 %v1071, 112
        %v1098 = vpop.permute.xlu0 %1097
        %v1100 = vsel %vm457, %v1064, %v1074
        %v1101 = vsel %vm531, %v1100, %v1078
        %vm1102 = vcmask 392192
        %v1103 = vsel %vm1102, %v1101, %v1082
        %vm1104 = vcmask 523264
        %v1105 = vsel %vm1104, %v1103, %v1086
        %vm1106 = vcmask 654336
        %v1107 = vsel %vm1106, %v1105, %v1090
        %vm1108 = vcmask 785408
        %v1109 = vsel %vm1108, %v1107, %v1094
        %vm1110 = vcmask 916480
        %v1111 = vsel %vm1110, %v1109, %v1098
        %1112 = vst [vmem:[%s448] sm:$0xff] %v1111
        %p1113 = scmp.lt.s32.totalorder %s27, 1
        %s1114 = scalar_select %p1113, %s27, 1
        %p1115 = scmp.lt.s32.totalorder %s28, 0
        %s1116 = scalar_select %p1115, %s28, 0
        %s1117 = sadd.s32 %s1116, %s1114
        %s1118 = smul.addr %s1117, 8
        %s1119 = scalar_lea.vmem %s9, %s1118
        // Predicated region
        $region61: #{cross_graph_attention_forward.2} parent=55 // pred_check
          %p1120 = pneg %p270
        $region62: #{cross_graph_attention_forward.2} parent=55 // pred_check_branch
          %1122 = sbr.rel (%p1120) target = $region64
        $region63: #{cross_graph_attention_forward.2} parent=55 // pred_region
          _
        $region64: #{cross_graph_attention_forward.2} parent=55 // pred_fallthru
          _
      $region56: #{cross_graph_attention_forward.2} parent=5 // pred_fallthru
        _
      %p1123 = scmp.le.s32.totalorder 2, %s18
      // Predicated region
      $region65: #{cross_graph_attention_forward.2} parent=5 // pred_check
        %p1124 = pneg %p1123
      $region66: #{cross_graph_attention_forward.2} parent=5 // pred_check_branch
        %1126 = sbr.rel (%p1124) target = $region68
      $region67: #{cross_graph_attention_forward.2} parent=5 // pred_region
        %s1127 = ssub.s32 %s18, 2
        // Predicated region
        $region69: #{cross_graph_attention_forward.2} parent=67 // pred_check
          %p1128 = pneg %p276
        $region70: #{cross_graph_attention_forward.2} parent=67 // pred_check_branch
          %1130 = sbr.rel (%p1128) target = $region72
        $region71: #{cross_graph_attention_forward.2} parent=67 // pred_region
          %p1131 = scmp.lt.s32.totalorder %s29, 1
          %s1132 = scalar_select %p1131, %s29, 1
          %p1133 = scmp.lt.s32.totalorder %s30, 0
          %s1134 = scalar_select %p1133, %s30, 0
          %s1135 = sadd.s32 %s1134, %s1132
          %s1136 = smul.addr %s1135, 8
          %s1137 = scalar_lea.vmem %s9, %s1136
        $region72: #{cross_graph_attention_forward.2} parent=67 // pred_fallthru
          _
      $region68: #{cross_graph_attention_forward.2} parent=5 // pred_fallthru
        _
    $region6: #{cross_graph_attention_forward.2} parent=1 // loop_footer
      %s22 = sadd.s32 1, %s18
    $region7: #{cross_graph_attention_forward.2} parent=1 // loop_footer_branch
      %17 = sbr.rel target = $region3
    $region8: #{cross_graph_attention_forward.2} parent=1 // loop_exit
      _
    %1138 = vsyncpa [#allocation3], 1
    %s1139 = scalar_lea.sflag [#allocation3], 1
    %1140 = vsyncpa %s1139, 1

// kernel: cross_graph_attention_forward.3
$region0: #{cross_graph_attention_forward.3}
  #allocation0 [shape = 'u32[]', space=smem, size = 0x4, offset = 0x4, fixed_abs, tag = 'smem constant byte address 0x4 - core index']
  #allocation1 [shape = 'u32[144,128]{1,0:T(1,128)}', space=vmem, size = 0x12000, scoped, tag = 'internal scratch']
  #allocation2 [shape = 'f32[8,72]{1,0:T(8,128)}', space=vmem, size = 0x1000, scoped, tag = 'scratch operand']
  #allocation3 [shape = 'f32[32,32]{1,0:T(8,128)}', space=vmem, size = 0x4000, scoped, tag = 'scratch operand']
  #allocation4 [shape = 'f32[8,4]{1,0:T(8,128)}', space=vmem, size = 0x1000, scoped, tag = 'scratch operand']
  #allocation5 [shape = 'f32[8,4]{1,0:T(8,128)}', space=vmem, size = 0x1000, scoped, tag = 'scratch operand']
  #allocation6 [shape = 'f32[8,32]{1,0:T(8,128)}', space=vmem, size = 0x1000, scoped, tag = 'scratch operand']
  %s0 = inlined_call_operand.vmem [shape: f32[2,8,32], index: 0, kind: input, shape index: {}]
  %s1 = inlined_call_operand.vmem [shape: f32[2,8,32], index: 1, kind: input, shape index: {}]
  %s2 = inlined_call_operand.vmem [shape: f32[2,8,16], index: 2, kind: input, shape index: {}]
  %s3 = inlined_call_operand.vmem [shape: f32[2,64,16], index: 3, kind: input, shape index: {}]
  %s4 = inlined_call_operand.vmem [shape: f32[32,72], index: 4, kind: input, shape index: {}]
  %s5 = inlined_call_operand.vmem [shape: f32[16,72], index: 5, kind: input, shape index: {}]
  %s6 = inlined_call_operand.vmem [shape: f32[1,72], index: 6, kind: input, shape index: {}]
  %s7 = inlined_call_operand.vmem [shape: f32[32,72], index: 7, kind: input, shape index: {}]
  %s8 = inlined_call_operand.vmem [shape: f32[1,72], index: 8, kind: input, shape index: {}]
  %s9 = inlined_call_operand.vmem [shape: f32[16,8], index: 9, kind: input, shape index: {}]
  %s10 = inlined_call_operand.vmem [shape: f32[1,8], index: 10, kind: input, shape index: {}]
  %s11 = inlined_call_operand.vmem [shape: f32[4,32], index: 11, kind: input, shape index: {}]
  %s12 = inlined_call_operand.vmem [shape: f32[32,32], index: 12, kind: input, shape index: {}]
  %s13 = inlined_call_operand.hbm [shape: f32[2,8,32], index: 13, kind: output, shape index: {0}]
  %s14 = inlined_call_operand.hbm [shape: f32[2,8,32], index: 14, kind: output, shape index: {1}]
  %15 = xla_tuple %s13, %s14
  %s16 = sld [smem:[#allocation0]]
  $region101: #{cross_graph_attention_forward.3} parent=0
    _
  %s18 = ssub.s32 1, %s16
  %s19 = scalar_select 0, %s18, %s16
  $region1: #{cross_graph_attention_forward.3} parent=0
    #allocation7 [shape = 'u8[8192]{0}', space=vmem, size = 0x2000, scoped, tag = 'output window, operand 0']
    #allocation8 [shape = 's32[2]{0}', space=sflag, size = 0x8, scoped, tag = 'scoped memory for cross_graph_attention_forward.3']
    #allocation9 [shape = 'u8[8192]{0}', space=vmem, size = 0x2000, scoped, tag = 'output window, operand 1']
    #allocation10 [shape = 's32[2]{0}', space=sflag, size = 0x8, scoped, tag = 'scoped memory for cross_graph_attention_forward.3']
    %20 = vsyncpa [#allocation8], 0
    %s21 = scalar_lea.sflag [#allocation8], 1
    %22 = vsyncpa %s21, 0
    %23 = vsyncpa [#allocation10], 0
    %s24 = scalar_lea.sflag [#allocation10], 1
    %25 = vsyncpa %s24, 0
    loop: start=0, step=1, limit=4
    $region2: #{cross_graph_attention_forward.3} parent=1 // loop_pre_header
      _
    $region3: #{cross_graph_attention_forward.3} parent=1 // loop_header
      %s27 = sphi 0, %s31
      %p28 = scmp.ge.s32.totalorder %s27, 4
      %s34 = sphi 0, %s46
      %s35 = sphi 0, %s42
      %s36 = sphi 0, %s34
      %s37 = sphi 0, %s35
      %s38 = sphi 0, %s36
      %s39 = sphi 0, %s37
      %s51 = sphi 0, %s53
      %s54 = sphi 0, %s51
      %s55 = sphi 0, %s54
      %s71 = sphi 0, %s55
      %s77 = sphi 0, %s79
      %s80 = sphi 0, %s77
      %s81 = sphi 0, %s80
      %s97 = sphi 0, %s81
      %s105 = sphi 0, %s107
      %s108 = sphi 0, %s105
      %s109 = sphi 0, %s108
      %s125 = sphi 0, %s109
      %s133 = sphi 0, %s135
      %s136 = sphi 0, %s133
      %s137 = sphi 0, %s136
      %s153 = sphi 0, %s137
      %s157 = sphi 0, %s157
      %s159 = sphi 0, %s157
      %s160 = sphi 0, %s159
      %s174 = sphi 0, %s160
      %s178 = sphi 0, %s178
      %s180 = sphi 0, %s178
      %s181 = sphi 0, %s180
      %s195 = sphi 0, %s181
      %s199 = sphi 0, %s199
      %s201 = sphi 0, %s199
      %s202 = sphi 0, %s201
      %s216 = sphi 0, %s202
      %s220 = sphi 0, %s220
      %s222 = sphi 0, %s220
      %s223 = sphi 0, %s222
      %s237 = sphi 0, %s223
      %s241 = sphi 0, %s241
      %s243 = sphi 0, %s241
      %s244 = sphi 0, %s243
      %s258 = sphi 0, %s244
      %s262 = sphi 0, %s262
      %s264 = sphi 0, %s262
      %s265 = sphi 0, %s264
      %s279 = sphi 0, %s265
      %s283 = sphi 0, %s283
      %s285 = sphi 0, %s283
      %s286 = sphi 0, %s285
      %s300 = sphi 0, %s286
      %s304 = sphi 0, %s304
      %s306 = sphi 0, %s304
      %s307 = sphi 0, %s306
      %s321 = sphi 0, %s307
      %s325 = sphi 0, %s325
      %s327 = sphi 0, %s325
      %s328 = sphi 0, %s327
      %s342 = sphi 0, %s328
      %s350 = sphi 0, %s352
      %s353 = sphi 0, %s350
      %s354 = sphi 0, %s353
      %s370 = sphi 0, %s354
      %s376 = sphi 0, %s378
      %s379 = sphi 0, %s376
      %s380 = sphi 0, %s379
      %s396 = sphi 0, %s380
    $region4: #{cross_graph_attention_forward.3} parent=1 // loop_header_branch
      %30 = sbr.rel (%p28) target = $region8
    $region5: #{cross_graph_attention_forward.3} parent=1 // loop_body
      %s32 = ssub.s32 %s27, 1
      %s33 = ssub.s32 %s27, 2
      %s40 = sadd.s32 1, %s35
      %p41 = scmp.ge.s32.totalorder %s40, 1
      %s42 = scalar_select %p41, 0, %s40
      %s43 = sadd.s32 1, %s34
      %s44 = scalar_select %p41, %s43, %s34
      %p45 = scmp.ge.s32.totalorder %s44, 2
      %s46 = scalar_select %p45, 0, %s44
      %s47 = ssub.s32 %s34, %s46
      %s48 = ssub.s32 %s35, %s42
      %s49 = sor.u32 %s47, %s48
      %p50 = scmp.eq.s32.totalorder %s49, 0
      %s52 = sadd.s32 %s51, 1
      %s53 = scalar_select %p50, %s51, %s52
      %p56 = pneg %p50
      %p57 = scmp.eq.s32.totalorder %s27, 1
      %p58 = por %p56, %p57
      %p59 = scmp.ne.s32.totalorder %s51, %s54
      %p60 = scmp.eq.s32.totalorder %s27, 0
      %p61 = por %p59, %p60
      %p62 = scmp.ne.s32.totalorder %s51, %s54
      %p63 = scmp.eq.s32.totalorder %s32, 1
      %p64 = por %p62, %p63
      %p65 = scmp.ne.s32.totalorder %s54, %s55
      %p66 = scmp.eq.s32.totalorder %s32, 0
      %p67 = por %p65, %p66
      %p68 = scmp.ne.s32.totalorder %s54, %s55
      %p69 = scmp.eq.s32.totalorder %s33, 1
      %p70 = por %p68, %p69
      %p72 = scmp.ne.s32.totalorder %s55, %s71
      %p73 = scmp.eq.s32.totalorder %s33, 0
      %p74 = por %p72, %p73
      %s75 = ssub.s32 %s34, %s46
      %p76 = scmp.eq.s32.totalorder %s75, 0
      %s78 = sadd.s32 %s77, 1
      %s79 = scalar_select %p76, %s77, %s78
      %p82 = pneg %p76
      %p83 = scmp.eq.s32.totalorder %s27, 1
      %p84 = por %p82, %p83
      %p85 = scmp.ne.s32.totalorder %s77, %s80
      %p86 = scmp.eq.s32.totalorder %s27, 0
      %p87 = por %p85, %p86
      %p88 = scmp.ne.s32.totalorder %s77, %s80
      %p89 = scmp.eq.s32.totalorder %s32, 1
      %p90 = por %p88, %p89
      %p91 = scmp.ne.s32.totalorder %s80, %s81
      %p92 = scmp.eq.s32.totalorder %s32, 0
      %p93 = por %p91, %p92
      %p94 = scmp.ne.s32.totalorder %s80, %s81
      %p95 = scmp.eq.s32.totalorder %s33, 1
      %p96 = por %p94, %p95
      %p98 = scmp.ne.s32.totalorder %s81, %s97
      %p99 = scmp.eq.s32.totalorder %s33, 0
      %p100 = por %p98, %p99
      %s101 = ssub.s32 %s34, %s46
      %s102 = ssub.s32 %s35, %s42
      %s103 = sor.u32 %s101, %s102
      %p104 = scmp.eq.s32.totalorder %s103, 0
      %s106 = sadd.s32 %s105, 1
      %s107 = scalar_select %p104, %s105, %s106
      %p110 = pneg %p104
      %p111 = scmp.eq.s32.totalorder %s27, 1
      %p112 = por %p110, %p111
      %p113 = scmp.ne.s32.totalorder %s105, %s108
      %p114 = scmp.eq.s32.totalorder %s27, 0
      %p115 = por %p113, %p114
      %p116 = scmp.ne.s32.totalorder %s105, %s108
      %p117 = scmp.eq.s32.totalorder %s32, 1
      %p118 = por %p116, %p117
      %p119 = scmp.ne.s32.totalorder %s108, %s109
      %p120 = scmp.eq.s32.totalorder %s32, 0
      %p121 = por %p119, %p120
      %p122 = scmp.ne.s32.totalorder %s108, %s109
      %p123 = scmp.eq.s32.totalorder %s33, 1
      %p124 = por %p122, %p123
      %p126 = scmp.ne.s32.totalorder %s109, %s125
      %p127 = scmp.eq.s32.totalorder %s33, 0
      %p128 = por %p126, %p127
      %s129 = ssub.s32 %s34, %s46
      %s130 = ssub.s32 %s35, %s42
      %s131 = sor.u32 %s129, %s130
      %p132 = scmp.eq.s32.totalorder %s131, 0
      %s134 = sadd.s32 %s133, 1
      %s135 = scalar_select %p132, %s133, %s134
      %p138 = pneg %p132
      %p139 = scmp.eq.s32.totalorder %s27, 1
      %p140 = por %p138, %p139
      %p141 = scmp.ne.s32.totalorder %s133, %s136
      %p142 = scmp.eq.s32.totalorder %s27, 0
      %p143 = por %p141, %p142
      %p144 = scmp.ne.s32.totalorder %s133, %s136
      %p145 = scmp.eq.s32.totalorder %s32, 1
      %p146 = por %p144, %p145
      %p147 = scmp.ne.s32.totalorder %s136, %s137
      %p148 = scmp.eq.s32.totalorder %s32, 0
      %p149 = por %p147, %p148
      %p150 = scmp.ne.s32.totalorder %s136, %s137
      %p151 = scmp.eq.s32.totalorder %s33, 1
      %p152 = por %p150, %p151
      %p154 = scmp.ne.s32.totalorder %s137, %s153
      %p155 = scmp.eq.s32.totalorder %s33, 0
      %p156 = por %p154, %p155
      %s158 = sadd.s32 %s157, 1
      %p161 = scmp.eq.s32.totalorder %s27, 1
      %p162 = scmp.ne.s32.totalorder %s157, %s159
      %p163 = scmp.eq.s32.totalorder %s27, 0
      %p164 = por %p162, %p163
      %p165 = scmp.ne.s32.totalorder %s157, %s159
      %p166 = scmp.eq.s32.totalorder %s32, 1
      %p167 = por %p165, %p166
      %p168 = scmp.ne.s32.totalorder %s159, %s160
      %p169 = scmp.eq.s32.totalorder %s32, 0
      %p170 = por %p168, %p169
      %p171 = scmp.ne.s32.totalorder %s159, %s160
      %p172 = scmp.eq.s32.totalorder %s33, 1
      %p173 = por %p171, %p172
      %p175 = scmp.ne.s32.totalorder %s160, %s174
      %p176 = scmp.eq.s32.totalorder %s33, 0
      %p177 = por %p175, %p176
      %s179 = sadd.s32 %s178, 1
      %p182 = scmp.eq.s32.totalorder %s27, 1
      %p183 = scmp.ne.s32.totalorder %s178, %s180
      %p184 = scmp.eq.s32.totalorder %s27, 0
      %p185 = por %p183, %p184
      %p186 = scmp.ne.s32.totalorder %s178, %s180
      %p187 = scmp.eq.s32.totalorder %s32, 1
      %p188 = por %p186, %p187
      %p189 = scmp.ne.s32.totalorder %s180, %s181
      %p190 = scmp.eq.s32.totalorder %s32, 0
      %p191 = por %p189, %p190
      %p192 = scmp.ne.s32.totalorder %s180, %s181
      %p193 = scmp.eq.s32.totalorder %s33, 1
      %p194 = por %p192, %p193
      %p196 = scmp.ne.s32.totalorder %s181, %s195
      %p197 = scmp.eq.s32.totalorder %s33, 0
      %p198 = por %p196, %p197
      %s200 = sadd.s32 %s199, 1
      %p203 = scmp.eq.s32.totalorder %s27, 1
      %p204 = scmp.ne.s32.totalorder %s199, %s201
      %p205 = scmp.eq.s32.totalorder %s27, 0
      %p206 = por %p204, %p205
      %p207 = scmp.ne.s32.totalorder %s199, %s201
      %p208 = scmp.eq.s32.totalorder %s32, 1
      %p209 = por %p207, %p208
      %p210 = scmp.ne.s32.totalorder %s201, %s202
      %p211 = scmp.eq.s32.totalorder %s32, 0
      %p212 = por %p210, %p211
      %p213 = scmp.ne.s32.totalorder %s201, %s202
      %p214 = scmp.eq.s32.totalorder %s33, 1
      %p215 = por %p213, %p214
      %p217 = scmp.ne.s32.totalorder %s202, %s216
      %p218 = scmp.eq.s32.totalorder %s33, 0
      %p219 = por %p217, %p218
      %s221 = sadd.s32 %s220, 1
      %p224 = scmp.eq.s32.totalorder %s27, 1
      %p225 = scmp.ne.s32.totalorder %s220, %s222
      %p226 = scmp.eq.s32.totalorder %s27, 0
      %p227 = por %p225, %p226
      %p228 = scmp.ne.s32.totalorder %s220, %s222
      %p229 = scmp.eq.s32.totalorder %s32, 1
      %p230 = por %p228, %p229
      %p231 = scmp.ne.s32.totalorder %s222, %s223
      %p232 = scmp.eq.s32.totalorder %s32, 0
      %p233 = por %p231, %p232
      %p234 = scmp.ne.s32.totalorder %s222, %s223
      %p235 = scmp.eq.s32.totalorder %s33, 1
      %p236 = por %p234, %p235
      %p238 = scmp.ne.s32.totalorder %s223, %s237
      %p239 = scmp.eq.s32.totalorder %s33, 0
      %p240 = por %p238, %p239
      %s242 = sadd.s32 %s241, 1
      %p245 = scmp.eq.s32.totalorder %s27, 1
      %p246 = scmp.ne.s32.totalorder %s241, %s243
      %p247 = scmp.eq.s32.totalorder %s27, 0
      %p248 = por %p246, %p247
      %p249 = scmp.ne.s32.totalorder %s241, %s243
      %p250 = scmp.eq.s32.totalorder %s32, 1
      %p251 = por %p249, %p250
      %p252 = scmp.ne.s32.totalorder %s243, %s244
      %p253 = scmp.eq.s32.totalorder %s32, 0
      %p254 = por %p252, %p253
      %p255 = scmp.ne.s32.totalorder %s243, %s244
      %p256 = scmp.eq.s32.totalorder %s33, 1
      %p257 = por %p255, %p256
      %p259 = scmp.ne.s32.totalorder %s244, %s258
      %p260 = scmp.eq.s32.totalorder %s33, 0
      %p261 = por %p259, %p260
      %s263 = sadd.s32 %s262, 1
      %p266 = scmp.eq.s32.totalorder %s27, 1
      %p267 = scmp.ne.s32.totalorder %s262, %s264
      %p268 = scmp.eq.s32.totalorder %s27, 0
      %p269 = por %p267, %p268
      %p270 = scmp.ne.s32.totalorder %s262, %s264
      %p271 = scmp.eq.s32.totalorder %s32, 1
      %p272 = por %p270, %p271
      %p273 = scmp.ne.s32.totalorder %s264, %s265
      %p274 = scmp.eq.s32.totalorder %s32, 0
      %p275 = por %p273, %p274
      %p276 = scmp.ne.s32.totalorder %s264, %s265
      %p277 = scmp.eq.s32.totalorder %s33, 1
      %p278 = por %p276, %p277
      %p280 = scmp.ne.s32.totalorder %s265, %s279
      %p281 = scmp.eq.s32.totalorder %s33, 0
      %p282 = por %p280, %p281
      %s284 = sadd.s32 %s283, 1
      %p287 = scmp.eq.s32.totalorder %s27, 1
      %p288 = scmp.ne.s32.totalorder %s283, %s285
      %p289 = scmp.eq.s32.totalorder %s27, 0
      %p290 = por %p288, %p289
      %p291 = scmp.ne.s32.totalorder %s283, %s285
      %p292 = scmp.eq.s32.totalorder %s32, 1
      %p293 = por %p291, %p292
      %p294 = scmp.ne.s32.totalorder %s285, %s286
      %p295 = scmp.eq.s32.totalorder %s32, 0
      %p296 = por %p294, %p295
      %p297 = scmp.ne.s32.totalorder %s285, %s286
      %p298 = scmp.eq.s32.totalorder %s33, 1
      %p299 = por %p297, %p298
      %p301 = scmp.ne.s32.totalorder %s286, %s300
      %p302 = scmp.eq.s32.totalorder %s33, 0
      %p303 = por %p301, %p302
      %s305 = sadd.s32 %s304, 1
      %p308 = scmp.eq.s32.totalorder %s27, 1
      %p309 = scmp.ne.s32.totalorder %s304, %s306
      %p310 = scmp.eq.s32.totalorder %s27, 0
      %p311 = por %p309, %p310
      %p312 = scmp.ne.s32.totalorder %s304, %s306
      %p313 = scmp.eq.s32.totalorder %s32, 1
      %p314 = por %p312, %p313
      %p315 = scmp.ne.s32.totalorder %s306, %s307
      %p316 = scmp.eq.s32.totalorder %s32, 0
      %p317 = por %p315, %p316
      %p318 = scmp.ne.s32.totalorder %s306, %s307
      %p319 = scmp.eq.s32.totalorder %s33, 1
      %p320 = por %p318, %p319
      %p322 = scmp.ne.s32.totalorder %s307, %s321
      %p323 = scmp.eq.s32.totalorder %s33, 0
      %p324 = por %p322, %p323
      %s326 = sadd.s32 %s325, 1
      %p329 = scmp.eq.s32.totalorder %s27, 1
      %p330 = scmp.ne.s32.totalorder %s325, %s327
      %p331 = scmp.eq.s32.totalorder %s27, 0
      %p332 = por %p330, %p331
      %p333 = scmp.ne.s32.totalorder %s325, %s327
      %p334 = scmp.eq.s32.totalorder %s32, 1
      %p335 = por %p333, %p334
      %p336 = scmp.ne.s32.totalorder %s327, %s328
      %p337 = scmp.eq.s32.totalorder %s32, 0
      %p338 = por %p336, %p337
      %p339 = scmp.ne.s32.totalorder %s327, %s328
      %p340 = scmp.eq.s32.totalorder %s33, 1
      %p341 = por %p339, %p340
      %p343 = scmp.ne.s32.totalorder %s328, %s342
      %p344 = scmp.eq.s32.totalorder %s33, 0
      %p345 = por %p343, %p344
      %s346 = ssub.s32 %s34, %s46
      %s347 = ssub.s32 %s35, %s42
      %s348 = sor.u32 %s346, %s347
      %p349 = scmp.eq.s32.totalorder %s348, 0
      %s351 = sadd.s32 %s350, 1
      %s352 = scalar_select %p349, %s350, %s351
      %p355 = pneg %p349
      %p356 = scmp.eq.s32.totalorder %s27, 1
      %p357 = por %p355, %p356
      %p358 = scmp.ne.s32.totalorder %s350, %s353
      %p359 = scmp.eq.s32.totalorder %s27, 0
      %p360 = por %p358, %p359
      %p361 = scmp.ne.s32.totalorder %s350, %s353
      %p362 = scmp.eq.s32.totalorder %s32, 1
      %p363 = por %p361, %p362
      %p364 = scmp.ne.s32.totalorder %s353, %s354
      %p365 = scmp.eq.s32.totalorder %s32, 0
      %p366 = por %p364, %p365
      %p367 = scmp.ne.s32.totalorder %s353, %s354
      %p368 = scmp.eq.s32.totalorder %s33, 1
      %p369 = por %p367, %p368
      %p371 = scmp.ne.s32.totalorder %s354, %s370
      %p372 = scmp.eq.s32.totalorder %s33, 0
      %p373 = por %p371, %p372
      %s374 = ssub.s32 %s34, %s46
      %p375 = scmp.eq.s32.totalorder %s374, 0
      %s377 = sadd.s32 %s376, 1
      %s378 = scalar_select %p375, %s376, %s377
      %p381 = pneg %p375
      %p382 = scmp.eq.s32.totalorder %s27, 1
      %p383 = por %p381, %p382
      %p384 = scmp.ne.s32.totalorder %s376, %s379
      %p385 = scmp.eq.s32.totalorder %s27, 0
      %p386 = por %p384, %p385
      %p387 = scmp.ne.s32.totalorder %s376, %s379
      %p388 = scmp.eq.s32.totalorder %s32, 1
      %p389 = por %p387, %p388
      %p390 = scmp.ne.s32.totalorder %s379, %s380
      %p391 = scmp.eq.s32.totalorder %s32, 0
      %p392 = por %p390, %p391
      %p393 = scmp.ne.s32.totalorder %s379, %s380
      %p394 = scmp.eq.s32.totalorder %s33, 1
      %p395 = por %p393, %p394
      %p397 = scmp.ne.s32.totalorder %s380, %s396
      %p398 = scmp.eq.s32.totalorder %s33, 0
      %p399 = por %p397, %p398
      %p400 = scmp.le.s32.totalorder 1, %s27
      %p401 = scmp.lt.s32.totalorder %s27, 3
      %p402 = pnand %p400, %p401
      %p403 = pneg %p402
      // Predicated region
      $region9: #{cross_graph_attention_forward.3} parent=5 // pred_check
        _
      $region10: #{cross_graph_attention_forward.3} parent=5 // pred_check_branch
        %405 = sbr.rel (%p402) target = $region12
      $region11: #{cross_graph_attention_forward.3} parent=5 // pred_region
        %s406 = ssub.s32 %s27, 1
        // Predicated region
        $region13: #{cross_graph_attention_forward.3} parent=11 // pred_check
          %p407 = pneg %p170
        $region14: #{cross_graph_attention_forward.3} parent=11 // pred_check_branch
          %409 = sbr.rel (%p407) target = $region16
        $region15: #{cross_graph_attention_forward.3} parent=11 // pred_region
          _
        $region16: #{cross_graph_attention_forward.3} parent=11 // pred_fallthru
          _
        // Predicated region
        $region17: #{cross_graph_attention_forward.3} parent=11 // pred_check
          %p410 = pneg %p191
        $region18: #{cross_graph_attention_forward.3} parent=11 // pred_check_branch
          %412 = sbr.rel (%p410) target = $region20
        $region19: #{cross_graph_attention_forward.3} parent=11 // pred_region
          _
        $region20: #{cross_graph_attention_forward.3} parent=11 // pred_fallthru
          _
        // Predicated region
        $region21: #{cross_graph_attention_forward.3} parent=11 // pred_check
          %p413 = pneg %p212
        $region22: #{cross_graph_attention_forward.3} parent=11 // pred_check_branch
          %415 = sbr.rel (%p413) target = $region24
        $region23: #{cross_graph_attention_forward.3} parent=11 // pred_region
          _
        $region24: #{cross_graph_attention_forward.3} parent=11 // pred_fallthru
          _
        // Predicated region
        $region25: #{cross_graph_attention_forward.3} parent=11 // pred_check
          %p416 = pneg %p233
        $region26: #{cross_graph_attention_forward.3} parent=11 // pred_check_branch
          %418 = sbr.rel (%p416) target = $region28
        $region27: #{cross_graph_attention_forward.3} parent=11 // pred_region
          _
        $region28: #{cross_graph_attention_forward.3} parent=11 // pred_fallthru
          _
        // Predicated region
        $region29: #{cross_graph_attention_forward.3} parent=11 // pred_check
          %p419 = pneg %p254
        $region30: #{cross_graph_attention_forward.3} parent=11 // pred_check_branch
          %421 = sbr.rel (%p419) target = $region32
        $region31: #{cross_graph_attention_forward.3} parent=11 // pred_region
          _
        $region32: #{cross_graph_attention_forward.3} parent=11 // pred_fallthru
          _
        // Predicated region
        $region33: #{cross_graph_attention_forward.3} parent=11 // pred_check
          %p422 = pneg %p275
        $region34: #{cross_graph_attention_forward.3} parent=11 // pred_check_branch
          %424 = sbr.rel (%p422) target = $region36
        $region35: #{cross_graph_attention_forward.3} parent=11 // pred_region
          _
        $region36: #{cross_graph_attention_forward.3} parent=11 // pred_fallthru
          _
        // Predicated region
        $region37: #{cross_graph_attention_forward.3} parent=11 // pred_check
          %p425 = pneg %p296
        $region38: #{cross_graph_attention_forward.3} parent=11 // pred_check_branch
          %427 = sbr.rel (%p425) target = $region40
        $region39: #{cross_graph_attention_forward.3} parent=11 // pred_region
          _
        $region40: #{cross_graph_attention_forward.3} parent=11 // pred_fallthru
          _
        // Predicated region
        $region41: #{cross_graph_attention_forward.3} parent=11 // pred_check
          %p428 = pneg %p317
        $region42: #{cross_graph_attention_forward.3} parent=11 // pred_check_branch
          %430 = sbr.rel (%p428) target = $region44
        $region43: #{cross_graph_attention_forward.3} parent=11 // pred_region
          _
        $region44: #{cross_graph_attention_forward.3} parent=11 // pred_fallthru
          _
        // Predicated region
        $region45: #{cross_graph_attention_forward.3} parent=11 // pred_check
          %p431 = pneg %p338
        $region46: #{cross_graph_attention_forward.3} parent=11 // pred_check_branch
          %433 = sbr.rel (%p431) target = $region48
        $region47: #{cross_graph_attention_forward.3} parent=11 // pred_region
          _
        $region48: #{cross_graph_attention_forward.3} parent=11 // pred_fallthru
          _
      $region12: #{cross_graph_attention_forward.3} parent=5 // pred_fallthru
        _
      %p434 = scmp.lt.s32.totalorder %s27, 2
      // Predicated region
      $region49: #{cross_graph_attention_forward.3} parent=5 // pred_check
        %p435 = pneg %p434
      $region50: #{cross_graph_attention_forward.3} parent=5 // pred_check_branch
        %437 = sbr.rel (%p435) target = $region52
      $region51: #{cross_graph_attention_forward.3} parent=5 // pred_region
        // Predicated region
        $region53: #{cross_graph_attention_forward.3} parent=51 // pred_check
          %p438 = pneg %p61
        $region54: #{cross_graph_attention_forward.3} parent=51 // pred_check_branch
          %440 = sbr.rel (%p438) target = $region56
        $region55: #{cross_graph_attention_forward.3} parent=51 // pred_region
          %p441 = scmp.lt.s32.totalorder %s34, 1
          %s442 = scalar_select %p441, %s34, 1
          %p443 = scmp.lt.s32.totalorder %s35, 0
          %s444 = scalar_select %p443, %s35, 0
          %s445 = sadd.s32 %s444, %s442
          %s446 = smul.addr %s445, 8
          %s447 = scalar_lea.vmem %s0, %s446
        $region56: #{cross_graph_attention_forward.3} parent=51 // pred_fallthru
          _
        // Predicated region
        $region57: #{cross_graph_attention_forward.3} parent=51 // pred_check
          %p448 = pneg %p87
        $region58: #{cross_graph_attention_forward.3} parent=51 // pred_check_branch
          %450 = sbr.rel (%p448) target = $region60
        $region59: #{cross_graph_attention_forward.3} parent=51 // pred_region
          %p451 = scmp.lt.s32.totalorder %s34, 1
          %s452 = scalar_select %p451, %s34, 1
          %s453 = smul.addr %s452, 8
          %s454 = scalar_lea.vmem %s1, %s453
        $region60: #{cross_graph_attention_forward.3} parent=51 // pred_fallthru
          _
        // Predicated region
        $region61: #{cross_graph_attention_forward.3} parent=51 // pred_check
          %p455 = pneg %p115
        $region62: #{cross_graph_attention_forward.3} parent=51 // pred_check_branch
          %457 = sbr.rel (%p455) target = $region64
        $region63: #{cross_graph_attention_forward.3} parent=51 // pred_region
          %p458 = scmp.lt.s32.totalorder %s34, 1
          %s459 = scalar_select %p458, %s34, 1
          %p460 = scmp.lt.s32.totalorder %s35, 0
          %s461 = scalar_select %p460, %s35, 0
          %s462 = sadd.s32 %s461, %s459
          %s463 = smul.addr %s462, 8
          %s464 = scalar_lea.vmem %s2, %s463
        $region64: #{cross_graph_attention_forward.3} parent=51 // pred_fallthru
          _
        // Predicated region
        $region65: #{cross_graph_attention_forward.3} parent=51 // pred_check
          %p465 = pneg %p143
        $region66: #{cross_graph_attention_forward.3} parent=51 // pred_check_branch
          %467 = sbr.rel (%p465) target = $region68
        $region67: #{cross_graph_attention_forward.3} parent=51 // pred_region
          %s468 = smul.u32 8, %s35
          %p469 = scmp.lt.s32.totalorder %s34, 1
          %s470 = scalar_select %p469, %s34, 1
          %p471 = scmp.lt.s32.totalorder %s468, 7
          %s472 = scalar_select %p471, %s468, 7
          %s473 = smul.addr %s470, 8
          %s474 = sadd.s32 %s472, %s473
          %s475 = smul.addr %s474, 8
          %s476 = scalar_lea.vmem %s3, %s475
          %s477 = smul.u32 8, %s35
        $region68: #{cross_graph_attention_forward.3} parent=51 // pred_fallthru
          _
      $region52: #{cross_graph_attention_forward.3} parent=5 // pred_fallthru
        _
      %p478 = scmp.le.s32.totalorder 1, %s27
      %p479 = scmp.lt.s32.totalorder %s27, 3
      %p480 = pnand %p478, %p479
      %p481 = pneg %p480
      // Predicated region
      $region69: #{cross_graph_attention_forward.3} parent=5 // pred_check
        _
      $region70: #{cross_graph_attention_forward.3} parent=5 // pred_check_branch
        %483 = sbr.rel (%p480) target = $region72
      $region71: #{cross_graph_attention_forward.3} parent=5 // pred_region
        %s484 = ssub.s32 %s27, 1
        %p485 = scmp.lt.s32.totalorder %s36, 1
        %s486 = scalar_select %p485, %s36, 1
        %p487 = scmp.lt.s32.totalorder %s37, 0
        %s488 = scalar_select %p487, %s37, 0
        %s489 = sadd.s32 %s488, %s486
        %s490 = smul.addr %s489, 8
        %s491 = scalar_lea.vmem %s0, %s490
        %p492 = pneg %p67
        %p493 = pneg %p64
        %p494 = scmp.lt.s32.totalorder %s36, 1
        %s495 = scalar_select %p494, %s36, 1
        %s496 = smul.addr %s495, 8
        %s497 = scalar_lea.vmem %s1, %s496
        %p498 = pneg %p93
        %p499 = pneg %p90
        %p500 = scmp.lt.s32.totalorder %s36, 1
        %s501 = scalar_select %p500, %s36, 1
        %p502 = scmp.lt.s32.totalorder %s37, 0
        %s503 = scalar_select %p502, %s37, 0
        %s504 = sadd.s32 %s503, %s501
        %s505 = smul.addr %s504, 8
        %s506 = scalar_lea.vmem %s2, %s505
        %p507 = pneg %p121
        %p508 = pneg %p118
        %s509 = smul.u32 8, %s37
        %p510 = scmp.lt.s32.totalorder %s36, 1
        %s511 = scalar_select %p510, %s36, 1
        %p512 = scmp.lt.s32.totalorder %s509, 7
        %s513 = scalar_select %p512, %s509, 7
        %s514 = smul.addr %s511, 8
        %s515 = sadd.s32 %s513, %s514
        %s516 = smul.addr %s515, 8
        %s517 = scalar_lea.vmem %s3, %s516
        %p518 = pneg %p149
        %p519 = pneg %p146
        %p520 = pneg %p170
        %p521 = pneg %p167
        %p522 = pneg %p191
        %p523 = pneg %p188
        %p524 = pneg %p212
        %p525 = pneg %p209
        %p526 = pneg %p233
        %p527 = pneg %p230
        %p528 = pneg %p254
        %p529 = pneg %p251
        %p530 = pneg %p275
        %p531 = pneg %p272
        %p532 = pneg %p296
        %p533 = pneg %p293
        %p534 = pneg %p317
        %p535 = pneg %p314
        %p536 = pneg %p338
        %p537 = pneg %p335
        %p538 = pneg %p366
        %p539 = pneg %p363
        %s540 = sand.u32 %s353, 1
        %s541 = scalar_lea.sflag [#allocation8], %s540
        %s542 = sand.u32 %s353, 1
        %s543 = smul.addr %s542, 8
        %s544 = scalar_lea.vmem [#allocation7], %s543
        %p545 = pneg %p392
        %p546 = pneg %p389
        %s547 = sand.u32 %s379, 1
        %s548 = scalar_lea.sflag [#allocation10], %s547
        %s549 = sand.u32 %s379, 1
        %s550 = smul.addr %s549, 8
        %s551 = scalar_lea.vmem [#allocation9], %s550
        %p552 = scmp.lt.s32.totalorder %s36, 1
        %s553 = scalar_select %p552, %s36, 1
        %p554 = scmp.lt.s32.totalorder %s37, 0
        %s555 = scalar_select %p554, %s37, 0
        %s556 = sadd.s32 %s555, %s553
        %s557 = smul.addr %s556, 8
        %s558 = scalar_lea.vmem %s0, %s557
        %p559 = scmp.lt.s32.totalorder %s36, 1
        %s560 = scalar_select %p559, %s36, 1
        %s561 = smul.addr %s560, 8
        %s562 = scalar_lea.vmem %s1, %s561
        %p563 = scmp.lt.s32.totalorder %s36, 1
        %s564 = scalar_select %p563, %s36, 1
        %p565 = scmp.lt.s32.totalorder %s37, 0
        %s566 = scalar_select %p565, %s37, 0
        %s567 = sadd.s32 %s566, %s564
        %s568 = smul.addr %s567, 8
        %s569 = scalar_lea.vmem %s2, %s568
        %s570 = smul.u32 8, %s37
        %p571 = scmp.lt.s32.totalorder %s36, 1
        %s572 = scalar_select %p571, %s36, 1
        %p573 = scmp.lt.s32.totalorder %s570, 7
        %s574 = scalar_select %p573, %s570, 7
        %s575 = smul.addr %s572, 8
        %s576 = sadd.s32 %s574, %s575
        %s577 = smul.addr %s576, 8
        %s578 = scalar_lea.vmem %s3, %s577
        %s579 = smul.u32 8, %s37
        %p580 = scmp.eq.s32.totalorder %s37, 0
        // Predicated region
        $region73: #{cross_graph_attention_forward.3} parent=71 // pred_check
          %p581 = pneg %p580
        $region74: #{cross_graph_attention_forward.3} parent=71 // pred_check_branch
          %583 = sbr.rel (%p581) target = $region76
        $region75: #{cross_graph_attention_forward.3} parent=71 // pred_region
          %v584 = vld [vmem:[%s562] sm:$0xff]
          %v585 = vld [vmem:[%s7] sm:$0xff]
          %v586 = vld [vmem:[%s7 + $0x8] sm:$0xff]
          %v587 = vld [vmem:[%s7 + $0x10] sm:$0xff]
          %v588 = vld [vmem:[%s7 + $0x18] sm:$0xff]
          %v589 = vld [vmem:[%s8] sm:$0x1]
          %v591 = vlaneseq
          %v592 = vshrl.u32 %v591, 7
          %v593 = vsub.s32 0, %v592
          %v594 = vrot.slane %v589, %v593
          %vm596 = vcmask 261120
          %v598 = vsel %vm596, %v584, 0
          %600 = vmatprep.subr.mxu0 0.0
          %601 = vmatpush1.msra.mxu0 0.0
          %602 = vmatprep.subr.mxu0 0.0
          %603 = vmatpush1.msra.mxu0 0.0
          %604 = vmatprep.subr.mxu0 0.0
          %605 = vmatpush1.msra.mxu0 0.0
          %606 = vmatprep.subr.mxu0 0.0
          %607 = vmatpush1.msra.mxu0 0.0
          %608 = vmatprep.subr.mxu0 0.0
          %609 = vmatpush1.msra.mxu0 0.0
          %610 = vmatprep.subr.mxu0 0.0
          %611 = vmatpush1.msra.mxu0 0.0
          %612 = vmatprep.subr.mxu0 0.0
          %613 = vmatpush1.msra.mxu0 0.0
          %614 = vmatprep.subr.mxu0 0.0
          %615 = vmatpush1.msra.mxu0 0.0
          %616 = vmatprep.subr.mxu0 0.0
          %617 = vmatpush1.msra.mxu0 0.0
          %618 = vmatprep.subr.mxu0 0.0
          %619 = vmatpush1.msra.mxu0 0.0
          %620 = vmatprep.subr.mxu0 0.0
          %621 = vmatpush1.msra.mxu0 0.0
          %622 = vmatprep.subr.mxu0 0.0
          %623 = vmatpush1.msra.mxu0 0.0
          %624 = vmatprep.subr.mxu0 0.0
          %625 = vmatpush1.msra.mxu0 %v588
          %626 = vmatprep.subr.mxu0 0.0
          %627 = vmatpush1.msra.mxu0 %v587
          %628 = vmatprep.subr.mxu0 0.0
          %629 = vmatpush1.msra.mxu0 %v586
          %630 = vmatprep.subr.mxu0 0.0
          %631 = vmatpush1.msra.mxu0 %v585
          %632 = vmatprep.subr.mxu0 0.0
          %633 = vmatpush2.msra.mxu0 0.0
          %634 = vmatprep.subr.mxu0 0.0
          %635 = vmatpush2.msra.mxu0 0.0
          %636 = vmatprep.subr.mxu0 0.0
          %637 = vmatpush2.msra.mxu0 0.0
          %638 = vmatprep.subr.mxu0 0.0
          %639 = vmatpush2.msra.mxu0 0.0
          %640 = vmatprep.subr.mxu0 0.0
          %641 = vmatpush2.msra.mxu0 0.0
          %642 = vmatprep.subr.mxu0 0.0
          %643 = vmatpush2.msra.mxu0 0.0
          %644 = vmatprep.subr.mxu0 0.0
          %645 = vmatpush2.msra.mxu0 0.0
          %646 = vmatprep.subr.mxu0 0.0
          %647 = vmatpush2.msra.mxu0 0.0
          %648 = vmatprep.subr.mxu0 0.0
          %649 = vmatpush2.msra.mxu0 0.0
          %650 = vmatprep.subr.mxu0 0.0
          %651 = vmatpush2.msra.mxu0 0.0
          %652 = vmatprep.subr.mxu0 0.0
          %653 = vmatpush2.msra.mxu0 0.0
          %654 = vmatprep.subr.mxu0 0.0
          %655 = vmatpush2.msra.mxu0 0.0
          %656 = vmatprep.subr.mxu0 0.0
          %657 = vmatpush2.msra.mxu0 0.0
          %658 = vmatprep.subr.mxu0 0.0
          %659 = vmatpush2.msra.mxu0 0.0
          %660 = vmatprep.subr.mxu0 0.0
          %661 = vmatpush2.msra.mxu0 0.0
          %662 = vmatprep.subr.mxu0 0.0
          %663 = vmatpush2.msra.mxu0 0.0
          %664 = vmatprep.mubr.f32.mxu0 0.0
          %665 = vmatmul.mubr.f32.gmra.mxu0 %v598
          %v666 = vpop.f32.mrf.mxu0
          %v667 = vadd.f32 %v594, %v666
          %v668 = vpop.f32.mrf.mxu0
          %669 = vdwg.mxu0
          %vm670 = vcmask 588800
          %671 = vst.msk [vmem:[#allocation2] sm:$0xff] %vm670, %v667
          %v673 = vcombine.high %v667, %v667
          %v675 = vunpack.c.l.s4 1966171168
          %v676 = vunpack.c.0.s8 %v675
          %v677 = vlaneseq
          %v678 = vshrl.u32 %v677, 7
          %v679 = vsub.s32 %v676, %v678
          %v680 = vrot.slane %v667, %v679
          %v682 = vunpack.c.l.s4 1966171168
          %v683 = vunpack.c.0.s8 %v682
          %v684 = vlaneseq
          %v685 = vshrl.u32 %v684, 7
          %v686 = vsub.s32 %v683, %v685
          %v687 = vrot.slane %v673, %v686
          %v688 = vcombine.high %v680, %v680
          %v689 = vcombine.high %v687, %v687
          %v691 = vunpack.c.l.s4 1966171168
          %v692 = vunpack.c.0.s8 %v691
          %v693 = vlaneseq
          %v694 = vshrl.u32 %v693, 7
          %v695 = vsub.s32 %v692, %v694
          %v696 = vrot.slane %v680, %v695
          %v698 = vunpack.c.l.s4 1966171168
          %v699 = vunpack.c.0.s8 %v698
          %v700 = vlaneseq
          %v701 = vshrl.u32 %v700, 7
          %v702 = vsub.s32 %v699, %v701
          %v703 = vrot.slane %v687, %v702
          %v705 = vunpack.c.l.s4 1966171168
          %v706 = vunpack.c.0.s8 %v705
          %v707 = vlaneseq
          %v708 = vshrl.u32 %v707, 7
          %v709 = vsub.s32 %v706, %v708
          %v710 = vrot.slane %v688, %v709
          %v712 = vunpack.c.l.s4 1966171168
          %v713 = vunpack.c.0.s8 %v712
          %v714 = vlaneseq
          %v715 = vshrl.u32 %v714, 7
          %v716 = vsub.s32 %v713, %v715
          %v717 = vrot.slane %v689, %v716
          %v718 = vcombine.high %v696, %v696
          %v719 = vcombine.high %v703, %v703
          %v720 = vcombine.high %v710, %v710
          %v721 = vcombine.high %v717, %v717
          %v722 = vld [vmem:[%s11] sm:$0xf]
          %v723 = vlaneseq
          %v724 = vshrl.u32 %v723, 7
          %v725 = vsub.s32 0, %v724
          %v726 = vrot.slane %v696, %v725
          %v727 = vlaneseq
          %v728 = vshrl.u32 %v727, 7
          %v729 = vsub.s32 0, %v728
          %v730 = vrot.slane %v710, %v729
          %v731 = vlaneseq
          %v732 = vshrl.u32 %v731, 7
          %v733 = vsub.s32 0, %v732
          %v734 = vrot.slane %v718, %v733
          %v735 = vlaneseq
          %v736 = vshrl.u32 %v735, 7
          %v737 = vsub.s32 0, %v736
          %v738 = vrot.slane %v720, %v737
          %v739 = vlaneseq
          %v740 = vshrl.u32 %v739, 7
          %v741 = vsub.s32 0, %v740
          %v742 = vrot.slane %v703, %v741
          %v743 = vlaneseq
          %v744 = vshrl.u32 %v743, 7
          %v745 = vsub.s32 0, %v744
          %v746 = vrot.slane %v717, %v745
          %v747 = vlaneseq
          %v748 = vshrl.u32 %v747, 7
          %v749 = vsub.s32 0, %v748
          %v750 = vrot.slane %v719, %v749
          %v751 = vlaneseq
          %v752 = vshrl.u32 %v751, 7
          %v753 = vsub.s32 0, %v752
          %v754 = vrot.slane %v721, %v753
          %v763 = vmul.f32 %v726, %v722
          %v764 = vmul.f32 %v730, %v722
          %v765 = vmul.f32 %v734, %v722
          %v766 = vmul.f32 %v738, %v722
          %v767 = vmul.f32 %v742, %v722
          %v768 = vmul.f32 %v746, %v722
          %v769 = vmul.f32 %v750, %v722
          %v770 = vmul.f32 %v754, %v722
          %v779 = vcombine.low %v763, %v764
          %v780 = vcombine.low %v765, %v766
          %v781 = vcombine.low %v767, %v768
          %v782 = vcombine.low %v769, %v770
          %787 = vst.msk [vmem:[#allocation3] sm:$0xff] %vm596, %v779
          %788 = vst.msk [vmem:[#allocation3 + $0x8] sm:$0xff] %vm596, %v780
          %789 = vst.msk [vmem:[#allocation3 + $0x10] sm:$0xff] %vm596, %v781
          %790 = vst.msk [vmem:[#allocation3 + $0x18] sm:$0xff] %vm596, %v782
          %vm791 = vcmask 31744
          %792 = vst.msk [vmem:[#allocation4] sm:$0xff] %vm791, -inf
          %793 = vst.msk [vmem:[#allocation5] sm:$0xff] %vm791, 0.0
          %794 = vst.msk [vmem:[#allocation6] sm:$0xff] %vm596, 0.0
        $region76: #{cross_graph_attention_forward.3} parent=71 // pred_fallthru
          _
        %v795 = vld [vmem:[%s11] sm:$0xf]
        %v796 = vld [vmem:[%s558] sm:$0xff]
        %v797 = vld [vmem:[%s4] sm:$0xff]
        %v798 = vld [vmem:[%s4 + $0x8] sm:$0xff]
        %v799 = vld [vmem:[%s4 + $0x10] sm:$0xff]
        %v800 = vld [vmem:[%s4 + $0x18] sm:$0xff]
        %v801 = vld [vmem:[%s569] sm:$0xff]
        %v802 = vld [vmem:[%s5] sm:$0xff]
        %v803 = vld [vmem:[%s5 + $0x8] sm:$0xff]
        %vm804 = vcmask 130048
        %v806 = vsel %vm804, %v801, 0
        %808 = vmatprep.subr.mxu0 0.0
        %809 = vmatpush1.msra.mxu0 0.0
        %810 = vmatprep.subr.mxu0 0.0
        %811 = vmatpush1.msra.mxu0 0.0
        %812 = vmatprep.subr.mxu0 0.0
        %813 = vmatpush1.msra.mxu0 0.0
        %814 = vmatprep.subr.mxu0 0.0
        %815 = vmatpush1.msra.mxu0 0.0
        %816 = vmatprep.subr.mxu0 0.0
        %817 = vmatpush1.msra.mxu0 0.0
        %818 = vmatprep.subr.mxu0 0.0
        %819 = vmatpush1.msra.mxu0 0.0
        %820 = vmatprep.subr.mxu0 0.0
        %821 = vmatpush1.msra.mxu0 0.0
        %822 = vmatprep.subr.mxu0 0.0
        %823 = vmatpush1.msra.mxu0 0.0
        %824 = vmatprep.subr.mxu0 0.0
        %825 = vmatpush1.msra.mxu0 0.0
        %826 = vmatprep.subr.mxu0 0.0
        %827 = vmatpush1.msra.mxu0 0.0
        %828 = vmatprep.subr.mxu0 0.0
        %829 = vmatpush1.msra.mxu0 0.0
        %830 = vmatprep.subr.mxu0 0.0
        %831 = vmatpush1.msra.mxu0 0.0
        %832 = vmatprep.subr.mxu0 0.0
        %833 = vmatpush1.msra.mxu0 0.0
        %834 = vmatprep.subr.mxu0 0.0
        %835 = vmatpush1.msra.mxu0 0.0
        %836 = vmatprep.subr.mxu0 0.0
        %837 = vmatpush1.msra.mxu0 %v803
        %838 = vmatprep.subr.mxu0 0.0
        %839 = vmatpush1.msra.mxu0 %v802
        %840 = vmatprep.subr.mxu0 0.0
        %841 = vmatpush2.msra.mxu0 0.0
        %842 = vmatprep.subr.mxu0 0.0
        %843 = vmatpush2.msra.mxu0 0.0
        %844 = vmatprep.subr.mxu0 0.0
        %845 = vmatpush2.msra.mxu0 0.0
        %846 = vmatprep.subr.mxu0 0.0
        %847 = vmatpush2.msra.mxu0 0.0
        %848 = vmatprep.subr.mxu0 0.0
        %849 = vmatpush2.msra.mxu0 0.0
        %850 = vmatprep.subr.mxu0 0.0
        %851 = vmatpush2.msra.mxu0 0.0
        %852 = vmatprep.subr.mxu0 0.0
        %853 = vmatpush2.msra.mxu0 0.0
        %854 = vmatprep.subr.mxu0 0.0
        %855 = vmatpush2.msra.mxu0 0.0
        %856 = vmatprep.subr.mxu0 0.0
        %857 = vmatpush2.msra.mxu0 0.0
        %858 = vmatprep.subr.mxu0 0.0
        %859 = vmatpush2.msra.mxu0 0.0
        %860 = vmatprep.subr.mxu0 0.0
        %861 = vmatpush2.msra.mxu0 0.0
        %862 = vmatprep.subr.mxu0 0.0
        %863 = vmatpush2.msra.mxu0 0.0
        %864 = vmatprep.subr.mxu0 0.0
        %865 = vmatpush2.msra.mxu0 0.0
        %866 = vmatprep.subr.mxu0 0.0
        %867 = vmatpush2.msra.mxu0 0.0
        %868 = vmatprep.subr.mxu0 0.0
        %869 = vmatpush2.msra.mxu0 0.0
        %870 = vmatprep.subr.mxu0 0.0
        %871 = vmatpush2.msra.mxu0 0.0
        %872 = vmatprep.mubr.f32.mxu0 0.0
        %873 = vmatmul.mubr.f32.gmra.mxu0 %v806
        %v874 = vpop.f32.mrf.mxu0
        %v875 = vadd.f32 0.0, %v874
        %v876 = vpop.f32.mrf.mxu0
        %877 = vdwg.mxu0
        %vm878 = vcmask 261120
        %v880 = vsel %vm878, %v796, 0
        %882 = vmatprep.subr.mxu0 0.0
        %883 = vmatpush1.msra.mxu0 0.0
        %884 = vmatprep.subr.mxu0 0.0
        %885 = vmatpush1.msra.mxu0 0.0
        %886 = vmatprep.subr.mxu0 0.0
        %887 = vmatpush1.msra.mxu0 0.0
        %888 = vmatprep.subr.mxu0 0.0
        %889 = vmatpush1.msra.mxu0 0.0
        %890 = vmatprep.subr.mxu0 0.0
        %891 = vmatpush1.msra.mxu0 0.0
        %892 = vmatprep.subr.mxu0 0.0
        %893 = vmatpush1.msra.mxu0 0.0
        %894 = vmatprep.subr.mxu0 0.0
        %895 = vmatpush1.msra.mxu0 0.0
        %896 = vmatprep.subr.mxu0 0.0
        %897 = vmatpush1.msra.mxu0 0.0
        %898 = vmatprep.subr.mxu0 0.0
        %899 = vmatpush1.msra.mxu0 0.0
        %900 = vmatprep.subr.mxu0 0.0
        %901 = vmatpush1.msra.mxu0 0.0
        %902 = vmatprep.subr.mxu0 0.0
        %903 = vmatpush1.msra.mxu0 0.0
        %904 = vmatprep.subr.mxu0 0.0
        %905 = vmatpush1.msra.mxu0 0.0
        %906 = vmatprep.subr.mxu0 0.0
        %907 = vmatpush1.msra.mxu0 %v800
        %908 = vmatprep.subr.mxu0 0.0
        %909 = vmatpush1.msra.mxu0 %v799
        %910 = vmatprep.subr.mxu0 0.0
        %911 = vmatpush1.msra.mxu0 %v798
        %912 = vmatprep.subr.mxu0 0.0
        %913 = vmatpush1.msra.mxu0 %v797
        %914 = vmatprep.subr.mxu0 0.0
        %915 = vmatpush2.msra.mxu0 0.0
        %916 = vmatprep.subr.mxu0 0.0
        %917 = vmatpush2.msra.mxu0 0.0
        %918 = vmatprep.subr.mxu0 0.0
        %919 = vmatpush2.msra.mxu0 0.0
        %920 = vmatprep.subr.mxu0 0.0
        %921 = vmatpush2.msra.mxu0 0.0
        %922 = vmatprep.subr.mxu0 0.0
        %923 = vmatpush2.msra.mxu0 0.0
        %924 = vmatprep.subr.mxu0 0.0
        %925 = vmatpush2.msra.mxu0 0.0
        %926 = vmatprep.subr.mxu0 0.0
        %927 = vmatpush2.msra.mxu0 0.0
        %928 = vmatprep.subr.mxu0 0.0
        %929 = vmatpush2.msra.mxu0 0.0
        %930 = vmatprep.subr.mxu0 0.0
        %931 = vmatpush2.msra.mxu0 0.0
        %932 = vmatprep.subr.mxu0 0.0
        %933 = vmatpush2.msra.mxu0 0.0
        %934 = vmatprep.subr.mxu0 0.0
        %935 = vmatpush2.msra.mxu0 0.0
        %936 = vmatprep.subr.mxu0 0.0
        %937 = vmatpush2.msra.mxu0 0.0
        %938 = vmatprep.subr.mxu0 0.0
        %939 = vmatpush2.msra.mxu0 0.0
        %940 = vmatprep.subr.mxu0 0.0
        %941 = vmatpush2.msra.mxu0 0.0
        %942 = vmatprep.subr.mxu0 0.0
        %943 = vmatpush2.msra.mxu0 0.0
        %944 = vmatprep.subr.mxu0 0.0
        %945 = vmatpush2.msra.mxu0 0.0
        %946 = vmatprep.mubr.f32.mxu0 0.0
        %947 = vmatmul.mubr.f32.gmra.mxu0 %v880
        %v948 = vpop.f32.mrf.mxu0
        %v949 = vadd.f32 %v875, %v948
        %v950 = vpop.f32.mrf.mxu0
        %951 = vdwg.mxu0
        %v952 = vld [vmem:[%s6] sm:$0x1]
        %v954 = vlaneseq
        %v955 = vshrl.u32 %v954, 7
        %v956 = vsub.s32 0, %v955
        %v957 = vrot.slane %v952, %v956
        %v959 = vadd.f32 %v949, %v957
        %v960 = vld [vmem:[%s578] sm:$0xff]
        %v961 = vld [vmem:[%s578 + $0x8] sm:$0xff]
        %v962 = vld [vmem:[%s578 + $0x10] sm:$0xff]
        %v963 = vld [vmem:[%s578 + $0x18] sm:$0xff]
        %v964 = vld [vmem:[%s578 + $0x20] sm:$0xff]
        %v965 = vld [vmem:[%s578 + $0x28] sm:$0xff]
        %v966 = vld [vmem:[%s578 + $0x30] sm:$0xff]
        %v967 = vld [vmem:[%s578 + $0x38] sm:$0xff]
        %v968 = vld [vmem:[%s9] sm:$0xff]
        %v969 = vld [vmem:[%s9 + $0x8] sm:$0xff]
        %v970 = vld [vmem:[%s10] sm:$0x1]
        %v972 = vlaneseq
        %v973 = vshrl.u32 %v972, 7
        %v974 = vsub.s32 0, %v973
        %v975 = vrot.slane %v970, %v974
        %v978 = vsel %vm804, %v960, 0
        %v981 = vsel %vm804, %v961, 0
        %v984 = vsel %vm804, %v962, 0
        %v987 = vsel %vm804, %v963, 0
        %v990 = vsel %vm804, %v964, 0
        %v993 = vsel %vm804, %v965, 0
        %v996 = vsel %vm804, %v966, 0
        %v999 = vsel %vm804, %v967, 0
        %1001 = vmatprep.subr.mxu0 0.0
        %1002 = vmatpush1.msra.mxu0 0.0
        %1003 = vmatprep.subr.mxu0 0.0
        %1004 = vmatpush1.msra.mxu0 0.0
        %1005 = vmatprep.subr.mxu0 0.0
        %1006 = vmatpush1.msra.mxu0 0.0
        %1007 = vmatprep.subr.mxu0 0.0
        %1008 = vmatpush1.msra.mxu0 0.0
        %1009 = vmatprep.subr.mxu0 0.0
        %1010 = vmatpush1.msra.mxu0 0.0
        %1011 = vmatprep.subr.mxu0 0.0
        %1012 = vmatpush1.msra.mxu0 0.0
        %1013 = vmatprep.subr.mxu0 0.0
        %1014 = vmatpush1.msra.mxu0 0.0
        %1015 = vmatprep.subr.mxu0 0.0
        %1016 = vmatpush1.msra.mxu0 0.0
        %1017 = vmatprep.subr.mxu0 0.0
        %1018 = vmatpush1.msra.mxu0 0.0
        %1019 = vmatprep.subr.mxu0 0.0
        %1020 = vmatpush1.msra.mxu0 0.0
        %1021 = vmatprep.subr.mxu0 0.0
        %1022 = vmatpush1.msra.mxu0 0.0
        %1023 = vmatprep.subr.mxu0 0.0
        %1024 = vmatpush1.msra.mxu0 0.0
        %1025 = vmatprep.subr.mxu0 0.0
        %1026 = vmatpush1.msra.mxu0 0.0
        %1027 = vmatprep.subr.mxu0 0.0
        %1028 = vmatpush1.msra.mxu0 0.0
        %1029 = vmatprep.subr.mxu0 0.0
        %1030 = vmatpush1.msra.mxu0 %v969
        %1031 = vmatprep.subr.mxu0 0.0
        %1032 = vmatpush1.msra.mxu0 %v968
        %1033 = vmatprep.subr.mxu0 0.0
        %1034 = vmatpush2.msra.mxu0 0.0
        %1035 = vmatprep.subr.mxu0 0.0
        %1036 = vmatpush2.msra.mxu0 0.0
        %1037 = vmatprep.subr.mxu0 0.0
        %1038 = vmatpush2.msra.mxu0 0.0
        %1039 = vmatprep.subr.mxu0 0.0
        %1040 = vmatpush2.msra.mxu0 0.0
        %1041 = vmatprep.subr.mxu0 0.0
        %1042 = vmatpush2.msra.mxu0 0.0
        %1043 = vmatprep.subr.mxu0 0.0
        %1044 = vmatpush2.msra.mxu0 0.0
        %1045 = vmatprep.subr.mxu0 0.0
        %1046 = vmatpush2.msra.mxu0 0.0
        %1047 = vmatprep.subr.mxu0 0.0
        %1048 = vmatpush2.msra.mxu0 0.0
        %1049 = vmatprep.subr.mxu0 0.0
        %1050 = vmatpush2.msra.mxu0 0.0
        %1051 = vmatprep.subr.mxu0 0.0
        %1052 = vmatpush2.msra.mxu0 0.0
        %1053 = vmatprep.subr.mxu0 0.0
        %1054 = vmatpush2.msra.mxu0 0.0
        %1055 = vmatprep.subr.mxu0 0.0
        %1056 = vmatpush2.msra.mxu0 0.0
        %1057 = vmatprep.subr.mxu0 0.0
        %1058 = vmatpush2.msra.mxu0 0.0
        %1059 = vmatprep.subr.mxu0 0.0
        %1060 = vmatpush2.msra.mxu0 0.0
        %1061 = vmatprep.subr.mxu0 0.0
        %1062 = vmatpush2.msra.mxu0 0.0
        %1063 = vmatprep.subr.mxu0 0.0
        %1064 = vmatpush2.msra.mxu0 0.0
        %1065 = vmatprep.mubr.f32.mxu0 0.0
        %1066 = vmatmul.mubr.f32.gmra.mxu0 %v978
        %v1067 = vpop.f32.mrf.mxu0
        %v1068 = vadd.f32 %v975, %v1067
        %v1069 = vpop.f32.mrf.mxu0
        %1070 = vmatprep.mubr.f32.mxu0 0.0
        %1071 = vmatmul.mubr.f32.gmra.mxu0 %v981
        %v1072 = vpop.f32.mrf.mxu0
        %v1073 = vadd.f32 %v975, %v1072
        %v1074 = vpop.f32.mrf.mxu0
        %1075 = vmatprep.mubr.f32.mxu0 0.0
        %1076 = vmatmul.mubr.f32.gmra.mxu0 %v984
        %v1077 = vpop.f32.mrf.mxu0
        %v1078 = vadd.f32 %v975, %v1077
        %v1079 = vpop.f32.mrf.mxu0
        %1080 = vmatprep.mubr.f32.mxu0 0.0
        %1081 = vmatmul.mubr.f32.gmra.mxu0 %v987
        %v1082 = vpop.f32.mrf.mxu0
        %v1083 = vadd.f32 %v975, %v1082
        %v1084 = vpop.f32.mrf.mxu0
        %1085 = vmatprep.mubr.f32.mxu0 0.0
        %1086 = vmatmul.mubr.f32.gmra.mxu0 %v990
        %v1087 = vpop.f32.mrf.mxu0
        %v1088 = vadd.f32 %v975, %v1087
        %v1089 = vpop.f32.mrf.mxu0
        %1090 = vmatprep.mubr.f32.mxu0 0.0
        %1091 = vmatmul.mubr.f32.gmra.mxu0 %v993
        %v1092 = vpop.f32.mrf.mxu0
        %v1093 = vadd.f32 %v975, %v1092
        %v1094 = vpop.f32.mrf.mxu0
        %1095 = vmatprep.mubr.f32.mxu0 0.0
        %1096 = vmatmul.mubr.f32.gmra.mxu0 %v996
        %v1097 = vpop.f32.mrf.mxu0
        %v1098 = vadd.f32 %v975, %v1097
        %v1099 = vpop.f32.mrf.mxu0
        %1100 = vmatprep.mubr.f32.mxu0 0.0
        %1101 = vmatmul.mubr.f32.gmra.mxu0 %v999
        %v1102 = vpop.f32.mrf.mxu0
        %v1103 = vadd.f32 %v975, %v1102
        %v1104 = vpop.f32.mrf.mxu0
        %1105 = vdwg.mxu0
        %v1106 = vld [vmem:[#allocation2] sm:$0xff]
        %v1108 = vcombine.high %v959, %v959
        %v1110 = vunpack.c.l.s4 1966171168
        %v1111 = vunpack.c.0.s8 %v1110
        %v1112 = vlaneseq
        %v1113 = vshrl.u32 %v1112, 7
        %v1114 = vsub.s32 %v1111, %v1113
        %v1115 = vrot.slane %v959, %v1114
        %v1117 = vunpack.c.l.s4 1966171168
        %v1118 = vunpack.c.0.s8 %v1117
        %v1119 = vlaneseq
        %v1120 = vshrl.u32 %v1119, 7
        %v1121 = vsub.s32 %v1118, %v1120
        %v1122 = vrot.slane %v1108, %v1121
        %v1123 = vcombine.high %v1115, %v1115
        %v1124 = vcombine.high %v1122, %v1122
        %v1126 = vunpack.c.l.s4 1966171168
        %v1127 = vunpack.c.0.s8 %v1126
        %v1128 = vlaneseq
        %v1129 = vshrl.u32 %v1128, 7
        %v1130 = vsub.s32 %v1127, %v1129
        %v1131 = vrot.slane %v1115, %v1130
        %v1133 = vunpack.c.l.s4 1966171168
        %v1134 = vunpack.c.0.s8 %v1133
        %v1135 = vlaneseq
        %v1136 = vshrl.u32 %v1135, 7
        %v1137 = vsub.s32 %v1134, %v1136
        %v1138 = vrot.slane %v1122, %v1137
        %v1140 = vunpack.c.l.s4 1966171168
        %v1141 = vunpack.c.0.s8 %v1140
        %v1142 = vlaneseq
        %v1143 = vshrl.u32 %v1142, 7
        %v1144 = vsub.s32 %v1141, %v1143
        %v1145 = vrot.slane %v1123, %v1144
        %v1147 = vunpack.c.l.s4 1966171168
        %v1148 = vunpack.c.0.s8 %v1147
        %v1149 = vlaneseq
        %v1150 = vshrl.u32 %v1149, 7
        %v1151 = vsub.s32 %v1148, %v1150
        %v1152 = vrot.slane %v1124, %v1151
        %v1153 = vcombine.high %v1131, %v1131
        %v1154 = vcombine.high %v1138, %v1138
        %v1155 = vcombine.high %v1145, %v1145
        %v1156 = vcombine.high %v1152, %v1152
        %v1157 = vlaneseq
        %v1158 = vshrl.u32 %v1157, 7
        %v1159 = vsub.s32 0, %v1158
        %v1160 = vrot.slane %v1131, %v1159
        %v1161 = vlaneseq
        %v1162 = vshrl.u32 %v1161, 7
        %v1163 = vsub.s32 0, %v1162
        %v1164 = vrot.slane %v1145, %v1163
        %v1165 = vlaneseq
        %v1166 = vshrl.u32 %v1165, 7
        %v1167 = vsub.s32 0, %v1166
        %v1168 = vrot.slane %v1153, %v1167
        %v1169 = vlaneseq
        %v1170 = vshrl.u32 %v1169, 7
        %v1171 = vsub.s32 0, %v1170
        %v1172 = vrot.slane %v1155, %v1171
        %v1173 = vlaneseq
        %v1174 = vshrl.u32 %v1173, 7
        %v1175 = vsub.s32 0, %v1174
        %v1176 = vrot.slane %v1138, %v1175
        %v1177 = vlaneseq
        %v1178 = vshrl.u32 %v1177, 7
        %v1179 = vsub.s32 0, %v1178
        %v1180 = vrot.slane %v1152, %v1179
        %v1181 = vlaneseq
        %v1182 = vshrl.u32 %v1181, 7
        %v1183 = vsub.s32 0, %v1182
        %v1184 = vrot.slane %v1154, %v1183
        %v1185 = vlaneseq
        %v1186 = vshrl.u32 %v1185, 7
        %v1187 = vsub.s32 0, %v1186
        %v1188 = vrot.slane %v1156, %v1187
        %1189 = vrot.lane.b32.xlu0 %v1160, 64
        %v1190 = vpop.permute.xlu0 %1189
        %1191 = vrot.lane.b32.xlu0 %v1164, 64
        %v1192 = vpop.permute.xlu0 %1191
        %1193 = vrot.lane.b32.xlu0 %v1168, 64
        %v1194 = vpop.permute.xlu0 %1193
        %1195 = vrot.lane.b32.xlu0 %v1172, 64
        %v1196 = vpop.permute.xlu0 %1195
        %1197 = vrot.lane.b32.xlu0 %v1176, 64
        %v1198 = vpop.permute.xlu0 %1197
        %1199 = vrot.lane.b32.xlu0 %v1180, 64
        %v1200 = vpop.permute.xlu0 %1199
        %1201 = vrot.lane.b32.xlu0 %v1184, 64
        %v1202 = vpop.permute.xlu0 %1201
        %1203 = vrot.lane.b32.xlu0 %v1188, 64
        %v1204 = vpop.permute.xlu0 %1203
        %v1213 = vadd.f32 %v1068, %v1190
        %v1214 = vadd.f32 %v1073, %v1192
        %v1215 = vadd.f32 %v1078, %v1194
        %v1216 = vadd.f32 %v1083, %v1196
        %v1217 = vadd.f32 %v1088, %v1198
        %v1218 = vadd.f32 %v1093, %v1200
        %v1219 = vadd.f32 %v1098, %v1202
        %v1220 = vadd.f32 %v1103, %v1204
        %1222 = vrot.lane.b32.xlu0 %v1106, 64
        %v1223 = vpop.permute.xlu0 %1222
        %v1225 = vadd.f32 %v1213, %v1223
        %v1226 = vadd.f32 %v1214, %v1223
        %v1227 = vadd.f32 %v1215, %v1223
        %v1228 = vadd.f32 %v1216, %v1223
        %v1229 = vadd.f32 %v1217, %v1223
        %v1230 = vadd.f32 %v1218, %v1223
        %v1231 = vadd.f32 %v1219, %v1223
        %v1232 = vadd.f32 %v1220, %v1223
        %vm1233 = vcmp.ge.f32.partialorder %v1225, 0.0
        %vm1234 = vcmp.ge.f32.partialorder %v1226, 0.0
        %vm1235 = vcmp.ge.f32.partialorder %v1227, 0.0
        %vm1236 = vcmp.ge.f32.partialorder %v1228, 0.0
        %vm1237 = vcmp.ge.f32.partialorder %v1229, 0.0
        %vm1238 = vcmp.ge.f32.partialorder %v1230, 0.0
        %vm1239 = vcmp.ge.f32.partialorder %v1231, 0.0
        %vm1240 = vcmp.ge.f32.partialorder %v1232, 0.0
        %v1241 = vmul.f32 %v1225, 0.2
        %v1242 = vmul.f32 %v1226, 0.2
        %v1243 = vmul.f32 %v1227, 0.2
        %v1244 = vmul.f32 %v1228, 0.2
        %v1245 = vmul.f32 %v1229, 0.2
        %v1246 = vmul.f32 %v1230, 0.2
        %v1247 = vmul.f32 %v1231, 0.2
        %v1248 = vmul.f32 %v1232, 0.2
        %v1249 = vsel %vm1233, %v1225, %v1241
        %v1250 = vsel %vm1234, %v1226, %v1242
        %v1251 = vsel %vm1235, %v1227, %v1243
        %v1252 = vsel %vm1236, %v1228, %v1244
        %v1253 = vsel %vm1237, %v1229, %v1245
        %v1254 = vsel %vm1238, %v1230, %v1246
        %v1255 = vsel %vm1239, %v1231, %v1247
        %v1256 = vsel %vm1240, %v1232, %v1248
        %vm1257 = vcmask 31744
        %v1258 = vsel %vm1257, %v1249, -inf
        %v1259 = vrot.slane %v1258, 4
        %v1260 = vmax.f32 %v1258, %v1259
        %v1261 = vrot.slane %v1260, 2
        %v1262 = vmax.f32 %v1260, %v1261
        %v1263 = vrot.slane %v1262, 1
        %v1264 = vmax.f32 %v1262, %v1263
        %v1265 = vsel %vm1257, %v1250, -inf
        %v1266 = vrot.slane %v1265, 4
        %v1267 = vmax.f32 %v1265, %v1266
        %v1268 = vrot.slane %v1267, 2
        %v1269 = vmax.f32 %v1267, %v1268
        %v1270 = vrot.slane %v1269, 1
        %v1271 = vmax.f32 %v1269, %v1270
        %v1272 = vsel %vm1257, %v1251, -inf
        %v1273 = vrot.slane %v1272, 4
        %v1274 = vmax.f32 %v1272, %v1273
        %v1275 = vrot.slane %v1274, 2
        %v1276 = vmax.f32 %v1274, %v1275
        %v1277 = vrot.slane %v1276, 1
        %v1278 = vmax.f32 %v1276, %v1277
        %v1279 = vsel %vm1257, %v1252, -inf
        %v1280 = vrot.slane %v1279, 4
        %v1281 = vmax.f32 %v1279, %v1280
        %v1282 = vrot.slane %v1281, 2
        %v1283 = vmax.f32 %v1281, %v1282
        %v1284 = vrot.slane %v1283, 1
        %v1285 = vmax.f32 %v1283, %v1284
        %v1286 = vsel %vm1257, %v1253, -inf
        %v1287 = vrot.slane %v1286, 4
        %v1288 = vmax.f32 %v1286, %v1287
        %v1289 = vrot.slane %v1288, 2
        %v1290 = vmax.f32 %v1288, %v1289
        %v1291 = vrot.slane %v1290, 1
        %v1292 = vmax.f32 %v1290, %v1291
        %v1293 = vsel %vm1257, %v1254, -inf
        %v1294 = vrot.slane %v1293, 4
        %v1295 = vmax.f32 %v1293, %v1294
        %v1296 = vrot.slane %v1295, 2
        %v1297 = vmax.f32 %v1295, %v1296
        %v1298 = vrot.slane %v1297, 1
        %v1299 = vmax.f32 %v1297, %v1298
        %v1300 = vsel %vm1257, %v1255, -inf
        %v1301 = vrot.slane %v1300, 4
        %v1302 = vmax.f32 %v1300, %v1301
        %v1303 = vrot.slane %v1302, 2
        %v1304 = vmax.f32 %v1302, %v1303
        %v1305 = vrot.slane %v1304, 1
        %v1306 = vmax.f32 %v1304, %v1305
        %v1307 = vsel %vm1257, %v1256, -inf
        %v1308 = vrot.slane %v1307, 4
        %v1309 = vmax.f32 %v1307, %v1308
        %v1310 = vrot.slane %v1309, 2
        %v1311 = vmax.f32 %v1309, %v1310
        %v1312 = vrot.slane %v1311, 1
        %v1313 = vmax.f32 %v1311, %v1312
        %v1314 = vsub.f32 %v1249, %v1264
        %v1315 = vsub.f32 %v1250, %v1271
        %v1316 = vsub.f32 %v1251, %v1278
        %v1317 = vsub.f32 %v1252, %v1285
        %v1318 = vsub.f32 %v1253, %v1292
        %v1319 = vsub.f32 %v1254, %v1299
        %v1320 = vsub.f32 %v1255, %v1306
        %v1321 = vsub.f32 %v1256, %v1313
        %v1322 = vmul.f32 %v1314, 1.442695
        %v1323 = vpow.pop %v1322
        %v1324 = vmul.f32 %v1315, 1.442695
        %v1325 = vpow.pop %v1324
        %v1326 = vmul.f32 %v1316, 1.442695
        %v1327 = vpow.pop %v1326
        %v1328 = vmul.f32 %v1317, 1.442695
        %v1329 = vpow.pop %v1328
        %v1330 = vmul.f32 %v1318, 1.442695
        %v1331 = vpow.pop %v1330
        %v1332 = vmul.f32 %v1319, 1.442695
        %v1333 = vpow.pop %v1332
        %v1334 = vmul.f32 %v1320, 1.442695
        %v1335 = vpow.pop %v1334
        %v1336 = vmul.f32 %v1321, 1.442695
        %v1337 = vpow.pop %v1336
        %v1338 = vsel %vm1257, %v1323, 0.0
        %v1339 = vrot.slane %v1338, 4
        %v1340 = vadd.f32 %v1338, %v1339
        %v1341 = vrot.slane %v1340, 2
        %v1342 = vadd.f32 %v1340, %v1341
        %v1343 = vrot.slane %v1342, 1
        %v1344 = vadd.f32 %v1342, %v1343
        %v1345 = vsel %vm1257, %v1325, 0.0
        %v1346 = vrot.slane %v1345, 4
        %v1347 = vadd.f32 %v1345, %v1346
        %v1348 = vrot.slane %v1347, 2
        %v1349 = vadd.f32 %v1347, %v1348
        %v1350 = vrot.slane %v1349, 1
        %v1351 = vadd.f32 %v1349, %v1350
        %v1352 = vsel %vm1257, %v1327, 0.0
        %v1353 = vrot.slane %v1352, 4
        %v1354 = vadd.f32 %v1352, %v1353
        %v1355 = vrot.slane %v1354, 2
        %v1356 = vadd.f32 %v1354, %v1355
        %v1357 = vrot.slane %v1356, 1
        %v1358 = vadd.f32 %v1356, %v1357
        %v1359 = vsel %vm1257, %v1329, 0.0
        %v1360 = vrot.slane %v1359, 4
        %v1361 = vadd.f32 %v1359, %v1360
        %v1362 = vrot.slane %v1361, 2
        %v1363 = vadd.f32 %v1361, %v1362
        %v1364 = vrot.slane %v1363, 1
        %v1365 = vadd.f32 %v1363, %v1364
        %v1366 = vsel %vm1257, %v1331, 0.0
        %v1367 = vrot.slane %v1366, 4
        %v1368 = vadd.f32 %v1366, %v1367
        %v1369 = vrot.slane %v1368, 2
        %v1370 = vadd.f32 %v1368, %v1369
        %v1371 = vrot.slane %v1370, 1
        %v1372 = vadd.f32 %v1370, %v1371
        %v1373 = vsel %vm1257, %v1333, 0.0
        %v1374 = vrot.slane %v1373, 4
        %v1375 = vadd.f32 %v1373, %v1374
        %v1376 = vrot.slane %v1375, 2
        %v1377 = vadd.f32 %v1375, %v1376
        %v1378 = vrot.slane %v1377, 1
        %v1379 = vadd.f32 %v1377, %v1378
        %v1380 = vsel %vm1257, %v1335, 0.0
        %v1381 = vrot.slane %v1380, 4
        %v1382 = vadd.f32 %v1380, %v1381
        %v1383 = vrot.slane %v1382, 2
        %v1384 = vadd.f32 %v1382, %v1383
        %v1385 = vrot.slane %v1384, 1
        %v1386 = vadd.f32 %v1384, %v1385
        %v1387 = vsel %vm1257, %v1337, 0.0
        %v1388 = vrot.slane %v1387, 4
        %v1389 = vadd.f32 %v1387, %v1388
        %v1390 = vrot.slane %v1389, 2
        %v1391 = vadd.f32 %v1389, %v1390
        %v1392 = vrot.slane %v1391, 1
        %v1393 = vadd.f32 %v1391, %v1392
        %v1394 = vrcp.pop %v1344
        %v1395 = vrcp.pop %v1351
        %v1396 = vrcp.pop %v1358
        %v1397 = vrcp.pop %v1365
        %v1398 = vrcp.pop %v1372
        %v1399 = vrcp.pop %v1379
        %v1400 = vrcp.pop %v1386
        %v1401 = vrcp.pop %v1393
        %v1402 = vmul.f32 %v1323, %v1394
        %v1403 = vmul.f32 %v1325, %v1395
        %v1404 = vmul.f32 %v1327, %v1396
        %v1405 = vmul.f32 %v1329, %v1397
        %v1406 = vmul.f32 %v1331, %v1398
        %v1407 = vmul.f32 %v1333, %v1399
        %v1408 = vmul.f32 %v1335, %v1400
        %v1409 = vmul.f32 %v1337, %v1401
        %v1410 = vcombine.low %v1402, %v1404
        %v1411 = vcombine.high %v1402, %v1404
        %v1413 = vunpack.c.l.s4 1983009808
        %v1414 = vunpack.c.0.s8 %v1413
        %v1415 = vlaneseq
        %v1416 = vshrl.u32 %v1415, 7
        %v1417 = vsub.s32 %v1414, %v1416
        %v1418 = vrot.slane %v1410, %v1417
        %v1420 = vunpack.c.l.s4 1983009808
        %v1421 = vunpack.c.0.s8 %v1420
        %v1422 = vlaneseq
        %v1423 = vshrl.u32 %v1422, 7
        %v1424 = vsub.s32 %v1421, %v1423
        %v1425 = vrot.slane %v1411, %v1424
        %v1426 = vcombine.low %v1403, %v1405
        %v1427 = vcombine.high %v1403, %v1405
        %v1429 = vunpack.c.l.s4 1983009808
        %v1430 = vunpack.c.0.s8 %v1429
        %v1431 = vlaneseq
        %v1432 = vshrl.u32 %v1431, 7
        %v1433 = vsub.s32 %v1430, %v1432
        %v1434 = vrot.slane %v1426, %v1433
        %v1436 = vunpack.c.l.s4 1983009808
        %v1437 = vunpack.c.0.s8 %v1436
        %v1438 = vlaneseq
        %v1439 = vshrl.u32 %v1438, 7
        %v1440 = vsub.s32 %v1437, %v1439
        %v1441 = vrot.slane %v1427, %v1440
        %v1442 = vcombine.low %v1406, %v1408
        %v1443 = vcombine.high %v1406, %v1408
        %v1445 = vunpack.c.l.s4 1983009808
        %v1446 = vunpack.c.0.s8 %v1445
        %v1447 = vlaneseq
        %v1448 = vshrl.u32 %v1447, 7
        %v1449 = vsub.s32 %v1446, %v1448
        %v1450 = vrot.slane %v1442, %v1449
        %v1452 = vunpack.c.l.s4 1983009808
        %v1453 = vunpack.c.0.s8 %v1452
        %v1454 = vlaneseq
        %v1455 = vshrl.u32 %v1454, 7
        %v1456 = vsub.s32 %v1453, %v1455
        %v1457 = vrot.slane %v1443, %v1456
        %v1458 = vcombine.low %v1407, %v1409
        %v1459 = vcombine.high %v1407, %v1409
        %v1461 = vunpack.c.l.s4 1983009808
        %v1462 = vunpack.c.0.s8 %v1461
        %v1463 = vlaneseq
        %v1464 = vshrl.u32 %v1463, 7
        %v1465 = vsub.s32 %v1462, %v1464
        %v1466 = vrot.slane %v1458, %v1465
        %v1468 = vunpack.c.l.s4 1983009808
        %v1469 = vunpack.c.0.s8 %v1468
        %v1470 = vlaneseq
        %v1471 = vshrl.u32 %v1470, 7
        %v1472 = vsub.s32 %v1469, %v1471
        %v1473 = vrot.slane %v1459, %v1472
        %v1474 = vcombine.low %v1418, %v1434
        %v1475 = vcombine.high %v1418, %v1434
        %v1477 = vunpack.c.l.s4 1934713408
        %v1478 = vunpack.c.0.s8 %v1477
        %v1479 = vlaneseq
        %v1480 = vshrl.u32 %v1479, 7
        %v1481 = vsub.s32 %v1478, %v1480
        %v1482 = vrot.slane %v1474, %v1481
        %v1484 = vunpack.c.l.s4 1934713408
        %v1485 = vunpack.c.0.s8 %v1484
        %v1486 = vlaneseq
        %v1487 = vshrl.u32 %v1486, 7
        %v1488 = vsub.s32 %v1485, %v1487
        %v1489 = vrot.slane %v1475, %v1488
        %v1490 = vcombine.low %v1425, %v1441
        %v1491 = vcombine.high %v1425, %v1441
        %v1493 = vunpack.c.l.s4 1934713408
        %v1494 = vunpack.c.0.s8 %v1493
        %v1495 = vlaneseq
        %v1496 = vshrl.u32 %v1495, 7
        %v1497 = vsub.s32 %v1494, %v1496
        %v1498 = vrot.slane %v1490, %v1497
        %v1500 = vunpack.c.l.s4 1934713408
        %v1501 = vunpack.c.0.s8 %v1500
        %v1502 = vlaneseq
        %v1503 = vshrl.u32 %v1502, 7
        %v1504 = vsub.s32 %v1501, %v1503
        %v1505 = vrot.slane %v1491, %v1504
        %v1506 = vcombine.low %v1450, %v1466
        %v1507 = vcombine.high %v1450, %v1466
        %v1509 = vunpack.c.l.s4 1934713408
        %v1510 = vunpack.c.0.s8 %v1509
        %v1511 = vlaneseq
        %v1512 = vshrl.u32 %v1511, 7
        %v1513 = vsub.s32 %v1510, %v1512
        %v1514 = vrot.slane %v1506, %v1513
        %v1516 = vunpack.c.l.s4 1934713408
        %v1517 = vunpack.c.0.s8 %v1516
        %v1518 = vlaneseq
        %v1519 = vshrl.u32 %v1518, 7
        %v1520 = vsub.s32 %v1517, %v1519
        %v1521 = vrot.slane %v1507, %v1520
        %v1522 = vcombine.low %v1457, %v1473
        %v1523 = vcombine.high %v1457, %v1473
        %v1525 = vunpack.c.l.s4 1934713408
        %v1526 = vunpack.c.0.s8 %v1525
        %v1527 = vlaneseq
        %v1528 = vshrl.u32 %v1527, 7
        %v1529 = vsub.s32 %v1526, %v1528
        %v1530 = vrot.slane %v1522, %v1529
        %v1532 = vunpack.c.l.s4 1934713408
        %v1533 = vunpack.c.0.s8 %v1532
        %v1534 = vlaneseq
        %v1535 = vshrl.u32 %v1534, 7
        %v1536 = vsub.s32 %v1533, %v1535
        %v1537 = vrot.slane %v1523, %v1536
        %v1538 = vcombine.low %v1482, %v1514
        %v1539 = vcombine.high %v1482, %v1514
        %v1540 = vcombine.low %v1489, %v1521
        %v1541 = vcombine.high %v1489, %v1521
        %v1542 = vcombine.low %v1498, %v1530
        %v1543 = vcombine.high %v1498, %v1530
        %v1544 = vcombine.low %v1505, %v1537
        %v1545 = vcombine.high %v1505, %v1537
        %1547 = vrot.lane.b32.xlu0 %v1539, 4
        %v1548 = vpop.permute.xlu0 %1547
        %1551 = vrot.lane.b32.xlu0 %v1540, 8
        %v1552 = vpop.permute.xlu0 %1551
        %1555 = vrot.lane.b32.xlu0 %v1541, 12
        %v1556 = vpop.permute.xlu0 %1555
        %1559 = vrot.lane.b32.xlu0 %v1542, 16
        %v1560 = vpop.permute.xlu0 %1559
        %1563 = vrot.lane.b32.xlu0 %v1543, 20
        %v1564 = vpop.permute.xlu0 %1563
        %1567 = vrot.lane.b32.xlu0 %v1544, 24
        %v1568 = vpop.permute.xlu0 %1567
        %1571 = vrot.lane.b32.xlu0 %v1545, 28
        %v1572 = vpop.permute.xlu0 %1571
        %v1574 = vsel %vm1257, %v1538, %v1548
        %vm1575 = vcmask 64512
        %v1576 = vsel %vm1575, %v1574, %v1552
        %vm1577 = vcmask 97280
        %v1578 = vsel %vm1577, %v1576, %v1556
        %v1579 = vsel %vm804, %v1578, %v1560
        %vm1580 = vcmask 162816
        %v1581 = vsel %vm1580, %v1579, %v1564
        %vm1582 = vcmask 195584
        %v1583 = vsel %vm1582, %v1581, %v1568
        %vm1584 = vcmask 228352
        %v1585 = vsel %vm1584, %v1583, %v1572
        %v1586 = vld [vmem:[#allocation3] sm:$0xff]
        %v1587 = vld [vmem:[#allocation3 + $0x8] sm:$0xff]
        %v1588 = vld [vmem:[#allocation3 + $0x10] sm:$0xff]
        %v1589 = vld [vmem:[#allocation3 + $0x18] sm:$0xff]
        %v1591 = vsel %vm878, %v1585, 0
        %1593 = vmatprep.subr.mxu0 0.0
        %1594 = vmatpush1.msra.mxu0 0.0
        %1595 = vmatprep.subr.mxu0 0.0
        %1596 = vmatpush1.msra.mxu0 0.0
        %1597 = vmatprep.subr.mxu0 0.0
        %1598 = vmatpush1.msra.mxu0 0.0
        %1599 = vmatprep.subr.mxu0 0.0
        %1600 = vmatpush1.msra.mxu0 0.0
        %1601 = vmatprep.subr.mxu0 0.0
        %1602 = vmatpush1.msra.mxu0 0.0
        %1603 = vmatprep.subr.mxu0 0.0
        %1604 = vmatpush1.msra.mxu0 0.0
        %1605 = vmatprep.subr.mxu0 0.0
        %1606 = vmatpush1.msra.mxu0 0.0
        %1607 = vmatprep.subr.mxu0 0.0
        %1608 = vmatpush1.msra.mxu0 0.0
        %1609 = vmatprep.subr.mxu0 0.0
        %1610 = vmatpush1.msra.mxu0 0.0
        %1611 = vmatprep.subr.mxu0 0.0
        %1612 = vmatpush1.msra.mxu0 0.0
        %1613 = vmatprep.subr.mxu0 0.0
        %1614 = vmatpush1.msra.mxu0 0.0
        %1615 = vmatprep.subr.mxu0 0.0
        %1616 = vmatpush1.msra.mxu0 0.0
        %1617 = vmatprep.subr.mxu0 0.0
        %1618 = vmatpush1.msra.mxu0 %v1589
        %1619 = vmatprep.subr.mxu0 0.0
        %1620 = vmatpush1.msra.mxu0 %v1588
        %1621 = vmatprep.subr.mxu0 0.0
        %1622 = vmatpush1.msra.mxu0 %v1587
        %1623 = vmatprep.subr.mxu0 0.0
        %1624 = vmatpush1.msra.mxu0 %v1586
        %1625 = vmatprep.subr.mxu0 0.0
        %1626 = vmatpush2.msra.mxu0 0.0
        %1627 = vmatprep.subr.mxu0 0.0
        %1628 = vmatpush2.msra.mxu0 0.0
        %1629 = vmatprep.subr.mxu0 0.0
        %1630 = vmatpush2.msra.mxu0 0.0
        %1631 = vmatprep.subr.mxu0 0.0
        %1632 = vmatpush2.msra.mxu0 0.0
        %1633 = vmatprep.subr.mxu0 0.0
        %1634 = vmatpush2.msra.mxu0 0.0
        %1635 = vmatprep.subr.mxu0 0.0
        %1636 = vmatpush2.msra.mxu0 0.0
        %1637 = vmatprep.subr.mxu0 0.0
        %1638 = vmatpush2.msra.mxu0 0.0
        %1639 = vmatprep.subr.mxu0 0.0
        %1640 = vmatpush2.msra.mxu0 0.0
        %1641 = vmatprep.subr.mxu0 0.0
        %1642 = vmatpush2.msra.mxu0 0.0
        %1643 = vmatprep.subr.mxu0 0.0
        %1644 = vmatpush2.msra.mxu0 0.0
        %1645 = vmatprep.subr.mxu0 0.0
        %1646 = vmatpush2.msra.mxu0 0.0
        %1647 = vmatprep.subr.mxu0 0.0
        %1648 = vmatpush2.msra.mxu0 0.0
        %1649 = vmatprep.subr.mxu0 0.0
        %1650 = vmatpush2.msra.mxu0 0.0
        %1651 = vmatprep.subr.mxu0 0.0
        %1652 = vmatpush2.msra.mxu0 0.0
        %1653 = vmatprep.subr.mxu0 0.0
        %1654 = vmatpush2.msra.mxu0 0.0
        %1655 = vmatprep.subr.mxu0 0.0
        %1656 = vmatpush2.msra.mxu0 0.0
        %1657 = vmatprep.mubr.f32.mxu0 0.0
        %1658 = vmatmul.mubr.f32.gmra.mxu0 %v1591
        %v1659 = vpop.f32.mrf.mxu0
        %v1660 = vadd.f32 0.0, %v1659
        %v1661 = vpop.f32.mrf.mxu0
        %1662 = vdwg.mxu0
        %vm1663 = vcmp.ge.f32.partialorder %v1660, 0.0
        %v1664 = vmul.f32 %v1660, 0.2
        %v1665 = vsel %vm1663, %v1660, %v1664
        %v1666 = vld [vmem:[%s12] sm:$0xff]
        %v1667 = vld [vmem:[%s12 + $0x8] sm:$0xff]
        %v1668 = vld [vmem:[%s12 + $0x10] sm:$0xff]
        %v1669 = vld [vmem:[%s12 + $0x18] sm:$0xff]
        %v1671 = vsel %vm878, %v1665, 0
        %v1674 = vsel %vm878, %v1666, 0
        %v1677 = vsel %vm878, %v1667, 0
        %v1680 = vsel %vm878, %v1668, 0
        %v1683 = vsel %vm878, %v1669, 0
        %1685 = vmatprep.subr.mxu0 0.0
        %1686 = vmatpush1.xpose.msra.mxu0 0.0
        %1687 = vmatprep.subr.mxu0 0.0
        %1688 = vmatpush1.xpose.msra.mxu0 0.0
        %1689 = vmatprep.subr.mxu0 0.0
        %1690 = vmatpush1.xpose.msra.mxu0 0.0
        %1691 = vmatprep.subr.mxu0 0.0
        %1692 = vmatpush1.xpose.msra.mxu0 0.0
        %1693 = vmatprep.subr.mxu0 0.0
        %1694 = vmatpush1.xpose.msra.mxu0 0.0
        %1695 = vmatprep.subr.mxu0 0.0
        %1696 = vmatpush1.xpose.msra.mxu0 0.0
        %1697 = vmatprep.subr.mxu0 0.0
        %1698 = vmatpush1.xpose.msra.mxu0 0.0
        %1699 = vmatprep.subr.mxu0 0.0
        %1700 = vmatpush1.xpose.msra.mxu0 0.0
        %1701 = vmatprep.subr.mxu0 0.0
        %1702 = vmatpush1.xpose.msra.mxu0 0.0
        %1703 = vmatprep.subr.mxu0 0.0
        %1704 = vmatpush1.xpose.msra.mxu0 0.0
        %1705 = vmatprep.subr.mxu0 0.0
        %1706 = vmatpush1.xpose.msra.mxu0 0.0
        %1707 = vmatprep.subr.mxu0 0.0
        %1708 = vmatpush1.xpose.msra.mxu0 0.0
        %1709 = vmatprep.subr.mxu0 0.0
        %1710 = vmatpush1.xpose.msra.mxu0 %v1683
        %1711 = vmatprep.subr.mxu0 0.0
        %1712 = vmatpush1.xpose.msra.mxu0 %v1680
        %1713 = vmatprep.subr.mxu0 0.0
        %1714 = vmatpush1.xpose.msra.mxu0 %v1677
        %1715 = vmatprep.subr.mxu0 0.0
        %1716 = vmatpush1.xpose.msra.mxu0 %v1674
        %1717 = vmatprep.subr.mxu0 0.0
        %1718 = vmatpush2.xpose.msra.mxu0 0.0
        %1719 = vmatprep.subr.mxu0 0.0
        %1720 = vmatpush2.xpose.msra.mxu0 0.0
        %1721 = vmatprep.subr.mxu0 0.0
        %1722 = vmatpush2.xpose.msra.mxu0 0.0
        %1723 = vmatprep.subr.mxu0 0.0
        %1724 = vmatpush2.xpose.msra.mxu0 0.0
        %1725 = vmatprep.subr.mxu0 0.0
        %1726 = vmatpush2.xpose.msra.mxu0 0.0
        %1727 = vmatprep.subr.mxu0 0.0
        %1728 = vmatpush2.xpose.msra.mxu0 0.0
        %1729 = vmatprep.subr.mxu0 0.0
        %1730 = vmatpush2.xpose.msra.mxu0 0.0
        %1731 = vmatprep.subr.mxu0 0.0
        %1732 = vmatpush2.xpose.msra.mxu0 0.0
        %1733 = vmatprep.subr.mxu0 0.0
        %1734 = vmatpush2.xpose.msra.mxu0 0.0
        %1735 = vmatprep.subr.mxu0 0.0
        %1736 = vmatpush2.xpose.msra.mxu0 0.0
        %1737 = vmatprep.subr.mxu0 0.0
        %1738 = vmatpush2.xpose.msra.mxu0 0.0
        %1739 = vmatprep.subr.mxu0 0.0
        %1740 = vmatpush2.xpose.msra.mxu0 0.0
        %1741 = vmatprep.subr.mxu0 0.0
        %1742 = vmatpush2.xpose.msra.mxu0 0.0
        %1743 = vmatprep.subr.mxu0 0.0
        %1744 = vmatpush2.xpose.msra.mxu0 0.0
        %1745 = vmatprep.subr.mxu0 0.0
        %1746 = vmatpush2.xpose.msra.mxu0 0.0
        %1747 = vmatprep.subr.mxu0 0.0
        %1748 = vmatpush2.xpose.msra.mxu0 0.0
        %1749 = vmatprep.mubr.f32.mxu0 0.0
        %1750 = vmatmul.mubr.f32.gmra.mxu0 %v1671
        %v1751 = vpop.f32.mrf.mxu0
        %v1752 = vadd.f32 0.0, %v1751
        %v1753 = vpop.f32.mrf.mxu0
        %1754 = vdwg.mxu0
        %1756 = vrot.lane.b32.xlu0 %v1752, 32
        %v1757 = vpop.permute.xlu0 %1756
        %v1759 = vadd.f32 %v959, %v1757
        %1761 = vrot.lane.b32.xlu0 %v1759, 96
        %v1762 = vpop.permute.xlu0 %1761
        %1764 = vst.msk [vmem:[%s544] sm:$0xff] %vm878, %v1762
        %v1765 = vld [vmem:[#allocation4] sm:$0xff]
        %vm1766 = vcmask 64544
        %v1767 = vsel %vm1766, %v1249, -inf
        %v1768 = vsel %vm1766, %v1250, -inf
        %v1769 = vsel %vm1766, %v1251, -inf
        %v1770 = vsel %vm1766, %v1252, -inf
        %v1771 = vsel %vm1766, %v1253, -inf
        %v1772 = vmax.f32 %v1767, %v1771
        %v1773 = vsel %vm1766, %v1254, -inf
        %v1774 = vmax.f32 %v1768, %v1773
        %v1775 = vsel %vm1766, %v1255, -inf
        %v1776 = vmax.f32 %v1769, %v1775
        %v1777 = vsel %vm1766, %v1256, -inf
        %v1778 = vmax.f32 %v1770, %v1777
        %v1779 = vmax.f32 %v1772, %v1774
        %v1780 = vmax.f32 %v1776, %v1778
        %v1781 = vmax.f32 %v1779, %v1780
        %1783 = vrot.lane.b32.xlu0 %v1781, 124
        %v1784 = vpop.permute.xlu0 %1783
        %v1786 = vmax.f32 %v1765, %v1784
        %v1787 = vsub.f32 %v1765, %v1786
        %v1788 = vmul.f32 %v1787, 1.442695
        %v1789 = vpow.pop %v1788
        %1791 = vrot.lane.b32.xlu0 %v1786, 4
        %v1792 = vpop.permute.xlu0 %1791
        %v1794 = vsub.f32 %v1249, %v1792
        %v1795 = vsub.f32 %v1250, %v1792
        %v1796 = vsub.f32 %v1251, %v1792
        %v1797 = vsub.f32 %v1252, %v1792
        %v1798 = vsub.f32 %v1253, %v1792
        %v1799 = vsub.f32 %v1254, %v1792
        %v1800 = vsub.f32 %v1255, %v1792
        %v1801 = vsub.f32 %v1256, %v1792
        %v1802 = vmul.f32 %v1794, 1.442695
        %v1803 = vpow.pop %v1802
        %v1804 = vmul.f32 %v1795, 1.442695
        %v1805 = vpow.pop %v1804
        %v1806 = vmul.f32 %v1796, 1.442695
        %v1807 = vpow.pop %v1806
        %v1808 = vmul.f32 %v1797, 1.442695
        %v1809 = vpow.pop %v1808
        %v1810 = vmul.f32 %v1798, 1.442695
        %v1811 = vpow.pop %v1810
        %v1812 = vmul.f32 %v1799, 1.442695
        %v1813 = vpow.pop %v1812
        %v1814 = vmul.f32 %v1800, 1.442695
        %v1815 = vpow.pop %v1814
        %v1816 = vmul.f32 %v1801, 1.442695
        %v1817 = vpow.pop %v1816
        %v1818 = vld [vmem:[#allocation5] sm:$0xff]
        %v1819 = vmul.f32 %v1789, %v1818
        %v1820 = vsel %vm1766, %v1803, 0.0
        %v1821 = vsel %vm1766, %v1805, 0.0
        %v1822 = vadd.f32 %v1820, %v1821
        %v1823 = vsel %vm1766, %v1807, 0.0
        %v1824 = vadd.f32 %v1822, %v1823
        %v1825 = vsel %vm1766, %v1809, 0.0
        %v1826 = vadd.f32 %v1824, %v1825
        %v1827 = vsel %vm1766, %v1811, 0.0
        %v1828 = vadd.f32 %v1826, %v1827
        %v1829 = vsel %vm1766, %v1813, 0.0
        %v1830 = vadd.f32 %v1828, %v1829
        %v1831 = vsel %vm1766, %v1815, 0.0
        %v1832 = vadd.f32 %v1830, %v1831
        %v1833 = vsel %vm1766, %v1817, 0.0
        %v1834 = vadd.f32 %v1832, %v1833
        %1836 = vrot.lane.b32.xlu0 %v1834, 124
        %v1837 = vpop.permute.xlu0 %1836
        %v1839 = vadd.f32 %v1819, %v1837
        %1840 = vst.msk [vmem:[#allocation5] sm:$0xff] %vm1257, %v1839
        %1849 = vrot.lane.b32.xlu0 %v1803, 124
        %v1850 = vpop.permute.xlu0 %1849
        %1851 = vrot.lane.b32.xlu0 %v1805, 124
        %v1852 = vpop.permute.xlu0 %1851
        %1853 = vrot.lane.b32.xlu0 %v1807, 124
        %v1854 = vpop.permute.xlu0 %1853
        %1855 = vrot.lane.b32.xlu0 %v1809, 124
        %v1856 = vpop.permute.xlu0 %1855
        %1857 = vrot.lane.b32.xlu0 %v1811, 124
        %v1858 = vpop.permute.xlu0 %1857
        %1859 = vrot.lane.b32.xlu0 %v1813, 124
        %v1860 = vpop.permute.xlu0 %1859
        %1861 = vrot.lane.b32.xlu0 %v1815, 124
        %v1862 = vpop.permute.xlu0 %1861
        %1863 = vrot.lane.b32.xlu0 %v1817, 124
        %v1864 = vpop.permute.xlu0 %1863
        %v1873 = vcombine.low %v1850, %v1854
        %v1874 = vcombine.high %v1850, %v1854
        %v1876 = vunpack.c.l.s4 1983009808
        %v1877 = vunpack.c.0.s8 %v1876
        %v1878 = vlaneseq
        %v1879 = vshrl.u32 %v1878, 7
        %v1880 = vsub.s32 %v1877, %v1879
        %v1881 = vrot.slane %v1873, %v1880
        %v1883 = vunpack.c.l.s4 1983009808
        %v1884 = vunpack.c.0.s8 %v1883
        %v1885 = vlaneseq
        %v1886 = vshrl.u32 %v1885, 7
        %v1887 = vsub.s32 %v1884, %v1886
        %v1888 = vrot.slane %v1874, %v1887
        %v1889 = vcombine.low %v1852, %v1856
        %v1890 = vcombine.high %v1852, %v1856
        %v1892 = vunpack.c.l.s4 1983009808
        %v1893 = vunpack.c.0.s8 %v1892
        %v1894 = vlaneseq
        %v1895 = vshrl.u32 %v1894, 7
        %v1896 = vsub.s32 %v1893, %v1895
        %v1897 = vrot.slane %v1889, %v1896
        %v1899 = vunpack.c.l.s4 1983009808
        %v1900 = vunpack.c.0.s8 %v1899
        %v1901 = vlaneseq
        %v1902 = vshrl.u32 %v1901, 7
        %v1903 = vsub.s32 %v1900, %v1902
        %v1904 = vrot.slane %v1890, %v1903
        %v1905 = vcombine.low %v1858, %v1862
        %v1906 = vcombine.high %v1858, %v1862
        %v1908 = vunpack.c.l.s4 1983009808
        %v1909 = vunpack.c.0.s8 %v1908
        %v1910 = vlaneseq
        %v1911 = vshrl.u32 %v1910, 7
        %v1912 = vsub.s32 %v1909, %v1911
        %v1913 = vrot.slane %v1905, %v1912
        %v1915 = vunpack.c.l.s4 1983009808
        %v1916 = vunpack.c.0.s8 %v1915
        %v1917 = vlaneseq
        %v1918 = vshrl.u32 %v1917, 7
        %v1919 = vsub.s32 %v1916, %v1918
        %v1920 = vrot.slane %v1906, %v1919
        %v1921 = vcombine.low %v1860, %v1864
        %v1922 = vcombine.high %v1860, %v1864
        %v1924 = vunpack.c.l.s4 1983009808
        %v1925 = vunpack.c.0.s8 %v1924
        %v1926 = vlaneseq
        %v1927 = vshrl.u32 %v1926, 7
        %v1928 = vsub.s32 %v1925, %v1927
        %v1929 = vrot.slane %v1921, %v1928
        %v1931 = vunpack.c.l.s4 1983009808
        %v1932 = vunpack.c.0.s8 %v1931
        %v1933 = vlaneseq
        %v1934 = vshrl.u32 %v1933, 7
        %v1935 = vsub.s32 %v1932, %v1934
        %v1936 = vrot.slane %v1922, %v1935
        %v1937 = vcombine.low %v1881, %v1897
        %v1938 = vcombine.high %v1881, %v1897
        %v1940 = vunpack.c.l.s4 1934713408
        %v1941 = vunpack.c.0.s8 %v1940
        %v1942 = vlaneseq
        %v1943 = vshrl.u32 %v1942, 7
        %v1944 = vsub.s32 %v1941, %v1943
        %v1945 = vrot.slane %v1937, %v1944
        %v1947 = vunpack.c.l.s4 1934713408
        %v1948 = vunpack.c.0.s8 %v1947
        %v1949 = vlaneseq
        %v1950 = vshrl.u32 %v1949, 7
        %v1951 = vsub.s32 %v1948, %v1950
        %v1952 = vrot.slane %v1938, %v1951
        %v1953 = vcombine.low %v1888, %v1904
        %v1954 = vcombine.high %v1888, %v1904
        %v1956 = vunpack.c.l.s4 1934713408
        %v1957 = vunpack.c.0.s8 %v1956
        %v1958 = vlaneseq
        %v1959 = vshrl.u32 %v1958, 7
        %v1960 = vsub.s32 %v1957, %v1959
        %v1961 = vrot.slane %v1953, %v1960
        %v1963 = vunpack.c.l.s4 1934713408
        %v1964 = vunpack.c.0.s8 %v1963
        %v1965 = vlaneseq
        %v1966 = vshrl.u32 %v1965, 7
        %v1967 = vsub.s32 %v1964, %v1966
        %v1968 = vrot.slane %v1954, %v1967
        %v1969 = vcombine.low %v1913, %v1929
        %v1970 = vcombine.high %v1913, %v1929
        %v1972 = vunpack.c.l.s4 1934713408
        %v1973 = vunpack.c.0.s8 %v1972
        %v1974 = vlaneseq
        %v1975 = vshrl.u32 %v1974, 7
        %v1976 = vsub.s32 %v1973, %v1975
        %v1977 = vrot.slane %v1969, %v1976
        %v1979 = vunpack.c.l.s4 1934713408
        %v1980 = vunpack.c.0.s8 %v1979
        %v1981 = vlaneseq
        %v1982 = vshrl.u32 %v1981, 7
        %v1983 = vsub.s32 %v1980, %v1982
        %v1984 = vrot.slane %v1970, %v1983
        %v1985 = vcombine.low %v1920, %v1936
        %v1986 = vcombine.high %v1920, %v1936
        %v1988 = vunpack.c.l.s4 1934713408
        %v1989 = vunpack.c.0.s8 %v1988
        %v1990 = vlaneseq
        %v1991 = vshrl.u32 %v1990, 7
        %v1992 = vsub.s32 %v1989, %v1991
        %v1993 = vrot.slane %v1985, %v1992
        %v1995 = vunpack.c.l.s4 1934713408
        %v1996 = vunpack.c.0.s8 %v1995
        %v1997 = vlaneseq
        %v1998 = vshrl.u32 %v1997, 7
        %v1999 = vsub.s32 %v1996, %v1998
        %v2000 = vrot.slane %v1986, %v1999
        %v2001 = vcombine.low %v1945, %v1977
        %v2002 = vcombine.high %v1945, %v1977
        %v2003 = vcombine.low %v1952, %v1984
        %v2004 = vcombine.high %v1952, %v1984
        %v2005 = vcombine.low %v1961, %v1993
        %v2006 = vcombine.high %v1961, %v1993
        %v2007 = vcombine.low %v1968, %v2000
        %v2008 = vcombine.high %v1968, %v2000
        %2010 = vrot.lane.b32.xlu0 %v2002, 4
        %v2011 = vpop.permute.xlu0 %2010
        %2014 = vrot.lane.b32.xlu0 %v2003, 8
        %v2015 = vpop.permute.xlu0 %2014
        %2018 = vrot.lane.b32.xlu0 %v2004, 12
        %v2019 = vpop.permute.xlu0 %2018
        %2022 = vrot.lane.b32.xlu0 %v2005, 16
        %v2023 = vpop.permute.xlu0 %2022
        %2026 = vrot.lane.b32.xlu0 %v2006, 20
        %v2027 = vpop.permute.xlu0 %2026
        %2030 = vrot.lane.b32.xlu0 %v2007, 24
        %v2031 = vpop.permute.xlu0 %2030
        %2034 = vrot.lane.b32.xlu0 %v2008, 28
        %v2035 = vpop.permute.xlu0 %2034
        %v2037 = vsel %vm1257, %v2001, %v2011
        %v2038 = vsel %vm1575, %v2037, %v2015
        %v2039 = vsel %vm1577, %v2038, %v2019
        %v2040 = vsel %vm804, %v2039, %v2023
        %v2041 = vsel %vm1580, %v2040, %v2027
        %v2042 = vsel %vm1582, %v2041, %v2031
        %v2043 = vsel %vm1584, %v2042, %v2035
        %2044 = vxpose.xlu0.b32.start [1/16] %v2043, 128
        %2045 = vxpose.xlu0.b32.cont [2/16] 0.0, 128
        %2046 = vxpose.xlu0.b32.cont [3/16] 0.0, 128
        %2047 = vxpose.xlu0.b32.cont [4/16] 0.0, 128
        %2048 = vxpose.xlu0.b32.cont [5/16] 0.0, 128
        %2049 = vxpose.xlu0.b32.cont [6/16] 0.0, 128
        %2050 = vxpose.xlu0.b32.cont [7/16] 0.0, 128
        %2051 = vxpose.xlu0.b32.cont [8/16] 0.0, 128
        %2052 = vxpose.xlu0.b32.cont [9/16] 0.0, 128
        %2053 = vxpose.xlu0.b32.cont [10/16] 0.0, 128
        %2054 = vxpose.xlu0.b32.cont [11/16] 0.0, 128
        %2055 = vxpose.xlu0.b32.cont [12/16] 0.0, 128
        %2056 = vxpose.xlu0.b32.cont [13/16] 0.0, 128
        %2057 = vxpose.xlu0.b32.cont [14/16] 0.0, 128
        %2058 = vxpose.xlu0.b32.cont [15/16] 0.0, 128
        %2059 = vxpose.xlu0.b32.end [16/16] 0.0, 128
        %v2060 = vpop.trf.xlu0
        %v2061 = vpop.trf.xlu0
        %v2062 = vpop.trf.xlu0
        %v2063 = vpop.trf.xlu0
        %v2064 = vpop.trf.xlu0
        %v2065 = vpop.trf.xlu0
        %v2066 = vpop.trf.xlu0
        %v2067 = vpop.trf.xlu0
        %v2068 = vpop.trf.xlu0
        %v2069 = vpop.trf.xlu0
        %v2070 = vpop.trf.xlu0
        %v2071 = vpop.trf.xlu0
        %v2072 = vpop.trf.xlu0
        %v2073 = vpop.trf.xlu0
        %v2074 = vpop.trf.xlu0
        %v2075 = vpop.trf.xlu0
        %v2077 = vsel %vm1575, %v2060, 0
        %v2080 = vsel %vm1575, %v2061, 0
        %v2083 = vsel %vm1575, %v2062, 0
        %v2086 = vsel %vm1575, %v2063, 0
        %2088 = vmatprep.subr.mxu0 0.0
        %2089 = vmatpush1.msra.mxu0 0.0
        %2090 = vmatprep.subr.mxu0 0.0
        %2091 = vmatpush1.msra.mxu0 0.0
        %2092 = vmatprep.subr.mxu0 0.0
        %2093 = vmatpush1.msra.mxu0 0.0
        %2094 = vmatprep.subr.mxu0 0.0
        %2095 = vmatpush1.msra.mxu0 0.0
        %2096 = vmatprep.subr.mxu0 0.0
        %2097 = vmatpush1.msra.mxu0 0.0
        %2098 = vmatprep.subr.mxu0 0.0
        %2099 = vmatpush1.msra.mxu0 0.0
        %2100 = vmatprep.subr.mxu0 0.0
        %2101 = vmatpush1.msra.mxu0 0.0
        %2102 = vmatprep.subr.mxu0 0.0
        %2103 = vmatpush1.msra.mxu0 0.0
        %2104 = vmatprep.subr.mxu0 0.0
        %2105 = vmatpush1.msra.mxu0 0.0
        %2106 = vmatprep.subr.mxu0 0.0
        %2107 = vmatpush1.msra.mxu0 0.0
        %2108 = vmatprep.subr.mxu0 0.0
        %2109 = vmatpush1.msra.mxu0 0.0
        %2110 = vmatprep.subr.mxu0 0.0
        %2111 = vmatpush1.msra.mxu0 0.0
        %2112 = vmatprep.subr.mxu0 0.0
        %2113 = vmatpush1.msra.mxu0 0.0
        %2114 = vmatprep.subr.mxu0 0.0
        %2115 = vmatpush1.msra.mxu0 0.0
        %2116 = vmatprep.subr.mxu0 0.0
        %2117 = vmatpush1.msra.mxu0 0.0
        %2118 = vmatprep.subr.mxu0 0.0
        %2119 = vmatpush1.msra.mxu0 %v959
        %2120 = vmatprep.subr.mxu0 0.0
        %2121 = vmatpush2.msra.mxu0 0.0
        %2122 = vmatprep.subr.mxu0 0.0
        %2123 = vmatpush2.msra.mxu0 0.0
        %2124 = vmatprep.subr.mxu0 0.0
        %2125 = vmatpush2.msra.mxu0 0.0
        %2126 = vmatprep.subr.mxu0 0.0
        %2127 = vmatpush2.msra.mxu0 0.0
        %2128 = vmatprep.subr.mxu0 0.0
        %2129 = vmatpush2.msra.mxu0 0.0
        %2130 = vmatprep.subr.mxu0 0.0
        %2131 = vmatpush2.msra.mxu0 0.0
        %2132 = vmatprep.subr.mxu0 0.0
        %2133 = vmatpush2.msra.mxu0 0.0
        %2134 = vmatprep.subr.mxu0 0.0
        %2135 = vmatpush2.msra.mxu0 0.0
        %2136 = vmatprep.subr.mxu0 0.0
        %2137 = vmatpush2.msra.mxu0 0.0
        %2138 = vmatprep.subr.mxu0 0.0
        %2139 = vmatpush2.msra.mxu0 0.0
        %2140 = vmatprep.subr.mxu0 0.0
        %2141 = vmatpush2.msra.mxu0 0.0
        %2142 = vmatprep.subr.mxu0 0.0
        %2143 = vmatpush2.msra.mxu0 0.0
        %2144 = vmatprep.subr.mxu0 0.0
        %2145 = vmatpush2.msra.mxu0 0.0
        %2146 = vmatprep.subr.mxu0 0.0
        %2147 = vmatpush2.msra.mxu0 0.0
        %2148 = vmatprep.subr.mxu0 0.0
        %2149 = vmatpush2.msra.mxu0 0.0
        %2150 = vmatprep.subr.mxu0 0.0
        %2151 = vmatpush2.msra.mxu0 0.0
        %2152 = vmatprep.mubr.f32.mxu0 0.0
        %2153 = vmatmul.mubr.f32.gmra.mxu0 %v2077
        %v2154 = vpop.f32.mrf.mxu0
        %v2155 = vadd.f32 0.0, %v2154
        %v2156 = vpop.f32.mrf.mxu0
        %2157 = vmatprep.mubr.f32.mxu0 0.0
        %2158 = vmatmul.mubr.f32.gmra.mxu0 %v2080
        %v2159 = vpop.f32.mrf.mxu0
        %v2160 = vadd.f32 0.0, %v2159
        %v2161 = vpop.f32.mrf.mxu0
        %2162 = vmatprep.mubr.f32.mxu0 0.0
        %2163 = vmatmul.mubr.f32.gmra.mxu0 %v2083
        %v2164 = vpop.f32.mrf.mxu0
        %v2165 = vadd.f32 0.0, %v2164
        %v2166 = vpop.f32.mrf.mxu0
        %2167 = vmatprep.mubr.f32.mxu0 0.0
        %2168 = vmatmul.mubr.f32.gmra.mxu0 %v2086
        %v2169 = vpop.f32.mrf.mxu0
        %v2170 = vadd.f32 0.0, %v2169
        %v2171 = vpop.f32.mrf.mxu0
        %2172 = vdwg.mxu0
        %v2177 = vcombine.high %v2155, %v2155
        %v2178 = vcombine.high %v2160, %v2160
        %v2179 = vcombine.high %v2165, %v2165
        %v2180 = vcombine.high %v2170, %v2170
        %v2185 = vmul.f32 %v2155, %v795
        %v2186 = vmul.f32 %v2177, %v795
        %v2187 = vmul.f32 %v2160, %v795
        %v2188 = vmul.f32 %v2178, %v795
        %v2189 = vmul.f32 %v2165, %v795
        %v2190 = vmul.f32 %v2179, %v795
        %v2191 = vmul.f32 %v2170, %v795
        %v2192 = vmul.f32 %v2180, %v795
        %vm2193 = vcmask 257024
        %v2194 = vsel %vm2193, %v2185, 0.0
        %v2195 = vrot.slane %v2194, 4
        %v2196 = vadd.f32 %v2194, %v2195
        %v2197 = vrot.slane %v2196, 2
        %v2198 = vadd.f32 %v2196, %v2197
        %v2199 = vrot.slane %v2198, 1
        %v2200 = vadd.f32 %v2198, %v2199
        %v2201 = vsel %vm2193, %v2186, 0.0
        %v2202 = vrot.slane %v2201, 4
        %v2203 = vadd.f32 %v2201, %v2202
        %v2204 = vrot.slane %v2203, 2
        %v2205 = vadd.f32 %v2203, %v2204
        %v2206 = vrot.slane %v2205, 1
        %v2207 = vadd.f32 %v2205, %v2206
        %v2208 = vsel %vm2193, %v2187, 0.0
        %v2209 = vrot.slane %v2208, 4
        %v2210 = vadd.f32 %v2208, %v2209
        %v2211 = vrot.slane %v2210, 2
        %v2212 = vadd.f32 %v2210, %v2211
        %v2213 = vrot.slane %v2212, 1
        %v2214 = vadd.f32 %v2212, %v2213
        %v2215 = vsel %vm2193, %v2188, 0.0
        %v2216 = vrot.slane %v2215, 4
        %v2217 = vadd.f32 %v2215, %v2216
        %v2218 = vrot.slane %v2217, 2
        %v2219 = vadd.f32 %v2217, %v2218
        %v2220 = vrot.slane %v2219, 1
        %v2221 = vadd.f32 %v2219, %v2220
        %v2222 = vsel %vm2193, %v2189, 0.0
        %v2223 = vrot.slane %v2222, 4
        %v2224 = vadd.f32 %v2222, %v2223
        %v2225 = vrot.slane %v2224, 2
        %v2226 = vadd.f32 %v2224, %v2225
        %v2227 = vrot.slane %v2226, 1
        %v2228 = vadd.f32 %v2226, %v2227
        %v2229 = vsel %vm2193, %v2190, 0.0
        %v2230 = vrot.slane %v2229, 4
        %v2231 = vadd.f32 %v2229, %v2230
        %v2232 = vrot.slane %v2231, 2
        %v2233 = vadd.f32 %v2231, %v2232
        %v2234 = vrot.slane %v2233, 1
        %v2235 = vadd.f32 %v2233, %v2234
        %v2236 = vsel %vm2193, %v2191, 0.0
        %v2237 = vrot.slane %v2236, 4
        %v2238 = vadd.f32 %v2236, %v2237
        %v2239 = vrot.slane %v2238, 2
        %v2240 = vadd.f32 %v2238, %v2239
        %v2241 = vrot.slane %v2240, 1
        %v2242 = vadd.f32 %v2240, %v2241
        %v2243 = vsel %vm2193, %v2192, 0.0
        %v2244 = vrot.slane %v2243, 4
        %v2245 = vadd.f32 %v2243, %v2244
        %v2246 = vrot.slane %v2245, 2
        %v2247 = vadd.f32 %v2245, %v2246
        %v2248 = vrot.slane %v2247, 1
        %v2249 = vadd.f32 %v2247, %v2248
        %v2251 = vsel %vm1257, %v1789, 0
        %vm2253 = vcmask 1043456
        %v2255 = vsel %vm2253, %v795, 0
        %2257 = vmatprep.subr.mxu0 0.0
        %2258 = vmatpush1.msra.mxu0 0.0
        %2259 = vmatprep.subr.mxu0 0.0
        %2260 = vmatpush1.msra.mxu0 0.0
        %2261 = vmatprep.subr.mxu0 0.0
        %2262 = vmatpush1.msra.mxu0 0.0
        %2263 = vmatprep.subr.mxu0 0.0
        %2264 = vmatpush1.msra.mxu0 0.0
        %2265 = vmatprep.subr.mxu0 0.0
        %2266 = vmatpush1.msra.mxu0 0.0
        %2267 = vmatprep.subr.mxu0 0.0
        %2268 = vmatpush1.msra.mxu0 0.0
        %2269 = vmatprep.subr.mxu0 0.0
        %2270 = vmatpush1.msra.mxu0 0.0
        %2271 = vmatprep.subr.mxu0 0.0
        %2272 = vmatpush1.msra.mxu0 0.0
        %2273 = vmatprep.subr.mxu0 0.0
        %2274 = vmatpush1.msra.mxu0 0.0
        %2275 = vmatprep.subr.mxu0 0.0
        %2276 = vmatpush1.msra.mxu0 0.0
        %2277 = vmatprep.subr.mxu0 0.0
        %2278 = vmatpush1.msra.mxu0 0.0
        %2279 = vmatprep.subr.mxu0 0.0
        %2280 = vmatpush1.msra.mxu0 0.0
        %2281 = vmatprep.subr.mxu0 0.0
        %2282 = vmatpush1.msra.mxu0 0.0
        %2283 = vmatprep.subr.mxu0 0.0
        %2284 = vmatpush1.msra.mxu0 0.0
        %2285 = vmatprep.subr.mxu0 0.0
        %2286 = vmatpush1.msra.mxu0 0.0
        %2287 = vmatprep.subr.mxu0 0.0
        %2288 = vmatpush1.msra.mxu0 %v2255
        %2289 = vmatprep.subr.mxu0 0.0
        %2290 = vmatpush2.msra.mxu0 0.0
        %2291 = vmatprep.subr.mxu0 0.0
        %2292 = vmatpush2.msra.mxu0 0.0
        %2293 = vmatprep.subr.mxu0 0.0
        %2294 = vmatpush2.msra.mxu0 0.0
        %2295 = vmatprep.subr.mxu0 0.0
        %2296 = vmatpush2.msra.mxu0 0.0
        %2297 = vmatprep.subr.mxu0 0.0
        %2298 = vmatpush2.msra.mxu0 0.0
        %2299 = vmatprep.subr.mxu0 0.0
        %2300 = vmatpush2.msra.mxu0 0.0
        %2301 = vmatprep.subr.mxu0 0.0
        %2302 = vmatpush2.msra.mxu0 0.0
        %2303 = vmatprep.subr.mxu0 0.0
        %2304 = vmatpush2.msra.mxu0 0.0
        %2305 = vmatprep.subr.mxu0 0.0
        %2306 = vmatpush2.msra.mxu0 0.0
        %2307 = vmatprep.subr.mxu0 0.0
        %2308 = vmatpush2.msra.mxu0 0.0
        %2309 = vmatprep.subr.mxu0 0.0
        %2310 = vmatpush2.msra.mxu0 0.0
        %2311 = vmatprep.subr.mxu0 0.0
        %2312 = vmatpush2.msra.mxu0 0.0
        %2313 = vmatprep.subr.mxu0 0.0
        %2314 = vmatpush2.msra.mxu0 0.0
        %2315 = vmatprep.subr.mxu0 0.0
        %2316 = vmatpush2.msra.mxu0 0.0
        %2317 = vmatprep.subr.mxu0 0.0
        %2318 = vmatpush2.msra.mxu0 0.0
        %2319 = vmatprep.subr.mxu0 0.0
        %2320 = vmatpush2.msra.mxu0 0.0
        %2321 = vmatprep.mubr.f32.mxu0 0.0
        %2322 = vmatmul.mubr.f32.gmra.mxu0 %v2251
        %v2323 = vpop.f32.mrf.mxu0
        %v2324 = vadd.f32 0.0, %v2323
        %v2325 = vpop.f32.mrf.mxu0
        %2326 = vdwg.mxu0
        %v2327 = vld [vmem:[#allocation6] sm:$0xff]
        %v2328 = vmul.f32 %v2324, %v2327
        %vm2337 = vcmask 1041409
        %v2338 = vsel %vm2337, %v2207, %v2200
        %vm2339 = vcmask 1042434
        %v2340 = vsel %vm2339, %v2214, %v2338
        %vm2341 = vcmask 1043459
        %v2342 = vsel %vm2341, %v2221, %v2340
        %vm2343 = vcmask 1044484
        %v2344 = vsel %vm2343, %v2228, %v2342
        %vm2345 = vcmask 1045509
        %v2346 = vsel %vm2345, %v2235, %v2344
        %vm2347 = vcmask 1046534
        %v2348 = vsel %vm2347, %v2242, %v2346
        %vm2349 = vcmask 1047559
        %v2350 = vsel %vm2349, %v2249, %v2348
        %v2352 = vadd.f32 %v2328, %v2350
        %2353 = vst.msk [vmem:[#allocation6] sm:$0xff] %vm878, %v2352
        %2354 = vst.msk [vmem:[#allocation4] sm:$0xff] %vm1257, %v1786
        // Predicated region
        $region77: #{cross_graph_attention_forward.3} parent=71 // pred_check
          %p2355 = pneg %p580
        $region78: #{cross_graph_attention_forward.3} parent=71 // pred_check_branch
          %2357 = sbr.rel (%p2355) target = $region80
        $region79: #{cross_graph_attention_forward.3} parent=71 // pred_region
          %v2358 = vld [vmem:[#allocation6] sm:$0xff]
          %v2359 = vld [vmem:[#allocation5] sm:$0xff]
          %v2360 = vrcp.pop %v2359
          %v2362 = vsel %vm1257, %v2360, 0
          %2364 = vmatprep.subr.mxu0 0.0
          %2365 = vmatpush1.msra.mxu0 0.0
          %2366 = vmatprep.subr.mxu0 0.0
          %2367 = vmatpush1.msra.mxu0 0.0
          %2368 = vmatprep.subr.mxu0 0.0
          %2369 = vmatpush1.msra.mxu0 0.0
          %2370 = vmatprep.subr.mxu0 0.0
          %2371 = vmatpush1.msra.mxu0 0.0
          %2372 = vmatprep.subr.mxu0 0.0
          %2373 = vmatpush1.msra.mxu0 0.0
          %2374 = vmatprep.subr.mxu0 0.0
          %2375 = vmatpush1.msra.mxu0 0.0
          %2376 = vmatprep.subr.mxu0 0.0
          %2377 = vmatpush1.msra.mxu0 0.0
          %2378 = vmatprep.subr.mxu0 0.0
          %2379 = vmatpush1.msra.mxu0 0.0
          %2380 = vmatprep.subr.mxu0 0.0
          %2381 = vmatpush1.msra.mxu0 0.0
          %2382 = vmatprep.subr.mxu0 0.0
          %2383 = vmatpush1.msra.mxu0 0.0
          %2384 = vmatprep.subr.mxu0 0.0
          %2385 = vmatpush1.msra.mxu0 0.0
          %2386 = vmatprep.subr.mxu0 0.0
          %2387 = vmatpush1.msra.mxu0 0.0
          %2388 = vmatprep.subr.mxu0 0.0
          %2389 = vmatpush1.msra.mxu0 0.0
          %2390 = vmatprep.subr.mxu0 0.0
          %2391 = vmatpush1.msra.mxu0 0.0
          %2392 = vmatprep.subr.mxu0 0.0
          %2393 = vmatpush1.msra.mxu0 0.0
          %2394 = vmatprep.subr.mxu0 0.0
          %2395 = vmatpush1.msra.mxu0 %v2255
          %2396 = vmatprep.subr.mxu0 0.0
          %2397 = vmatpush2.msra.mxu0 0.0
          %2398 = vmatprep.subr.mxu0 0.0
          %2399 = vmatpush2.msra.mxu0 0.0
          %2400 = vmatprep.subr.mxu0 0.0
          %2401 = vmatpush2.msra.mxu0 0.0
          %2402 = vmatprep.subr.mxu0 0.0
          %2403 = vmatpush2.msra.mxu0 0.0
          %2404 = vmatprep.subr.mxu0 0.0
          %2405 = vmatpush2.msra.mxu0 0.0
          %2406 = vmatprep.subr.mxu0 0.0
          %2407 = vmatpush2.msra.mxu0 0.0
          %2408 = vmatprep.subr.mxu0 0.0
          %2409 = vmatpush2.msra.mxu0 0.0
          %2410 = vmatprep.subr.mxu0 0.0
          %2411 = vmatpush2.msra.mxu0 0.0
          %2412 = vmatprep.subr.mxu0 0.0
          %2413 = vmatpush2.msra.mxu0 0.0
          %2414 = vmatprep.subr.mxu0 0.0
          %2415 = vmatpush2.msra.mxu0 0.0
          %2416 = vmatprep.subr.mxu0 0.0
          %2417 = vmatpush2.msra.mxu0 0.0
          %2418 = vmatprep.subr.mxu0 0.0
          %2419 = vmatpush2.msra.mxu0 0.0
          %2420 = vmatprep.subr.mxu0 0.0
          %2421 = vmatpush2.msra.mxu0 0.0
          %2422 = vmatprep.subr.mxu0 0.0
          %2423 = vmatpush2.msra.mxu0 0.0
          %2424 = vmatprep.subr.mxu0 0.0
          %2425 = vmatpush2.msra.mxu0 0.0
          %2426 = vmatprep.subr.mxu0 0.0
          %2427 = vmatpush2.msra.mxu0 0.0
          %2428 = vmatprep.mubr.f32.mxu0 0.0
          %2429 = vmatmul.mubr.f32.gmra.mxu0 %v2362
          %v2430 = vpop.f32.mrf.mxu0
          %v2431 = vadd.f32 0.0, %v2430
          %v2432 = vpop.f32.mrf.mxu0
          %2433 = vdwg.mxu0
          %v2434 = vmul.f32 %v2358, %v2431
          %vm2435 = vcmp.ge.f32.partialorder %v2434, 0.0
          %v2436 = vmul.f32 %v2434, 0.2
          %v2437 = vsel %vm2435, %v2434, %v2436
          %v2438 = vld [vmem:[%s12] sm:$0xff]
          %v2439 = vld [vmem:[%s12 + $0x8] sm:$0xff]
          %v2440 = vld [vmem:[%s12 + $0x10] sm:$0xff]
          %v2441 = vld [vmem:[%s12 + $0x18] sm:$0xff]
          %v2443 = vsel %vm878, %v2437, 0
          %v2446 = vsel %vm878, %v2438, 0
          %v2449 = vsel %vm878, %v2439, 0
          %v2452 = vsel %vm878, %v2440, 0
          %v2455 = vsel %vm878, %v2441, 0
          %2457 = vmatprep.subr.mxu0 0.0
          %2458 = vmatpush1.xpose.msra.mxu0 0.0
          %2459 = vmatprep.subr.mxu0 0.0
          %2460 = vmatpush1.xpose.msra.mxu0 0.0
          %2461 = vmatprep.subr.mxu0 0.0
          %2462 = vmatpush1.xpose.msra.mxu0 0.0
          %2463 = vmatprep.subr.mxu0 0.0
          %2464 = vmatpush1.xpose.msra.mxu0 0.0
          %2465 = vmatprep.subr.mxu0 0.0
          %2466 = vmatpush1.xpose.msra.mxu0 0.0
          %2467 = vmatprep.subr.mxu0 0.0
          %2468 = vmatpush1.xpose.msra.mxu0 0.0
          %2469 = vmatprep.subr.mxu0 0.0
          %2470 = vmatpush1.xpose.msra.mxu0 0.0
          %2471 = vmatprep.subr.mxu0 0.0
          %2472 = vmatpush1.xpose.msra.mxu0 0.0
          %2473 = vmatprep.subr.mxu0 0.0
          %2474 = vmatpush1.xpose.msra.mxu0 0.0
          %2475 = vmatprep.subr.mxu0 0.0
          %2476 = vmatpush1.xpose.msra.mxu0 0.0
          %2477 = vmatprep.subr.mxu0 0.0
          %2478 = vmatpush1.xpose.msra.mxu0 0.0
          %2479 = vmatprep.subr.mxu0 0.0
          %2480 = vmatpush1.xpose.msra.mxu0 0.0
          %2481 = vmatprep.subr.mxu0 0.0
          %2482 = vmatpush1.xpose.msra.mxu0 %v2455
          %2483 = vmatprep.subr.mxu0 0.0
          %2484 = vmatpush1.xpose.msra.mxu0 %v2452
          %2485 = vmatprep.subr.mxu0 0.0
          %2486 = vmatpush1.xpose.msra.mxu0 %v2449
          %2487 = vmatprep.subr.mxu0 0.0
          %2488 = vmatpush1.xpose.msra.mxu0 %v2446
          %2489 = vmatprep.subr.mxu0 0.0
          %2490 = vmatpush2.xpose.msra.mxu0 0.0
          %2491 = vmatprep.subr.mxu0 0.0
          %2492 = vmatpush2.xpose.msra.mxu0 0.0
          %2493 = vmatprep.subr.mxu0 0.0
          %2494 = vmatpush2.xpose.msra.mxu0 0.0
          %2495 = vmatprep.subr.mxu0 0.0
          %2496 = vmatpush2.xpose.msra.mxu0 0.0
          %2497 = vmatprep.subr.mxu0 0.0
          %2498 = vmatpush2.xpose.msra.mxu0 0.0
          %2499 = vmatprep.subr.mxu0 0.0
          %2500 = vmatpush2.xpose.msra.mxu0 0.0
          %2501 = vmatprep.subr.mxu0 0.0
          %2502 = vmatpush2.xpose.msra.mxu0 0.0
          %2503 = vmatprep.subr.mxu0 0.0
          %2504 = vmatpush2.xpose.msra.mxu0 0.0
          %2505 = vmatprep.subr.mxu0 0.0
          %2506 = vmatpush2.xpose.msra.mxu0 0.0
          %2507 = vmatprep.subr.mxu0 0.0
          %2508 = vmatpush2.xpose.msra.mxu0 0.0
          %2509 = vmatprep.subr.mxu0 0.0
          %2510 = vmatpush2.xpose.msra.mxu0 0.0
          %2511 = vmatprep.subr.mxu0 0.0
          %2512 = vmatpush2.xpose.msra.mxu0 0.0
          %2513 = vmatprep.subr.mxu0 0.0
          %2514 = vmatpush2.xpose.msra.mxu0 0.0
          %2515 = vmatprep.subr.mxu0 0.0
          %2516 = vmatpush2.xpose.msra.mxu0 0.0
          %2517 = vmatprep.subr.mxu0 0.0
          %2518 = vmatpush2.xpose.msra.mxu0 0.0
          %2519 = vmatprep.subr.mxu0 0.0
          %2520 = vmatpush2.xpose.msra.mxu0 0.0
          %2521 = vmatprep.mubr.f32.mxu0 0.0
          %2522 = vmatmul.mubr.f32.gmra.mxu0 %v2443
          %v2523 = vpop.f32.mrf.mxu0
          %v2524 = vadd.f32 0.0, %v2523
          %v2525 = vpop.f32.mrf.mxu0
          %2526 = vdwg.mxu0
          %2528 = vrot.lane.b32.xlu0 %v2524, 32
          %v2529 = vpop.permute.xlu0 %2528
          %v2531 = vadd.f32 %v1106, %v2529
          %2533 = vrot.lane.b32.xlu0 %v2531, 96
          %v2534 = vpop.permute.xlu0 %2533
          %2536 = vst.msk [vmem:[%s551] sm:$0xff] %vm878, %v2534
        $region80: #{cross_graph_attention_forward.3} parent=71 // pred_fallthru
          _
        %s2537 = sand.u32 %s353, 1
        %s2538 = scalar_lea.sflag [#allocation8], %s2537
        %s2539 = sand.u32 %s353, 1
        %s2540 = smul.addr %s2539, 8
        %s2541 = scalar_lea.vmem [#allocation7], %s2540
        %s2542 = sand.u32 %s379, 1
        %s2543 = scalar_lea.sflag [#allocation10], %s2542
        %s2544 = sand.u32 %s379, 1
        %s2545 = smul.addr %s2544, 8
        %s2546 = scalar_lea.vmem [#allocation9], %s2545
        // Predicated region
        $region81: #{cross_graph_attention_forward.3} parent=71 // pred_check
          %p2547 = pneg %p363
        $region82: #{cross_graph_attention_forward.3} parent=71 // pred_check_branch
          %2549 = sbr.rel (%p2547) target = $region84
        $region83: #{cross_graph_attention_forward.3} parent=71 // pred_region
          %s2551 = ssub.s32 128, 128
          %2552 = vsyncadd %s2538, %s2551
          %s2553 = sadd.s32 %s37, %s36
          %s2554 = smul.addr %s2553, 128
          %s2555 = scalar_lea.hbm %s13, %s2554
          %s2557 = sshll.u32 %s2541, 4
          %s2558 = int_to_ptr.vmem [resolvable:$true] %s2557
          %2560 = dma.vmem_to_hbm [thread:$0]  %s2558, 128, %s2555, %s2538
        $region84: #{cross_graph_attention_forward.3} parent=71 // pred_fallthru
          _
        // Predicated region
        $region85: #{cross_graph_attention_forward.3} parent=71 // pred_check
          %p2561 = pneg %p389
        $region86: #{cross_graph_attention_forward.3} parent=71 // pred_check_branch
          %2563 = sbr.rel (%p2561) target = $region88
        $region87: #{cross_graph_attention_forward.3} parent=71 // pred_region
          %s2565 = ssub.s32 128, 128
          %2566 = vsyncadd %s2543, %s2565
          %s2567 = smul.addr %s36, 128
          %s2568 = scalar_lea.hbm %s14, %s2567
          %s2570 = sshll.u32 %s2546, 4
          %s2571 = int_to_ptr.vmem [resolvable:$true] %s2570
          %2573 = dma.vmem_to_hbm [thread:$0]  %s2571, 128, %s2568, %s2543
        $region88: #{cross_graph_attention_forward.3} parent=71 // pred_fallthru
          _
      $region72: #{cross_graph_attention_forward.3} parent=5 // pred_fallthru
        _
      %p2574 = scmp.le.s32.totalorder 2, %s27
      // Predicated region
      $region89: #{cross_graph_attention_forward.3} parent=5 // pred_check
        %p2575 = pneg %p2574
      $region90: #{cross_graph_attention_forward.3} parent=5 // pred_check_branch
        %2577 = sbr.rel (%p2575) target = $region92
      $region91: #{cross_graph_attention_forward.3} parent=5 // pred_region
        %s2578 = ssub.s32 %s27, 2
        // Predicated region
        $region93: #{cross_graph_attention_forward.3} parent=91 // pred_check
          %p2579 = pneg %p369
        $region94: #{cross_graph_attention_forward.3} parent=91 // pred_check_branch
          %2581 = sbr.rel (%p2579) target = $region96
        $region95: #{cross_graph_attention_forward.3} parent=91 // pred_region
          %s2582 = sand.u32 %s354, 1
          %s2583 = scalar_lea.sflag [#allocation8], %s2582
          %s2584 = sand.u32 %s354, 1
          %s2585 = smul.addr %s2584, 8
          %s2586 = scalar_lea.vmem [#allocation7], %s2585
          %2587 = dma.done %s2583, 128
        $region96: #{cross_graph_attention_forward.3} parent=91 // pred_fallthru
          _
        // Predicated region
        $region97: #{cross_graph_attention_forward.3} parent=91 // pred_check
          %p2588 = pneg %p395
        $region98: #{cross_graph_attention_forward.3} parent=91 // pred_check_branch
          %2590 = sbr.rel (%p2588) target = $region100
        $region99: #{cross_graph_attention_forward.3} parent=91 // pred_region
          %s2591 = sand.u32 %s380, 1
          %s2592 = scalar_lea.sflag [#allocation10], %s2591
          %s2593 = sand.u32 %s380, 1
          %s2594 = smul.addr %s2593, 8
          %s2595 = scalar_lea.vmem [#allocation9], %s2594
          %2596 = dma.done %s2592, 128
        $region100: #{cross_graph_attention_forward.3} parent=91 // pred_fallthru
          _
      $region92: #{cross_graph_attention_forward.3} parent=5 // pred_fallthru
        _
    $region6: #{cross_graph_attention_forward.3} parent=1 // loop_footer
      %s31 = sadd.s32 1, %s27
    $region7: #{cross_graph_attention_forward.3} parent=1 // loop_footer_branch
      %26 = sbr.rel target = $region3
    $region8: #{cross_graph_attention_forward.3} parent=1 // loop_exit
      _
    %2597 = vsyncpa [#allocation8], 1
    %s2598 = scalar_lea.sflag [#allocation8], 1
    %2599 = vsyncpa %s2598, 1
    %2600 = vsyncpa [#allocation10], 1
    %s2601 = scalar_lea.sflag [#allocation10], 1
    %2602 = vsyncpa %s2601, 1

</llo_original>
